<compile_context>
chip_gen: v5e
topology: v5e:2x2
jax: 0.10.0
libtpu: 0.0.40
codegen_flags: <defaults>
</compile_context>

<pallas_src>
import functools

import jax
import jax.numpy as jnp
from jax.experimental import pallas as pl
from jax.experimental.pallas import tpu as pltpu


def _mlp_logsoftmax_kernel(x_ref, w1_ref, b1_ref, w2_ref, b2_ref, out_ref):
    # hidden layer: (tb, 9216) bf16 @ (9216, 128) bf16 -> f32 accumulate on MXU
    h = jnp.dot(x_ref[...], w1_ref[...], preferred_element_type=jnp.float32)
    h = jnp.maximum(h + b1_ref[...], 0.0)
    # dropout(p=0.5): identity in eval/inference mode.
    # TODO(synk): training-mode dropout (random masking) not implemented.
    logits = (
        jnp.dot(h, w2_ref[...], preferred_element_type=jnp.float32) + b2_ref[...]
    )
    # log_softmax over the class dim (axis=1)
    m = jnp.max(logits, axis=-1, keepdims=True)
    s = logits - m
    lse = jnp.log(jnp.sum(jnp.exp(s), axis=-1, keepdims=True))
    out_ref[...] = s - lse


@functools.partial(jax.jit, static_argnames=("tb",))
def server_model_femnist_forward(x, w1, b1, w2, b2, *, tb=128):
    """x: (B, 9216); w1: (9216, 128); b1: (128,); w2: (128, C); b2: (C,)."""
    B, K = x.shape
    H = w1.shape[1]
    C = w2.shape[1]

    tb = min(tb, B)
    nb = pl.cdiv(B, tb)

    # Stream the big operands as bf16 (halves the dominant W1 HBM read).
    x_bf16 = x.astype(jnp.bfloat16)
    w1_bf16 = w1.astype(jnp.bfloat16)
    b1_2d = b1.reshape(1, H).astype(jnp.float32)
    w2_f32 = w2.astype(jnp.float32)
    b2_2d = b2.reshape(1, C).astype(jnp.float32)

    return pl.pallas_call(
        _mlp_logsoftmax_kernel,
        out_shape=jax.ShapeDtypeStruct((B, C), jnp.float32),
        grid_spec=pltpu.PrefetchScalarGridSpec(
            num_scalar_prefetch=0,
            grid=(nb,),
            in_specs=[
                pl.BlockSpec((tb, K), lambda b: (b, 0)),   # x batch tile (bf16)
                pl.BlockSpec((K, H), lambda b: (0, 0)),    # W1, resident (bf16)
                pl.BlockSpec((1, H), lambda b: (0, 0)),    # b1
                pl.BlockSpec((H, C), lambda b: (0, 0)),    # W2 (f32, tiny)
                pl.BlockSpec((1, C), lambda b: (0, 0)),    # b2
            ],
            out_specs=pl.BlockSpec((tb, C), lambda b: (b, 0)),
        ),
        compiler_params=pltpu.CompilerParams(
            dimension_semantics=("parallel",),
        ),
    )(x_bf16, w1_bf16, b1_2d, w2_f32, b2_2d)


def _init_params(key, only_digits=False):
    """Deterministic init matching nn.Linear default (U[-1/sqrt(fan_in), +])."""
    n_classes = 10 if only_digits else 62
    k1, k2, k3, k4 = jax.random.split(key, 4)
    bound1 = 1.0 / jnp.sqrt(9216.0)
    bound2 = 1.0 / jnp.sqrt(128.0)
    w1 = jax.random.uniform(k1, (9216, 128), jnp.float32, -bound1, bound1)
    b1 = jax.random.uniform(k2, (128,), jnp.float32, -bound1, bound1)
    w2 = jax.random.uniform(k3, (128, n_classes), jnp.float32, -bound2, bound2)
    b2 = jax.random.uniform(k4, (n_classes,), jnp.float32, -bound2, bound2)
    return w1, b1, w2, b2


def _reference_forward(x, w1, b1, w2, b2):
    h = jnp.maximum(
        jnp.dot(x, w1, precision=jax.lax.Precision.HIGHEST) + b1, 0.0
    )
    logits = jnp.dot(h, w2, precision=jax.lax.Precision.HIGHEST) + b2
    return jax.nn.log_softmax(logits, axis=1)


if __name__ == "__main__":
    key = jax.random.PRNGKey(0)
    kx, kp = jax.random.split(key)

    B = 2  # small demo batch; feature dim 9216 is fixed by the module (Linear(9216, 128))
    x = jax.random.normal(kx, (B, 9216), jnp.float32)
    w1, b1, w2, b2 = _init_params(kp, only_digits=False)

    out = server_model_femnist_forward(x, w1, b1, w2, b2)
    out = jax.block_until_ready(out)
    assert out.shape == (B, 62)

    # Strict check against a reference that sees the same bf16-rounded inputs
    # (validates the kernel math / tiling), plus a loose check against the
    # full-f32 PyTorch-equivalent reference (validates semantics; bf16
    # streaming introduces ~1e-2-scale differences).
    x_b = x.astype(jnp.bfloat16).astype(jnp.float32)
    w1_b = w1.astype(jnp.bfloat16).astype(jnp.float32)
    ref_bf16 = _reference_forward(x_b, w1_b, b1, w2, b2)
    ref_f32 = _reference_forward(x, w1, b1, w2, b2)

    assert jnp.allclose(out, ref_bf16, atol=1e-2, rtol=1e-2), "mismatch vs bf16 reference"
    assert jnp.allclose(out, ref_f32, atol=5e-2, rtol=5e-2), "mismatch vs f32 reference"

    print("KERNEL_OK")
</pallas_src>

<mosaic_0001>
module attributes {stable_mosaic.version = 11 : i64} {
  func.func @_mlp_logsoftmax_kernel(%arg0: i32, %arg1: memref<2x9216xbf16, #tpu.memory_space<vmem>>, %arg2: memref<9216x128xbf16, #tpu.memory_space<vmem>>, %arg3: memref<1x128xf32, #tpu.memory_space<vmem>>, %arg4: memref<128x62xf32, #tpu.memory_space<vmem>>, %arg5: memref<1x62xf32, #tpu.memory_space<vmem>>, %arg6: memref<2x62xf32, #tpu.memory_space<vmem>>) attributes {dimension_semantics = [#tpu.dimension_semantics<parallel>], iteration_bounds = array<i64: 1>, scalar_prefetch = 0 : i64, scratch_operands = 0 : i64, tpu.core_type = #tpu.core_type<tc>, window_params = [{transform_indices = @transform_0, window_bounds = array<i64: 2, 9216>}, {pipeline_mode = #tpu.pipeline_mode<synchronous>, transform_indices = @transform_1, window_bounds = array<i64: 9216, 128>}, {pipeline_mode = #tpu.pipeline_mode<synchronous>, transform_indices = @transform_2, window_bounds = array<i64: 1, 128>}, {pipeline_mode = #tpu.pipeline_mode<synchronous>, transform_indices = @transform_3, window_bounds = array<i64: 128, 62>}, {pipeline_mode = #tpu.pipeline_mode<synchronous>, transform_indices = @transform_4, window_bounds = array<i64: 1, 62>}, {transform_indices = @transform_5, window_bounds = array<i64: 2, 62>}]} {
    %c0 = arith.constant 0 : index
    %c0_0 = arith.constant 0 : index
    %0 = vector.load %arg1[%c0, %c0_0] : memref<2x9216xbf16, #tpu.memory_space<vmem>>, vector<2x9216xbf16>
    %c0_1 = arith.constant 0 : index
    %c0_2 = arith.constant 0 : index
    %1 = vector.load %arg2[%c0_1, %c0_2] : memref<9216x128xbf16, #tpu.memory_space<vmem>>, vector<9216x128xbf16>
    %cst = arith.constant dense<0.000000e+00> : vector<2x128xf32>
    %2 = tpu.matmul %0, %1, %cst {dimension_numbers = #tpu.dot_dimension_numbers<[1], [0], [0], [1], [0, 0, 1, 1], [], []>} : vector<2x9216xbf16>, vector<9216x128xbf16>, vector<2x128xf32> -> vector<2x128xf32>
    %c0_3 = arith.constant 0 : index
    %c0_4 = arith.constant 0 : index
    %3 = vector.load %arg3[%c0_3, %c0_4] : memref<1x128xf32, #tpu.memory_space<vmem>>, vector<1x128xf32>
    %4 = vector.broadcast %3 : vector<1x128xf32> to vector<2x128xf32>
    %5 = arith.addf %2, %4 : vector<2x128xf32>
    %cst_5 = arith.constant 0.000000e+00 : f32
    %6 = vector.broadcast %cst_5 : f32 to vector<2x128xf32>
    %7 = arith.maximumf %5, %6 : vector<2x128xf32>
    %c0_6 = arith.constant 0 : index
    %c0_7 = arith.constant 0 : index
    %8 = vector.load %arg4[%c0_6, %c0_7] : memref<128x62xf32, #tpu.memory_space<vmem>>, vector<128x62xf32>
    %cst_8 = arith.constant dense<0.000000e+00> : vector<2x62xf32>
    %9 = tpu.matmul %7, %8, %cst_8 {dimension_numbers = #tpu.dot_dimension_numbers<[1], [0], [0], [1], [0, 0, 1, 1], [], []>} : vector<2x128xf32>, vector<128x62xf32>, vector<2x62xf32> -> vector<2x62xf32>
    %c0_9 = arith.constant 0 : index
    %c0_10 = arith.constant 0 : index
    %10 = vector.load %arg5[%c0_9, %c0_10] : memref<1x62xf32, #tpu.memory_space<vmem>>, vector<1x62xf32>
    %11 = vector.broadcast %10 : vector<1x62xf32> to vector<2x62xf32>
    %12 = arith.addf %9, %11 : vector<2x62xf32>
    %cst_11 = arith.constant dense<0xFF800000> : vector<2xf32>
    %13 = vector.multi_reduction <maximumf>, %12, %cst_11 [1] : vector<2x62xf32> to vector<2xf32>
    %14 = vector.shape_cast %13 : vector<2xf32> to vector<2x1xf32>
    %15 = vector.broadcast %14 : vector<2x1xf32> to vector<2x62xf32>
    %16 = arith.subf %12, %15 : vector<2x62xf32>
    %17 = math.exp %16 : vector<2x62xf32>
    %cst_12 = arith.constant dense<0.000000e+00> : vector<2xf32>
    %18 = vector.multi_reduction <add>, %17, %cst_12 [1] : vector<2x62xf32> to vector<2xf32>
    %19 = vector.shape_cast %18 : vector<2xf32> to vector<2x1xf32>
    %20 = math.log %19 : vector<2x1xf32>
    %21 = vector.broadcast %20 : vector<2x1xf32> to vector<2x62xf32>
    %22 = arith.subf %16, %21 : vector<2x62xf32>
    %c0_13 = arith.constant 0 : index
    %c0_14 = arith.constant 0 : index
    %23 = vector.load %arg6[%c0_13, %c0_14] : memref<2x62xf32, #tpu.memory_space<vmem>>, vector<2x62xf32>
    tpu.vector_store %arg6[%c0_13, %c0_14], %22 {strides = array<i32>} : memref<2x62xf32, #tpu.memory_space<vmem>>, vector<2x62xf32>,
    return
  }
  func.func @transform_0(%arg0: i32) -> (i32, i32) {
    %c0_i32 = arith.constant 0 : i32
    %c0_i32_0 = arith.constant 0 : i32
    return %arg0, %c0_i32 : i32, i32
  }
  func.func @transform_1(%arg0: i32) -> (i32, i32) {
    %c0_i32 = arith.constant 0 : i32
    %c0_i32_0 = arith.constant 0 : i32
    %c0_i32_1 = arith.constant 0 : i32
    return %c0_i32, %c0_i32_0 : i32, i32
  }
  func.func @transform_2(%arg0: i32) -> (i32, i32) {
    %c0_i32 = arith.constant 0 : i32
    %c0_i32_0 = arith.constant 0 : i32
    %c0_i32_1 = arith.constant 0 : i32
    return %c0_i32, %c0_i32_0 : i32, i32
  }
  func.func @transform_3(%arg0: i32) -> (i32, i32) {
    %c0_i32 = arith.constant 0 : i32
    %c0_i32_0 = arith.constant 0 : i32
    %c0_i32_1 = arith.constant 0 : i32
    return %c0_i32, %c0_i32_0 : i32, i32
  }
  func.func @transform_4(%arg0: i32) -> (i32, i32) {
    %c0_i32 = arith.constant 0 : i32
    %c0_i32_0 = arith.constant 0 : i32
    %c0_i32_1 = arith.constant 0 : i32
    return %c0_i32, %c0_i32_0 : i32, i32
  }
  func.func @transform_5(%arg0: i32) -> (i32, i32) {
    %c0_i32 = arith.constant 0 : i32
    %c0_i32_0 = arith.constant 0 : i32
    return %arg0, %c0_i32 : i32, i32
  }
}

</mosaic_0001>

<llo_original>
// kernel: server_model_femnist_forward.1
$region0: #{server_model_femnist_forward.1}
  #allocation0 [shape = 'u32[]', space=smem, size = 0x4, offset = 0x4, fixed_abs, tag = 'smem constant byte address 0x4 - core index']
  #allocation1 [shape = 'u32[72,128]{1,0:T(1,128)}', space=vmem, size = 0x9000, scoped, tag = 'internal scratch']
  %s0 = inlined_call_operand.vmem [shape: bf16[2,9216], index: 0, kind: input, shape index: {}]
  %s1 = inlined_call_operand.vmem [shape: bf16[9216,128], index: 1, kind: input, shape index: {}]
  %s2 = inlined_call_operand.vmem [shape: f32[1,128], index: 2, kind: input, shape index: {}]
  %s3 = inlined_call_operand.vmem [shape: f32[128,62], index: 3, kind: input, shape index: {}]
  %s4 = inlined_call_operand.vmem [shape: f32[1,62], index: 4, kind: input, shape index: {}]
  %s5 = inlined_call_operand.hbm [shape: f32[2,62], index: 5, kind: output, shape index: {}]
  %s6 = sld [smem:[#allocation0]]
  $region30: #{server_model_femnist_forward.1} parent=0
    _
  %s8 = ssub.s32 1, %s6
  %s9 = scalar_select 0, %s8, %s6
  $region1: #{server_model_femnist_forward.1} parent=0
    #allocation2 [shape = 'u8[1024]{0}', space=vmem, size = 0x400, scoped, tag = 'output window, operand 0, single buffered']
    #allocation3 [shape = 's32[1]{0}', space=sflag, size = 0x4, scoped, tag = 'scoped memory for server_model_femnist_forward.1']
    %10 = vsyncpa [#allocation3], 0
    // Predicated region
    $region2: #{server_model_femnist_forward.1} parent=1 // pred_check
      _
    $region3: #{server_model_femnist_forward.1} parent=1 // pred_check_branch
      %12 = sbr.rel (0) target = $region5
    $region4: #{server_model_femnist_forward.1} parent=1 // pred_region
      _
    $region5: #{server_model_femnist_forward.1} parent=1 // pred_fallthru
      _
    // Predicated region
    $region6: #{server_model_femnist_forward.1} parent=1 // pred_check
      _
    $region7: #{server_model_femnist_forward.1} parent=1 // pred_check_branch
      %14 = sbr.rel (0) target = $region9
    $region8: #{server_model_femnist_forward.1} parent=1 // pred_region
      _
    $region9: #{server_model_femnist_forward.1} parent=1 // pred_fallthru
      _
    // Predicated region
    $region10: #{server_model_femnist_forward.1} parent=1 // pred_check
      _
    $region11: #{server_model_femnist_forward.1} parent=1 // pred_check_branch
      %16 = sbr.rel (0) target = $region13
    $region12: #{server_model_femnist_forward.1} parent=1 // pred_region
      _
    $region13: #{server_model_femnist_forward.1} parent=1 // pred_fallthru
      _
    // Predicated region
    $region14: #{server_model_femnist_forward.1} parent=1 // pred_check
      _
    $region15: #{server_model_femnist_forward.1} parent=1 // pred_check_branch
      %18 = sbr.rel (0) target = $region17
    $region16: #{server_model_femnist_forward.1} parent=1 // pred_region
      _
    $region17: #{server_model_femnist_forward.1} parent=1 // pred_fallthru
      _
    // Predicated region
    $region18: #{server_model_femnist_forward.1} parent=1 // pred_check
      _
    $region19: #{server_model_femnist_forward.1} parent=1 // pred_check_branch
      %20 = sbr.rel (0) target = $region21
    $region20: #{server_model_femnist_forward.1} parent=1 // pred_region
      _
    $region21: #{server_model_femnist_forward.1} parent=1 // pred_fallthru
      _
    %v21 = vld [vmem:[%s0] sm:$0xff]
    %v22 = vld [vmem:[%s0 + $0x8] sm:$0xff]
    %v23 = vld [vmem:[%s0 + $0x10] sm:$0xff]
    %v24 = vld [vmem:[%s0 + $0x18] sm:$0xff]
    %v25 = vld [vmem:[%s0 + $0x20] sm:$0xff]
    %v26 = vld [vmem:[%s0 + $0x28] sm:$0xff]
    %v27 = vld [vmem:[%s0 + $0x30] sm:$0xff]
    %v28 = vld [vmem:[%s0 + $0x38] sm:$0xff]
    %v29 = vld [vmem:[%s0 + $0x40] sm:$0xff]
    %v30 = vld [vmem:[%s1] sm:$0xf]
    %v31 = vld [vmem:[%s1 + $0x4] sm:$0xf]
    %v32 = vld [vmem:[%s1 + $0x8] sm:$0xf]
    %v33 = vld [vmem:[%s1 + $0xc] sm:$0xf]
    %v34 = vld [vmem:[%s1 + $0x10] sm:$0xf]
    %v35 = vld [vmem:[%s1 + $0x14] sm:$0xf]
    %v36 = vld [vmem:[%s1 + $0x18] sm:$0xf]
    %v37 = vld [vmem:[%s1 + $0x1c] sm:$0xf]
    %v38 = vld [vmem:[%s1 + $0x20] sm:$0xf]
    %v39 = vld [vmem:[%s1 + $0x24] sm:$0xf]
    %v40 = vld [vmem:[%s1 + $0x28] sm:$0xf]
    %v41 = vld [vmem:[%s1 + $0x2c] sm:$0xf]
    %v42 = vld [vmem:[%s1 + $0x30] sm:$0xf]
    %v43 = vld [vmem:[%s1 + $0x34] sm:$0xf]
    %v44 = vld [vmem:[%s1 + $0x38] sm:$0xf]
    %v45 = vld [vmem:[%s1 + $0x3c] sm:$0xf]
    %v46 = vld [vmem:[%s1 + $0x40] sm:$0xf]
    %v47 = vld [vmem:[%s1 + $0x44] sm:$0xf]
    %v48 = vld [vmem:[%s1 + $0x48] sm:$0xf]
    %v49 = vld [vmem:[%s1 + $0x4c] sm:$0xf]
    %v50 = vld [vmem:[%s1 + $0x50] sm:$0xf]
    %v51 = vld [vmem:[%s1 + $0x54] sm:$0xf]
    %v52 = vld [vmem:[%s1 + $0x58] sm:$0xf]
    %v53 = vld [vmem:[%s1 + $0x5c] sm:$0xf]
    %v54 = vld [vmem:[%s1 + $0x60] sm:$0xf]
    %v55 = vld [vmem:[%s1 + $0x64] sm:$0xf]
    %v56 = vld [vmem:[%s1 + $0x68] sm:$0xf]
    %v57 = vld [vmem:[%s1 + $0x6c] sm:$0xf]
    %v58 = vld [vmem:[%s1 + $0x70] sm:$0xf]
    %v59 = vld [vmem:[%s1 + $0x74] sm:$0xf]
    %v60 = vld [vmem:[%s1 + $0x78] sm:$0xf]
    %v61 = vld [vmem:[%s1 + $0x7c] sm:$0xf]
    %v62 = vld [vmem:[%s1 + $0x80] sm:$0xf]
    %v63 = vld [vmem:[%s1 + $0x84] sm:$0xf]
    %v64 = vld [vmem:[%s1 + $0x88] sm:$0xf]
    %v65 = vld [vmem:[%s1 + $0x8c] sm:$0xf]
    %v66 = vld [vmem:[%s1 + $0x90] sm:$0xf]
    %v67 = vld [vmem:[%s1 + $0x94] sm:$0xf]
    %v68 = vld [vmem:[%s1 + $0x98] sm:$0xf]
    %v69 = vld [vmem:[%s1 + $0x9c] sm:$0xf]
    %v70 = vld [vmem:[%s1 + $0xa0] sm:$0xf]
    %v71 = vld [vmem:[%s1 + $0xa4] sm:$0xf]
    %v72 = vld [vmem:[%s1 + $0xa8] sm:$0xf]
    %v73 = vld [vmem:[%s1 + $0xac] sm:$0xf]
    %v74 = vld [vmem:[%s1 + $0xb0] sm:$0xf]
    %v75 = vld [vmem:[%s1 + $0xb4] sm:$0xf]
    %v76 = vld [vmem:[%s1 + $0xb8] sm:$0xf]
    %v77 = vld [vmem:[%s1 + $0xbc] sm:$0xf]
    %v78 = vld [vmem:[%s1 + $0xc0] sm:$0xf]
    %v79 = vld [vmem:[%s1 + $0xc4] sm:$0xf]
    %v80 = vld [vmem:[%s1 + $0xc8] sm:$0xf]
    %v81 = vld [vmem:[%s1 + $0xcc] sm:$0xf]
    %v82 = vld [vmem:[%s1 + $0xd0] sm:$0xf]
    %v83 = vld [vmem:[%s1 + $0xd4] sm:$0xf]
    %v84 = vld [vmem:[%s1 + $0xd8] sm:$0xf]
    %v85 = vld [vmem:[%s1 + $0xdc] sm:$0xf]
    %v86 = vld [vmem:[%s1 + $0xe0] sm:$0xf]
    %v87 = vld [vmem:[%s1 + $0xe4] sm:$0xf]
    %v88 = vld [vmem:[%s1 + $0xe8] sm:$0xf]
    %v89 = vld [vmem:[%s1 + $0xec] sm:$0xf]
    %v90 = vld [vmem:[%s1 + $0xf0] sm:$0xf]
    %v91 = vld [vmem:[%s1 + $0xf4] sm:$0xf]
    %v92 = vld [vmem:[%s1 + $0xf8] sm:$0xf]
    %v93 = vld [vmem:[%s1 + $0xfc] sm:$0xf]
    %v94 = vld [vmem:[%s1 + $0x100] sm:$0xf]
    %v95 = vld [vmem:[%s1 + $0x104] sm:$0xf]
    %v96 = vld [vmem:[%s1 + $0x108] sm:$0xf]
    %v97 = vld [vmem:[%s1 + $0x10c] sm:$0xf]
    %v98 = vld [vmem:[%s1 + $0x110] sm:$0xf]
    %v99 = vld [vmem:[%s1 + $0x114] sm:$0xf]
    %v100 = vld [vmem:[%s1 + $0x118] sm:$0xf]
    %v101 = vld [vmem:[%s1 + $0x11c] sm:$0xf]
    %v102 = vld [vmem:[%s1 + $0x120] sm:$0xf]
    %v103 = vld [vmem:[%s1 + $0x124] sm:$0xf]
    %v104 = vld [vmem:[%s1 + $0x128] sm:$0xf]
    %v105 = vld [vmem:[%s1 + $0x12c] sm:$0xf]
    %v106 = vld [vmem:[%s1 + $0x130] sm:$0xf]
    %v107 = vld [vmem:[%s1 + $0x134] sm:$0xf]
    %v108 = vld [vmem:[%s1 + $0x138] sm:$0xf]
    %v109 = vld [vmem:[%s1 + $0x13c] sm:$0xf]
    %v110 = vld [vmem:[%s1 + $0x140] sm:$0xf]
    %v111 = vld [vmem:[%s1 + $0x144] sm:$0xf]
    %v112 = vld [vmem:[%s1 + $0x148] sm:$0xf]
    %v113 = vld [vmem:[%s1 + $0x14c] sm:$0xf]
    %v114 = vld [vmem:[%s1 + $0x150] sm:$0xf]
    %v115 = vld [vmem:[%s1 + $0x154] sm:$0xf]
    %v116 = vld [vmem:[%s1 + $0x158] sm:$0xf]
    %v117 = vld [vmem:[%s1 + $0x15c] sm:$0xf]
    %v118 = vld [vmem:[%s1 + $0x160] sm:$0xf]
    %v119 = vld [vmem:[%s1 + $0x164] sm:$0xf]
    %v120 = vld [vmem:[%s1 + $0x168] sm:$0xf]
    %v121 = vld [vmem:[%s1 + $0x16c] sm:$0xf]
    %v122 = vld [vmem:[%s1 + $0x170] sm:$0xf]
    %v123 = vld [vmem:[%s1 + $0x174] sm:$0xf]
    %v124 = vld [vmem:[%s1 + $0x178] sm:$0xf]
    %v125 = vld [vmem:[%s1 + $0x17c] sm:$0xf]
    %v126 = vld [vmem:[%s1 + $0x180] sm:$0xf]
    %v127 = vld [vmem:[%s1 + $0x184] sm:$0xf]
    %v128 = vld [vmem:[%s1 + $0x188] sm:$0xf]
    %v129 = vld [vmem:[%s1 + $0x18c] sm:$0xf]
    %v130 = vld [vmem:[%s1 + $0x190] sm:$0xf]
    %v131 = vld [vmem:[%s1 + $0x194] sm:$0xf]
    %v132 = vld [vmem:[%s1 + $0x198] sm:$0xf]
    %v133 = vld [vmem:[%s1 + $0x19c] sm:$0xf]
    %v134 = vld [vmem:[%s1 + $0x1a0] sm:$0xf]
    %v135 = vld [vmem:[%s1 + $0x1a4] sm:$0xf]
    %v136 = vld [vmem:[%s1 + $0x1a8] sm:$0xf]
    %v137 = vld [vmem:[%s1 + $0x1ac] sm:$0xf]
    %v138 = vld [vmem:[%s1 + $0x1b0] sm:$0xf]
    %v139 = vld [vmem:[%s1 + $0x1b4] sm:$0xf]
    %v140 = vld [vmem:[%s1 + $0x1b8] sm:$0xf]
    %v141 = vld [vmem:[%s1 + $0x1bc] sm:$0xf]
    %v142 = vld [vmem:[%s1 + $0x1c0] sm:$0xf]
    %v143 = vld [vmem:[%s1 + $0x1c4] sm:$0xf]
    %v144 = vld [vmem:[%s1 + $0x1c8] sm:$0xf]
    %v145 = vld [vmem:[%s1 + $0x1cc] sm:$0xf]
    %v146 = vld [vmem:[%s1 + $0x1d0] sm:$0xf]
    %v147 = vld [vmem:[%s1 + $0x1d4] sm:$0xf]
    %v148 = vld [vmem:[%s1 + $0x1d8] sm:$0xf]
    %v149 = vld [vmem:[%s1 + $0x1dc] sm:$0xf]
    %v150 = vld [vmem:[%s1 + $0x1e0] sm:$0xf]
    %v151 = vld [vmem:[%s1 + $0x1e4] sm:$0xf]
    %v152 = vld [vmem:[%s1 + $0x1e8] sm:$0xf]
    %v153 = vld [vmem:[%s1 + $0x1ec] sm:$0xf]
    %v154 = vld [vmem:[%s1 + $0x1f0] sm:$0xf]
    %v155 = vld [vmem:[%s1 + $0x1f4] sm:$0xf]
    %v156 = vld [vmem:[%s1 + $0x1f8] sm:$0xf]
    %v157 = vld [vmem:[%s1 + $0x1fc] sm:$0xf]
    %v158 = vld [vmem:[%s1 + $0x200] sm:$0xf]
    %v159 = vld [vmem:[%s1 + $0x204] sm:$0xf]
    %v160 = vld [vmem:[%s1 + $0x208] sm:$0xf]
    %v161 = vld [vmem:[%s1 + $0x20c] sm:$0xf]
    %v162 = vld [vmem:[%s1 + $0x210] sm:$0xf]
    %v163 = vld [vmem:[%s1 + $0x214] sm:$0xf]
    %v164 = vld [vmem:[%s1 + $0x218] sm:$0xf]
    %v165 = vld [vmem:[%s1 + $0x21c] sm:$0xf]
    %v166 = vld [vmem:[%s1 + $0x220] sm:$0xf]
    %v167 = vld [vmem:[%s1 + $0x224] sm:$0xf]
    %v168 = vld [vmem:[%s1 + $0x228] sm:$0xf]
    %v169 = vld [vmem:[%s1 + $0x22c] sm:$0xf]
    %v170 = vld [vmem:[%s1 + $0x230] sm:$0xf]
    %v171 = vld [vmem:[%s1 + $0x234] sm:$0xf]
    %v172 = vld [vmem:[%s1 + $0x238] sm:$0xf]
    %v173 = vld [vmem:[%s1 + $0x23c] sm:$0xf]
    %v174 = vld [vmem:[%s1 + $0x240] sm:$0xf]
    %v175 = vld [vmem:[%s1 + $0x244] sm:$0xf]
    %v176 = vld [vmem:[%s1 + $0x248] sm:$0xf]
    %v177 = vld [vmem:[%s1 + $0x24c] sm:$0xf]
    %v178 = vld [vmem:[%s1 + $0x250] sm:$0xf]
    %v179 = vld [vmem:[%s1 + $0x254] sm:$0xf]
    %v180 = vld [vmem:[%s1 + $0x258] sm:$0xf]
    %v181 = vld [vmem:[%s1 + $0x25c] sm:$0xf]
    %v182 = vld [vmem:[%s1 + $0x260] sm:$0xf]
    %v183 = vld [vmem:[%s1 + $0x264] sm:$0xf]
    %v184 = vld [vmem:[%s1 + $0x268] sm:$0xf]
    %v185 = vld [vmem:[%s1 + $0x26c] sm:$0xf]
    %v186 = vld [vmem:[%s1 + $0x270] sm:$0xf]
    %v187 = vld [vmem:[%s1 + $0x274] sm:$0xf]
    %v188 = vld [vmem:[%s1 + $0x278] sm:$0xf]
    %v189 = vld [vmem:[%s1 + $0x27c] sm:$0xf]
    %v190 = vld [vmem:[%s1 + $0x280] sm:$0xf]
    %v191 = vld [vmem:[%s1 + $0x284] sm:$0xf]
    %v192 = vld [vmem:[%s1 + $0x288] sm:$0xf]
    %v193 = vld [vmem:[%s1 + $0x28c] sm:$0xf]
    %v194 = vld [vmem:[%s1 + $0x290] sm:$0xf]
    %v195 = vld [vmem:[%s1 + $0x294] sm:$0xf]
    %v196 = vld [vmem:[%s1 + $0x298] sm:$0xf]
    %v197 = vld [vmem:[%s1 + $0x29c] sm:$0xf]
    %v198 = vld [vmem:[%s1 + $0x2a0] sm:$0xf]
    %v199 = vld [vmem:[%s1 + $0x2a4] sm:$0xf]
    %v200 = vld [vmem:[%s1 + $0x2a8] sm:$0xf]
    %v201 = vld [vmem:[%s1 + $0x2ac] sm:$0xf]
    %v202 = vld [vmem:[%s1 + $0x2b0] sm:$0xf]
    %v203 = vld [vmem:[%s1 + $0x2b4] sm:$0xf]
    %v204 = vld [vmem:[%s1 + $0x2b8] sm:$0xf]
    %v205 = vld [vmem:[%s1 + $0x2bc] sm:$0xf]
    %v206 = vld [vmem:[%s1 + $0x2c0] sm:$0xf]
    %v207 = vld [vmem:[%s1 + $0x2c4] sm:$0xf]
    %v208 = vld [vmem:[%s1 + $0x2c8] sm:$0xf]
    %v209 = vld [vmem:[%s1 + $0x2cc] sm:$0xf]
    %v210 = vld [vmem:[%s1 + $0x2d0] sm:$0xf]
    %v211 = vld [vmem:[%s1 + $0x2d4] sm:$0xf]
    %v212 = vld [vmem:[%s1 + $0x2d8] sm:$0xf]
    %v213 = vld [vmem:[%s1 + $0x2dc] sm:$0xf]
    %v214 = vld [vmem:[%s1 + $0x2e0] sm:$0xf]
    %v215 = vld [vmem:[%s1 + $0x2e4] sm:$0xf]
    %v216 = vld [vmem:[%s1 + $0x2e8] sm:$0xf]
    %v217 = vld [vmem:[%s1 + $0x2ec] sm:$0xf]
    %v218 = vld [vmem:[%s1 + $0x2f0] sm:$0xf]
    %v219 = vld [vmem:[%s1 + $0x2f4] sm:$0xf]
    %v220 = vld [vmem:[%s1 + $0x2f8] sm:$0xf]
    %v221 = vld [vmem:[%s1 + $0x2fc] sm:$0xf]
    %v222 = vld [vmem:[%s1 + $0x300] sm:$0xf]
    %v223 = vld [vmem:[%s1 + $0x304] sm:$0xf]
    %v224 = vld [vmem:[%s1 + $0x308] sm:$0xf]
    %v225 = vld [vmem:[%s1 + $0x30c] sm:$0xf]
    %v226 = vld [vmem:[%s1 + $0x310] sm:$0xf]
    %v227 = vld [vmem:[%s1 + $0x314] sm:$0xf]
    %v228 = vld [vmem:[%s1 + $0x318] sm:$0xf]
    %v229 = vld [vmem:[%s1 + $0x31c] sm:$0xf]
    %v230 = vld [vmem:[%s1 + $0x320] sm:$0xf]
    %v231 = vld [vmem:[%s1 + $0x324] sm:$0xf]
    %v232 = vld [vmem:[%s1 + $0x328] sm:$0xf]
    %v233 = vld [vmem:[%s1 + $0x32c] sm:$0xf]
    %v234 = vld [vmem:[%s1 + $0x330] sm:$0xf]
    %v235 = vld [vmem:[%s1 + $0x334] sm:$0xf]
    %v236 = vld [vmem:[%s1 + $0x338] sm:$0xf]
    %v237 = vld [vmem:[%s1 + $0x33c] sm:$0xf]
    %v238 = vld [vmem:[%s1 + $0x340] sm:$0xf]
    %v239 = vld [vmem:[%s1 + $0x344] sm:$0xf]
    %v240 = vld [vmem:[%s1 + $0x348] sm:$0xf]
    %v241 = vld [vmem:[%s1 + $0x34c] sm:$0xf]
    %v242 = vld [vmem:[%s1 + $0x350] sm:$0xf]
    %v243 = vld [vmem:[%s1 + $0x354] sm:$0xf]
    %v244 = vld [vmem:[%s1 + $0x358] sm:$0xf]
    %v245 = vld [vmem:[%s1 + $0x35c] sm:$0xf]
    %v246 = vld [vmem:[%s1 + $0x360] sm:$0xf]
    %v247 = vld [vmem:[%s1 + $0x364] sm:$0xf]
    %v248 = vld [vmem:[%s1 + $0x368] sm:$0xf]
    %v249 = vld [vmem:[%s1 + $0x36c] sm:$0xf]
    %v250 = vld [vmem:[%s1 + $0x370] sm:$0xf]
    %v251 = vld [vmem:[%s1 + $0x374] sm:$0xf]
    %v252 = vld [vmem:[%s1 + $0x378] sm:$0xf]
    %v253 = vld [vmem:[%s1 + $0x37c] sm:$0xf]
    %v254 = vld [vmem:[%s1 + $0x380] sm:$0xf]
    %v255 = vld [vmem:[%s1 + $0x384] sm:$0xf]
    %v256 = vld [vmem:[%s1 + $0x388] sm:$0xf]
    %v257 = vld [vmem:[%s1 + $0x38c] sm:$0xf]
    %v258 = vld [vmem:[%s1 + $0x390] sm:$0xf]
    %v259 = vld [vmem:[%s1 + $0x394] sm:$0xf]
    %v260 = vld [vmem:[%s1 + $0x398] sm:$0xf]
    %v261 = vld [vmem:[%s1 + $0x39c] sm:$0xf]
    %v262 = vld [vmem:[%s1 + $0x3a0] sm:$0xf]
    %v263 = vld [vmem:[%s1 + $0x3a4] sm:$0xf]
    %v264 = vld [vmem:[%s1 + $0x3a8] sm:$0xf]
    %v265 = vld [vmem:[%s1 + $0x3ac] sm:$0xf]
    %v266 = vld [vmem:[%s1 + $0x3b0] sm:$0xf]
    %v267 = vld [vmem:[%s1 + $0x3b4] sm:$0xf]
    %v268 = vld [vmem:[%s1 + $0x3b8] sm:$0xf]
    %v269 = vld [vmem:[%s1 + $0x3bc] sm:$0xf]
    %v270 = vld [vmem:[%s1 + $0x3c0] sm:$0xf]
    %v271 = vld [vmem:[%s1 + $0x3c4] sm:$0xf]
    %v272 = vld [vmem:[%s1 + $0x3c8] sm:$0xf]
    %v273 = vld [vmem:[%s1 + $0x3cc] sm:$0xf]
    %v274 = vld [vmem:[%s1 + $0x3d0] sm:$0xf]
    %v275 = vld [vmem:[%s1 + $0x3d4] sm:$0xf]
    %v276 = vld [vmem:[%s1 + $0x3d8] sm:$0xf]
    %v277 = vld [vmem:[%s1 + $0x3dc] sm:$0xf]
    %v278 = vld [vmem:[%s1 + $0x3e0] sm:$0xf]
    %v279 = vld [vmem:[%s1 + $0x3e4] sm:$0xf]
    %v280 = vld [vmem:[%s1 + $0x3e8] sm:$0xf]
    %v281 = vld [vmem:[%s1 + $0x3ec] sm:$0xf]
    %v282 = vld [vmem:[%s1 + $0x3f0] sm:$0xf]
    %v283 = vld [vmem:[%s1 + $0x3f4] sm:$0xf]
    %v284 = vld [vmem:[%s1 + $0x3f8] sm:$0xf]
    %v285 = vld [vmem:[%s1 + $0x3fc] sm:$0xf]
    %v286 = vld [vmem:[%s1 + $0x400] sm:$0xf]
    %v287 = vld [vmem:[%s1 + $0x404] sm:$0xf]
    %v288 = vld [vmem:[%s1 + $0x408] sm:$0xf]
    %v289 = vld [vmem:[%s1 + $0x40c] sm:$0xf]
    %v290 = vld [vmem:[%s1 + $0x410] sm:$0xf]
    %v291 = vld [vmem:[%s1 + $0x414] sm:$0xf]
    %v292 = vld [vmem:[%s1 + $0x418] sm:$0xf]
    %v293 = vld [vmem:[%s1 + $0x41c] sm:$0xf]
    %v294 = vld [vmem:[%s1 + $0x420] sm:$0xf]
    %v295 = vld [vmem:[%s1 + $0x424] sm:$0xf]
    %v296 = vld [vmem:[%s1 + $0x428] sm:$0xf]
    %v297 = vld [vmem:[%s1 + $0x42c] sm:$0xf]
    %v298 = vld [vmem:[%s1 + $0x430] sm:$0xf]
    %v299 = vld [vmem:[%s1 + $0x434] sm:$0xf]
    %v300 = vld [vmem:[%s1 + $0x438] sm:$0xf]
    %v301 = vld [vmem:[%s1 + $0x43c] sm:$0xf]
    %v302 = vld [vmem:[%s1 + $0x440] sm:$0xf]
    %v303 = vld [vmem:[%s1 + $0x444] sm:$0xf]
    %v304 = vld [vmem:[%s1 + $0x448] sm:$0xf]
    %v305 = vld [vmem:[%s1 + $0x44c] sm:$0xf]
    %v306 = vld [vmem:[%s1 + $0x450] sm:$0xf]
    %v307 = vld [vmem:[%s1 + $0x454] sm:$0xf]
    %v308 = vld [vmem:[%s1 + $0x458] sm:$0xf]
    %v309 = vld [vmem:[%s1 + $0x45c] sm:$0xf]
    %v310 = vld [vmem:[%s1 + $0x460] sm:$0xf]
    %v311 = vld [vmem:[%s1 + $0x464] sm:$0xf]
    %v312 = vld [vmem:[%s1 + $0x468] sm:$0xf]
    %v313 = vld [vmem:[%s1 + $0x46c] sm:$0xf]
    %v314 = vld [vmem:[%s1 + $0x470] sm:$0xf]
    %v315 = vld [vmem:[%s1 + $0x474] sm:$0xf]
    %v316 = vld [vmem:[%s1 + $0x478] sm:$0xf]
    %v317 = vld [vmem:[%s1 + $0x47c] sm:$0xf]
    %v318 = vld [vmem:[%s1 + $0x480] sm:$0xf]
    %v319 = vld [vmem:[%s1 + $0x484] sm:$0xf]
    %v320 = vld [vmem:[%s1 + $0x488] sm:$0xf]
    %v321 = vld [vmem:[%s1 + $0x48c] sm:$0xf]
    %v322 = vld [vmem:[%s1 + $0x490] sm:$0xf]
    %v323 = vld [vmem:[%s1 + $0x494] sm:$0xf]
    %v324 = vld [vmem:[%s1 + $0x498] sm:$0xf]
    %v325 = vld [vmem:[%s1 + $0x49c] sm:$0xf]
    %v326 = vld [vmem:[%s1 + $0x4a0] sm:$0xf]
    %v327 = vld [vmem:[%s1 + $0x4a4] sm:$0xf]
    %v328 = vld [vmem:[%s1 + $0x4a8] sm:$0xf]
    %v329 = vld [vmem:[%s1 + $0x4ac] sm:$0xf]
    %v330 = vld [vmem:[%s1 + $0x4b0] sm:$0xf]
    %v331 = vld [vmem:[%s1 + $0x4b4] sm:$0xf]
    %v332 = vld [vmem:[%s1 + $0x4b8] sm:$0xf]
    %v333 = vld [vmem:[%s1 + $0x4bc] sm:$0xf]
    %v334 = vld [vmem:[%s1 + $0x4c0] sm:$0xf]
    %v335 = vld [vmem:[%s1 + $0x4c4] sm:$0xf]
    %v336 = vld [vmem:[%s1 + $0x4c8] sm:$0xf]
    %v337 = vld [vmem:[%s1 + $0x4cc] sm:$0xf]
    %v338 = vld [vmem:[%s1 + $0x4d0] sm:$0xf]
    %v339 = vld [vmem:[%s1 + $0x4d4] sm:$0xf]
    %v340 = vld [vmem:[%s1 + $0x4d8] sm:$0xf]
    %v341 = vld [vmem:[%s1 + $0x4dc] sm:$0xf]
    %v342 = vld [vmem:[%s1 + $0x4e0] sm:$0xf]
    %v343 = vld [vmem:[%s1 + $0x4e4] sm:$0xf]
    %v344 = vld [vmem:[%s1 + $0x4e8] sm:$0xf]
    %v345 = vld [vmem:[%s1 + $0x4ec] sm:$0xf]
    %v346 = vld [vmem:[%s1 + $0x4f0] sm:$0xf]
    %v347 = vld [vmem:[%s1 + $0x4f4] sm:$0xf]
    %v348 = vld [vmem:[%s1 + $0x4f8] sm:$0xf]
    %v349 = vld [vmem:[%s1 + $0x4fc] sm:$0xf]
    %v350 = vld [vmem:[%s1 + $0x500] sm:$0xf]
    %v351 = vld [vmem:[%s1 + $0x504] sm:$0xf]
    %v352 = vld [vmem:[%s1 + $0x508] sm:$0xf]
    %v353 = vld [vmem:[%s1 + $0x50c] sm:$0xf]
    %v354 = vld [vmem:[%s1 + $0x510] sm:$0xf]
    %v355 = vld [vmem:[%s1 + $0x514] sm:$0xf]
    %v356 = vld [vmem:[%s1 + $0x518] sm:$0xf]
    %v357 = vld [vmem:[%s1 + $0x51c] sm:$0xf]
    %v358 = vld [vmem:[%s1 + $0x520] sm:$0xf]
    %v359 = vld [vmem:[%s1 + $0x524] sm:$0xf]
    %v360 = vld [vmem:[%s1 + $0x528] sm:$0xf]
    %v361 = vld [vmem:[%s1 + $0x52c] sm:$0xf]
    %v362 = vld [vmem:[%s1 + $0x530] sm:$0xf]
    %v363 = vld [vmem:[%s1 + $0x534] sm:$0xf]
    %v364 = vld [vmem:[%s1 + $0x538] sm:$0xf]
    %v365 = vld [vmem:[%s1 + $0x53c] sm:$0xf]
    %v366 = vld [vmem:[%s1 + $0x540] sm:$0xf]
    %v367 = vld [vmem:[%s1 + $0x544] sm:$0xf]
    %v368 = vld [vmem:[%s1 + $0x548] sm:$0xf]
    %v369 = vld [vmem:[%s1 + $0x54c] sm:$0xf]
    %v370 = vld [vmem:[%s1 + $0x550] sm:$0xf]
    %v371 = vld [vmem:[%s1 + $0x554] sm:$0xf]
    %v372 = vld [vmem:[%s1 + $0x558] sm:$0xf]
    %v373 = vld [vmem:[%s1 + $0x55c] sm:$0xf]
    %v374 = vld [vmem:[%s1 + $0x560] sm:$0xf]
    %v375 = vld [vmem:[%s1 + $0x564] sm:$0xf]
    %v376 = vld [vmem:[%s1 + $0x568] sm:$0xf]
    %v377 = vld [vmem:[%s1 + $0x56c] sm:$0xf]
    %v378 = vld [vmem:[%s1 + $0x570] sm:$0xf]
    %v379 = vld [vmem:[%s1 + $0x574] sm:$0xf]
    %v380 = vld [vmem:[%s1 + $0x578] sm:$0xf]
    %v381 = vld [vmem:[%s1 + $0x57c] sm:$0xf]
    %v382 = vld [vmem:[%s1 + $0x580] sm:$0xf]
    %v383 = vld [vmem:[%s1 + $0x584] sm:$0xf]
    %v384 = vld [vmem:[%s1 + $0x588] sm:$0xf]
    %v385 = vld [vmem:[%s1 + $0x58c] sm:$0xf]
    %v386 = vld [vmem:[%s1 + $0x590] sm:$0xf]
    %v387 = vld [vmem:[%s1 + $0x594] sm:$0xf]
    %v388 = vld [vmem:[%s1 + $0x598] sm:$0xf]
    %v389 = vld [vmem:[%s1 + $0x59c] sm:$0xf]
    %v390 = vld [vmem:[%s1 + $0x5a0] sm:$0xf]
    %v391 = vld [vmem:[%s1 + $0x5a4] sm:$0xf]
    %v392 = vld [vmem:[%s1 + $0x5a8] sm:$0xf]
    %v393 = vld [vmem:[%s1 + $0x5ac] sm:$0xf]
    %v394 = vld [vmem:[%s1 + $0x5b0] sm:$0xf]
    %v395 = vld [vmem:[%s1 + $0x5b4] sm:$0xf]
    %v396 = vld [vmem:[%s1 + $0x5b8] sm:$0xf]
    %v397 = vld [vmem:[%s1 + $0x5bc] sm:$0xf]
    %v398 = vld [vmem:[%s1 + $0x5c0] sm:$0xf]
    %v399 = vld [vmem:[%s1 + $0x5c4] sm:$0xf]
    %v400 = vld [vmem:[%s1 + $0x5c8] sm:$0xf]
    %v401 = vld [vmem:[%s1 + $0x5cc] sm:$0xf]
    %v402 = vld [vmem:[%s1 + $0x5d0] sm:$0xf]
    %v403 = vld [vmem:[%s1 + $0x5d4] sm:$0xf]
    %v404 = vld [vmem:[%s1 + $0x5d8] sm:$0xf]
    %v405 = vld [vmem:[%s1 + $0x5dc] sm:$0xf]
    %v406 = vld [vmem:[%s1 + $0x5e0] sm:$0xf]
    %v407 = vld [vmem:[%s1 + $0x5e4] sm:$0xf]
    %v408 = vld [vmem:[%s1 + $0x5e8] sm:$0xf]
    %v409 = vld [vmem:[%s1 + $0x5ec] sm:$0xf]
    %v410 = vld [vmem:[%s1 + $0x5f0] sm:$0xf]
    %v411 = vld [vmem:[%s1 + $0x5f4] sm:$0xf]
    %v412 = vld [vmem:[%s1 + $0x5f8] sm:$0xf]
    %v413 = vld [vmem:[%s1 + $0x5fc] sm:$0xf]
    %v414 = vld [vmem:[%s1 + $0x600] sm:$0xf]
    %v415 = vld [vmem:[%s1 + $0x604] sm:$0xf]
    %v416 = vld [vmem:[%s1 + $0x608] sm:$0xf]
    %v417 = vld [vmem:[%s1 + $0x60c] sm:$0xf]
    %v418 = vld [vmem:[%s1 + $0x610] sm:$0xf]
    %v419 = vld [vmem:[%s1 + $0x614] sm:$0xf]
    %v420 = vld [vmem:[%s1 + $0x618] sm:$0xf]
    %v421 = vld [vmem:[%s1 + $0x61c] sm:$0xf]
    %v422 = vld [vmem:[%s1 + $0x620] sm:$0xf]
    %v423 = vld [vmem:[%s1 + $0x624] sm:$0xf]
    %v424 = vld [vmem:[%s1 + $0x628] sm:$0xf]
    %v425 = vld [vmem:[%s1 + $0x62c] sm:$0xf]
    %v426 = vld [vmem:[%s1 + $0x630] sm:$0xf]
    %v427 = vld [vmem:[%s1 + $0x634] sm:$0xf]
    %v428 = vld [vmem:[%s1 + $0x638] sm:$0xf]
    %v429 = vld [vmem:[%s1 + $0x63c] sm:$0xf]
    %v430 = vld [vmem:[%s1 + $0x640] sm:$0xf]
    %v431 = vld [vmem:[%s1 + $0x644] sm:$0xf]
    %v432 = vld [vmem:[%s1 + $0x648] sm:$0xf]
    %v433 = vld [vmem:[%s1 + $0x64c] sm:$0xf]
    %v434 = vld [vmem:[%s1 + $0x650] sm:$0xf]
    %v435 = vld [vmem:[%s1 + $0x654] sm:$0xf]
    %v436 = vld [vmem:[%s1 + $0x658] sm:$0xf]
    %v437 = vld [vmem:[%s1 + $0x65c] sm:$0xf]
    %v438 = vld [vmem:[%s1 + $0x660] sm:$0xf]
    %v439 = vld [vmem:[%s1 + $0x664] sm:$0xf]
    %v440 = vld [vmem:[%s1 + $0x668] sm:$0xf]
    %v441 = vld [vmem:[%s1 + $0x66c] sm:$0xf]
    %v442 = vld [vmem:[%s1 + $0x670] sm:$0xf]
    %v443 = vld [vmem:[%s1 + $0x674] sm:$0xf]
    %v444 = vld [vmem:[%s1 + $0x678] sm:$0xf]
    %v445 = vld [vmem:[%s1 + $0x67c] sm:$0xf]
    %v446 = vld [vmem:[%s1 + $0x680] sm:$0xf]
    %v447 = vld [vmem:[%s1 + $0x684] sm:$0xf]
    %v448 = vld [vmem:[%s1 + $0x688] sm:$0xf]
    %v449 = vld [vmem:[%s1 + $0x68c] sm:$0xf]
    %v450 = vld [vmem:[%s1 + $0x690] sm:$0xf]
    %v451 = vld [vmem:[%s1 + $0x694] sm:$0xf]
    %v452 = vld [vmem:[%s1 + $0x698] sm:$0xf]
    %v453 = vld [vmem:[%s1 + $0x69c] sm:$0xf]
    %v454 = vld [vmem:[%s1 + $0x6a0] sm:$0xf]
    %v455 = vld [vmem:[%s1 + $0x6a4] sm:$0xf]
    %v456 = vld [vmem:[%s1 + $0x6a8] sm:$0xf]
    %v457 = vld [vmem:[%s1 + $0x6ac] sm:$0xf]
    %v458 = vld [vmem:[%s1 + $0x6b0] sm:$0xf]
    %v459 = vld [vmem:[%s1 + $0x6b4] sm:$0xf]
    %v460 = vld [vmem:[%s1 + $0x6b8] sm:$0xf]
    %v461 = vld [vmem:[%s1 + $0x6bc] sm:$0xf]
    %v462 = vld [vmem:[%s1 + $0x6c0] sm:$0xf]
    %v463 = vld [vmem:[%s1 + $0x6c4] sm:$0xf]
    %v464 = vld [vmem:[%s1 + $0x6c8] sm:$0xf]
    %v465 = vld [vmem:[%s1 + $0x6cc] sm:$0xf]
    %v466 = vld [vmem:[%s1 + $0x6d0] sm:$0xf]
    %v467 = vld [vmem:[%s1 + $0x6d4] sm:$0xf]
    %v468 = vld [vmem:[%s1 + $0x6d8] sm:$0xf]
    %v469 = vld [vmem:[%s1 + $0x6dc] sm:$0xf]
    %v470 = vld [vmem:[%s1 + $0x6e0] sm:$0xf]
    %v471 = vld [vmem:[%s1 + $0x6e4] sm:$0xf]
    %v472 = vld [vmem:[%s1 + $0x6e8] sm:$0xf]
    %v473 = vld [vmem:[%s1 + $0x6ec] sm:$0xf]
    %v474 = vld [vmem:[%s1 + $0x6f0] sm:$0xf]
    %v475 = vld [vmem:[%s1 + $0x6f4] sm:$0xf]
    %v476 = vld [vmem:[%s1 + $0x6f8] sm:$0xf]
    %v477 = vld [vmem:[%s1 + $0x6fc] sm:$0xf]
    %v478 = vld [vmem:[%s1 + $0x700] sm:$0xf]
    %v479 = vld [vmem:[%s1 + $0x704] sm:$0xf]
    %v480 = vld [vmem:[%s1 + $0x708] sm:$0xf]
    %v481 = vld [vmem:[%s1 + $0x70c] sm:$0xf]
    %v482 = vld [vmem:[%s1 + $0x710] sm:$0xf]
    %v483 = vld [vmem:[%s1 + $0x714] sm:$0xf]
    %v484 = vld [vmem:[%s1 + $0x718] sm:$0xf]
    %v485 = vld [vmem:[%s1 + $0x71c] sm:$0xf]
    %v486 = vld [vmem:[%s1 + $0x720] sm:$0xf]
    %v487 = vld [vmem:[%s1 + $0x724] sm:$0xf]
    %v488 = vld [vmem:[%s1 + $0x728] sm:$0xf]
    %v489 = vld [vmem:[%s1 + $0x72c] sm:$0xf]
    %v490 = vld [vmem:[%s1 + $0x730] sm:$0xf]
    %v491 = vld [vmem:[%s1 + $0x734] sm:$0xf]
    %v492 = vld [vmem:[%s1 + $0x738] sm:$0xf]
    %v493 = vld [vmem:[%s1 + $0x73c] sm:$0xf]
    %v494 = vld [vmem:[%s1 + $0x740] sm:$0xf]
    %v495 = vld [vmem:[%s1 + $0x744] sm:$0xf]
    %v496 = vld [vmem:[%s1 + $0x748] sm:$0xf]
    %v497 = vld [vmem:[%s1 + $0x74c] sm:$0xf]
    %v498 = vld [vmem:[%s1 + $0x750] sm:$0xf]
    %v499 = vld [vmem:[%s1 + $0x754] sm:$0xf]
    %v500 = vld [vmem:[%s1 + $0x758] sm:$0xf]
    %v501 = vld [vmem:[%s1 + $0x75c] sm:$0xf]
    %v502 = vld [vmem:[%s1 + $0x760] sm:$0xf]
    %v503 = vld [vmem:[%s1 + $0x764] sm:$0xf]
    %v504 = vld [vmem:[%s1 + $0x768] sm:$0xf]
    %v505 = vld [vmem:[%s1 + $0x76c] sm:$0xf]
    %v506 = vld [vmem:[%s1 + $0x770] sm:$0xf]
    %v507 = vld [vmem:[%s1 + $0x774] sm:$0xf]
    %v508 = vld [vmem:[%s1 + $0x778] sm:$0xf]
    %v509 = vld [vmem:[%s1 + $0x77c] sm:$0xf]
    %v510 = vld [vmem:[%s1 + $0x780] sm:$0xf]
    %v511 = vld [vmem:[%s1 + $0x784] sm:$0xf]
    %v512 = vld [vmem:[%s1 + $0x788] sm:$0xf]
    %v513 = vld [vmem:[%s1 + $0x78c] sm:$0xf]
    %v514 = vld [vmem:[%s1 + $0x790] sm:$0xf]
    %v515 = vld [vmem:[%s1 + $0x794] sm:$0xf]
    %v516 = vld [vmem:[%s1 + $0x798] sm:$0xf]
    %v517 = vld [vmem:[%s1 + $0x79c] sm:$0xf]
    %v518 = vld [vmem:[%s1 + $0x7a0] sm:$0xf]
    %v519 = vld [vmem:[%s1 + $0x7a4] sm:$0xf]
    %v520 = vld [vmem:[%s1 + $0x7a8] sm:$0xf]
    %v521 = vld [vmem:[%s1 + $0x7ac] sm:$0xf]
    %v522 = vld [vmem:[%s1 + $0x7b0] sm:$0xf]
    %v523 = vld [vmem:[%s1 + $0x7b4] sm:$0xf]
    %v524 = vld [vmem:[%s1 + $0x7b8] sm:$0xf]
    %v525 = vld [vmem:[%s1 + $0x7bc] sm:$0xf]
    %v526 = vld [vmem:[%s1 + $0x7c0] sm:$0xf]
    %v527 = vld [vmem:[%s1 + $0x7c4] sm:$0xf]
    %v528 = vld [vmem:[%s1 + $0x7c8] sm:$0xf]
    %v529 = vld [vmem:[%s1 + $0x7cc] sm:$0xf]
    %v530 = vld [vmem:[%s1 + $0x7d0] sm:$0xf]
    %v531 = vld [vmem:[%s1 + $0x7d4] sm:$0xf]
    %v532 = vld [vmem:[%s1 + $0x7d8] sm:$0xf]
    %v533 = vld [vmem:[%s1 + $0x7dc] sm:$0xf]
    %v534 = vld [vmem:[%s1 + $0x7e0] sm:$0xf]
    %v535 = vld [vmem:[%s1 + $0x7e4] sm:$0xf]
    %v536 = vld [vmem:[%s1 + $0x7e8] sm:$0xf]
    %v537 = vld [vmem:[%s1 + $0x7ec] sm:$0xf]
    %v538 = vld [vmem:[%s1 + $0x7f0] sm:$0xf]
    %v539 = vld [vmem:[%s1 + $0x7f4] sm:$0xf]
    %v540 = vld [vmem:[%s1 + $0x7f8] sm:$0xf]
    %v541 = vld [vmem:[%s1 + $0x7fc] sm:$0xf]
    %v542 = vld [vmem:[%s1 + $0x800] sm:$0xf]
    %v543 = vld [vmem:[%s1 + $0x804] sm:$0xf]
    %v544 = vld [vmem:[%s1 + $0x808] sm:$0xf]
    %v545 = vld [vmem:[%s1 + $0x80c] sm:$0xf]
    %v546 = vld [vmem:[%s1 + $0x810] sm:$0xf]
    %v547 = vld [vmem:[%s1 + $0x814] sm:$0xf]
    %v548 = vld [vmem:[%s1 + $0x818] sm:$0xf]
    %v549 = vld [vmem:[%s1 + $0x81c] sm:$0xf]
    %v550 = vld [vmem:[%s1 + $0x820] sm:$0xf]
    %v551 = vld [vmem:[%s1 + $0x824] sm:$0xf]
    %v552 = vld [vmem:[%s1 + $0x828] sm:$0xf]
    %v553 = vld [vmem:[%s1 + $0x82c] sm:$0xf]
    %v554 = vld [vmem:[%s1 + $0x830] sm:$0xf]
    %v555 = vld [vmem:[%s1 + $0x834] sm:$0xf]
    %v556 = vld [vmem:[%s1 + $0x838] sm:$0xf]
    %v557 = vld [vmem:[%s1 + $0x83c] sm:$0xf]
    %v558 = vld [vmem:[%s1 + $0x840] sm:$0xf]
    %v559 = vld [vmem:[%s1 + $0x844] sm:$0xf]
    %v560 = vld [vmem:[%s1 + $0x848] sm:$0xf]
    %v561 = vld [vmem:[%s1 + $0x84c] sm:$0xf]
    %v562 = vld [vmem:[%s1 + $0x850] sm:$0xf]
    %v563 = vld [vmem:[%s1 + $0x854] sm:$0xf]
    %v564 = vld [vmem:[%s1 + $0x858] sm:$0xf]
    %v565 = vld [vmem:[%s1 + $0x85c] sm:$0xf]
    %v566 = vld [vmem:[%s1 + $0x860] sm:$0xf]
    %v567 = vld [vmem:[%s1 + $0x864] sm:$0xf]
    %v568 = vld [vmem:[%s1 + $0x868] sm:$0xf]
    %v569 = vld [vmem:[%s1 + $0x86c] sm:$0xf]
    %v570 = vld [vmem:[%s1 + $0x870] sm:$0xf]
    %v571 = vld [vmem:[%s1 + $0x874] sm:$0xf]
    %v572 = vld [vmem:[%s1 + $0x878] sm:$0xf]
    %v573 = vld [vmem:[%s1 + $0x87c] sm:$0xf]
    %v574 = vld [vmem:[%s1 + $0x880] sm:$0xf]
    %v575 = vld [vmem:[%s1 + $0x884] sm:$0xf]
    %v576 = vld [vmem:[%s1 + $0x888] sm:$0xf]
    %v577 = vld [vmem:[%s1 + $0x88c] sm:$0xf]
    %v578 = vld [vmem:[%s1 + $0x890] sm:$0xf]
    %v579 = vld [vmem:[%s1 + $0x894] sm:$0xf]
    %v580 = vld [vmem:[%s1 + $0x898] sm:$0xf]
    %v581 = vld [vmem:[%s1 + $0x89c] sm:$0xf]
    %v582 = vld [vmem:[%s1 + $0x8a0] sm:$0xf]
    %v583 = vld [vmem:[%s1 + $0x8a4] sm:$0xf]
    %v584 = vld [vmem:[%s1 + $0x8a8] sm:$0xf]
    %v585 = vld [vmem:[%s1 + $0x8ac] sm:$0xf]
    %v586 = vld [vmem:[%s1 + $0x8b0] sm:$0xf]
    %v587 = vld [vmem:[%s1 + $0x8b4] sm:$0xf]
    %v588 = vld [vmem:[%s1 + $0x8b8] sm:$0xf]
    %v589 = vld [vmem:[%s1 + $0x8bc] sm:$0xf]
    %v590 = vld [vmem:[%s1 + $0x8c0] sm:$0xf]
    %v591 = vld [vmem:[%s1 + $0x8c4] sm:$0xf]
    %v592 = vld [vmem:[%s1 + $0x8c8] sm:$0xf]
    %v593 = vld [vmem:[%s1 + $0x8cc] sm:$0xf]
    %v594 = vld [vmem:[%s1 + $0x8d0] sm:$0xf]
    %v595 = vld [vmem:[%s1 + $0x8d4] sm:$0xf]
    %v596 = vld [vmem:[%s1 + $0x8d8] sm:$0xf]
    %v597 = vld [vmem:[%s1 + $0x8dc] sm:$0xf]
    %v598 = vld [vmem:[%s1 + $0x8e0] sm:$0xf]
    %v599 = vld [vmem:[%s1 + $0x8e4] sm:$0xf]
    %v600 = vld [vmem:[%s1 + $0x8e8] sm:$0xf]
    %v601 = vld [vmem:[%s1 + $0x8ec] sm:$0xf]
    %v602 = vld [vmem:[%s1 + $0x8f0] sm:$0xf]
    %v603 = vld [vmem:[%s1 + $0x8f4] sm:$0xf]
    %v604 = vld [vmem:[%s1 + $0x8f8] sm:$0xf]
    %v605 = vld [vmem:[%s1 + $0x8fc] sm:$0xf]
    %v606 = vld [vmem:[%s1 + $0x900] sm:$0xf]
    %v607 = vld [vmem:[%s1 + $0x904] sm:$0xf]
    %v608 = vld [vmem:[%s1 + $0x908] sm:$0xf]
    %v609 = vld [vmem:[%s1 + $0x90c] sm:$0xf]
    %v610 = vld [vmem:[%s1 + $0x910] sm:$0xf]
    %v611 = vld [vmem:[%s1 + $0x914] sm:$0xf]
    %v612 = vld [vmem:[%s1 + $0x918] sm:$0xf]
    %v613 = vld [vmem:[%s1 + $0x91c] sm:$0xf]
    %v614 = vld [vmem:[%s1 + $0x920] sm:$0xf]
    %v615 = vld [vmem:[%s1 + $0x924] sm:$0xf]
    %v616 = vld [vmem:[%s1 + $0x928] sm:$0xf]
    %v617 = vld [vmem:[%s1 + $0x92c] sm:$0xf]
    %v618 = vld [vmem:[%s1 + $0x930] sm:$0xf]
    %v619 = vld [vmem:[%s1 + $0x934] sm:$0xf]
    %v620 = vld [vmem:[%s1 + $0x938] sm:$0xf]
    %v621 = vld [vmem:[%s1 + $0x93c] sm:$0xf]
    %v622 = vld [vmem:[%s1 + $0x940] sm:$0xf]
    %v623 = vld [vmem:[%s1 + $0x944] sm:$0xf]
    %v624 = vld [vmem:[%s1 + $0x948] sm:$0xf]
    %v625 = vld [vmem:[%s1 + $0x94c] sm:$0xf]
    %v626 = vld [vmem:[%s1 + $0x950] sm:$0xf]
    %v627 = vld [vmem:[%s1 + $0x954] sm:$0xf]
    %v628 = vld [vmem:[%s1 + $0x958] sm:$0xf]
    %v629 = vld [vmem:[%s1 + $0x95c] sm:$0xf]
    %v630 = vld [vmem:[%s1 + $0x960] sm:$0xf]
    %v631 = vld [vmem:[%s1 + $0x964] sm:$0xf]
    %v632 = vld [vmem:[%s1 + $0x968] sm:$0xf]
    %v633 = vld [vmem:[%s1 + $0x96c] sm:$0xf]
    %v634 = vld [vmem:[%s1 + $0x970] sm:$0xf]
    %v635 = vld [vmem:[%s1 + $0x974] sm:$0xf]
    %v636 = vld [vmem:[%s1 + $0x978] sm:$0xf]
    %v637 = vld [vmem:[%s1 + $0x97c] sm:$0xf]
    %v638 = vld [vmem:[%s1 + $0x980] sm:$0xf]
    %v639 = vld [vmem:[%s1 + $0x984] sm:$0xf]
    %v640 = vld [vmem:[%s1 + $0x988] sm:$0xf]
    %v641 = vld [vmem:[%s1 + $0x98c] sm:$0xf]
    %v642 = vld [vmem:[%s1 + $0x990] sm:$0xf]
    %v643 = vld [vmem:[%s1 + $0x994] sm:$0xf]
    %v644 = vld [vmem:[%s1 + $0x998] sm:$0xf]
    %v645 = vld [vmem:[%s1 + $0x99c] sm:$0xf]
    %v646 = vld [vmem:[%s1 + $0x9a0] sm:$0xf]
    %v647 = vld [vmem:[%s1 + $0x9a4] sm:$0xf]
    %v648 = vld [vmem:[%s1 + $0x9a8] sm:$0xf]
    %v649 = vld [vmem:[%s1 + $0x9ac] sm:$0xf]
    %v650 = vld [vmem:[%s1 + $0x9b0] sm:$0xf]
    %v651 = vld [vmem:[%s1 + $0x9b4] sm:$0xf]
    %v652 = vld [vmem:[%s1 + $0x9b8] sm:$0xf]
    %v653 = vld [vmem:[%s1 + $0x9bc] sm:$0xf]
    %v654 = vld [vmem:[%s1 + $0x9c0] sm:$0xf]
    %v655 = vld [vmem:[%s1 + $0x9c4] sm:$0xf]
    %v656 = vld [vmem:[%s1 + $0x9c8] sm:$0xf]
    %v657 = vld [vmem:[%s1 + $0x9cc] sm:$0xf]
    %v658 = vld [vmem:[%s1 + $0x9d0] sm:$0xf]
    %v659 = vld [vmem:[%s1 + $0x9d4] sm:$0xf]
    %v660 = vld [vmem:[%s1 + $0x9d8] sm:$0xf]
    %v661 = vld [vmem:[%s1 + $0x9dc] sm:$0xf]
    %v662 = vld [vmem:[%s1 + $0x9e0] sm:$0xf]
    %v663 = vld [vmem:[%s1 + $0x9e4] sm:$0xf]
    %v664 = vld [vmem:[%s1 + $0x9e8] sm:$0xf]
    %v665 = vld [vmem:[%s1 + $0x9ec] sm:$0xf]
    %v666 = vld [vmem:[%s1 + $0x9f0] sm:$0xf]
    %v667 = vld [vmem:[%s1 + $0x9f4] sm:$0xf]
    %v668 = vld [vmem:[%s1 + $0x9f8] sm:$0xf]
    %v669 = vld [vmem:[%s1 + $0x9fc] sm:$0xf]
    %v670 = vld [vmem:[%s1 + $0xa00] sm:$0xf]
    %v671 = vld [vmem:[%s1 + $0xa04] sm:$0xf]
    %v672 = vld [vmem:[%s1 + $0xa08] sm:$0xf]
    %v673 = vld [vmem:[%s1 + $0xa0c] sm:$0xf]
    %v674 = vld [vmem:[%s1 + $0xa10] sm:$0xf]
    %v675 = vld [vmem:[%s1 + $0xa14] sm:$0xf]
    %v676 = vld [vmem:[%s1 + $0xa18] sm:$0xf]
    %v677 = vld [vmem:[%s1 + $0xa1c] sm:$0xf]
    %v678 = vld [vmem:[%s1 + $0xa20] sm:$0xf]
    %v679 = vld [vmem:[%s1 + $0xa24] sm:$0xf]
    %v680 = vld [vmem:[%s1 + $0xa28] sm:$0xf]
    %v681 = vld [vmem:[%s1 + $0xa2c] sm:$0xf]
    %v682 = vld [vmem:[%s1 + $0xa30] sm:$0xf]
    %v683 = vld [vmem:[%s1 + $0xa34] sm:$0xf]
    %v684 = vld [vmem:[%s1 + $0xa38] sm:$0xf]
    %v685 = vld [vmem:[%s1 + $0xa3c] sm:$0xf]
    %v686 = vld [vmem:[%s1 + $0xa40] sm:$0xf]
    %v687 = vld [vmem:[%s1 + $0xa44] sm:$0xf]
    %v688 = vld [vmem:[%s1 + $0xa48] sm:$0xf]
    %v689 = vld [vmem:[%s1 + $0xa4c] sm:$0xf]
    %v690 = vld [vmem:[%s1 + $0xa50] sm:$0xf]
    %v691 = vld [vmem:[%s1 + $0xa54] sm:$0xf]
    %v692 = vld [vmem:[%s1 + $0xa58] sm:$0xf]
    %v693 = vld [vmem:[%s1 + $0xa5c] sm:$0xf]
    %v694 = vld [vmem:[%s1 + $0xa60] sm:$0xf]
    %v695 = vld [vmem:[%s1 + $0xa64] sm:$0xf]
    %v696 = vld [vmem:[%s1 + $0xa68] sm:$0xf]
    %v697 = vld [vmem:[%s1 + $0xa6c] sm:$0xf]
    %v698 = vld [vmem:[%s1 + $0xa70] sm:$0xf]
    %v699 = vld [vmem:[%s1 + $0xa74] sm:$0xf]
    %v700 = vld [vmem:[%s1 + $0xa78] sm:$0xf]
    %v701 = vld [vmem:[%s1 + $0xa7c] sm:$0xf]
    %v702 = vld [vmem:[%s1 + $0xa80] sm:$0xf]
    %v703 = vld [vmem:[%s1 + $0xa84] sm:$0xf]
    %v704 = vld [vmem:[%s1 + $0xa88] sm:$0xf]
    %v705 = vld [vmem:[%s1 + $0xa8c] sm:$0xf]
    %v706 = vld [vmem:[%s1 + $0xa90] sm:$0xf]
    %v707 = vld [vmem:[%s1 + $0xa94] sm:$0xf]
    %v708 = vld [vmem:[%s1 + $0xa98] sm:$0xf]
    %v709 = vld [vmem:[%s1 + $0xa9c] sm:$0xf]
    %v710 = vld [vmem:[%s1 + $0xaa0] sm:$0xf]
    %v711 = vld [vmem:[%s1 + $0xaa4] sm:$0xf]
    %v712 = vld [vmem:[%s1 + $0xaa8] sm:$0xf]
    %v713 = vld [vmem:[%s1 + $0xaac] sm:$0xf]
    %v714 = vld [vmem:[%s1 + $0xab0] sm:$0xf]
    %v715 = vld [vmem:[%s1 + $0xab4] sm:$0xf]
    %v716 = vld [vmem:[%s1 + $0xab8] sm:$0xf]
    %v717 = vld [vmem:[%s1 + $0xabc] sm:$0xf]
    %v718 = vld [vmem:[%s1 + $0xac0] sm:$0xf]
    %v719 = vld [vmem:[%s1 + $0xac4] sm:$0xf]
    %v720 = vld [vmem:[%s1 + $0xac8] sm:$0xf]
    %v721 = vld [vmem:[%s1 + $0xacc] sm:$0xf]
    %v722 = vld [vmem:[%s1 + $0xad0] sm:$0xf]
    %v723 = vld [vmem:[%s1 + $0xad4] sm:$0xf]
    %v724 = vld [vmem:[%s1 + $0xad8] sm:$0xf]
    %v725 = vld [vmem:[%s1 + $0xadc] sm:$0xf]
    %v726 = vld [vmem:[%s1 + $0xae0] sm:$0xf]
    %v727 = vld [vmem:[%s1 + $0xae4] sm:$0xf]
    %v728 = vld [vmem:[%s1 + $0xae8] sm:$0xf]
    %v729 = vld [vmem:[%s1 + $0xaec] sm:$0xf]
    %v730 = vld [vmem:[%s1 + $0xaf0] sm:$0xf]
    %v731 = vld [vmem:[%s1 + $0xaf4] sm:$0xf]
    %v732 = vld [vmem:[%s1 + $0xaf8] sm:$0xf]
    %v733 = vld [vmem:[%s1 + $0xafc] sm:$0xf]
    %v734 = vld [vmem:[%s1 + $0xb00] sm:$0xf]
    %v735 = vld [vmem:[%s1 + $0xb04] sm:$0xf]
    %v736 = vld [vmem:[%s1 + $0xb08] sm:$0xf]
    %v737 = vld [vmem:[%s1 + $0xb0c] sm:$0xf]
    %v738 = vld [vmem:[%s1 + $0xb10] sm:$0xf]
    %v739 = vld [vmem:[%s1 + $0xb14] sm:$0xf]
    %v740 = vld [vmem:[%s1 + $0xb18] sm:$0xf]
    %v741 = vld [vmem:[%s1 + $0xb1c] sm:$0xf]
    %v742 = vld [vmem:[%s1 + $0xb20] sm:$0xf]
    %v743 = vld [vmem:[%s1 + $0xb24] sm:$0xf]
    %v744 = vld [vmem:[%s1 + $0xb28] sm:$0xf]
    %v745 = vld [vmem:[%s1 + $0xb2c] sm:$0xf]
    %v746 = vld [vmem:[%s1 + $0xb30] sm:$0xf]
    %v747 = vld [vmem:[%s1 + $0xb34] sm:$0xf]
    %v748 = vld [vmem:[%s1 + $0xb38] sm:$0xf]
    %v749 = vld [vmem:[%s1 + $0xb3c] sm:$0xf]
    %v750 = vld [vmem:[%s1 + $0xb40] sm:$0xf]
    %v751 = vld [vmem:[%s1 + $0xb44] sm:$0xf]
    %v752 = vld [vmem:[%s1 + $0xb48] sm:$0xf]
    %v753 = vld [vmem:[%s1 + $0xb4c] sm:$0xf]
    %v754 = vld [vmem:[%s1 + $0xb50] sm:$0xf]
    %v755 = vld [vmem:[%s1 + $0xb54] sm:$0xf]
    %v756 = vld [vmem:[%s1 + $0xb58] sm:$0xf]
    %v757 = vld [vmem:[%s1 + $0xb5c] sm:$0xf]
    %v758 = vld [vmem:[%s1 + $0xb60] sm:$0xf]
    %v759 = vld [vmem:[%s1 + $0xb64] sm:$0xf]
    %v760 = vld [vmem:[%s1 + $0xb68] sm:$0xf]
    %v761 = vld [vmem:[%s1 + $0xb6c] sm:$0xf]
    %v762 = vld [vmem:[%s1 + $0xb70] sm:$0xf]
    %v763 = vld [vmem:[%s1 + $0xb74] sm:$0xf]
    %v764 = vld [vmem:[%s1 + $0xb78] sm:$0xf]
    %v765 = vld [vmem:[%s1 + $0xb7c] sm:$0xf]
    %v766 = vld [vmem:[%s1 + $0xb80] sm:$0xf]
    %v767 = vld [vmem:[%s1 + $0xb84] sm:$0xf]
    %v768 = vld [vmem:[%s1 + $0xb88] sm:$0xf]
    %v769 = vld [vmem:[%s1 + $0xb8c] sm:$0xf]
    %v770 = vld [vmem:[%s1 + $0xb90] sm:$0xf]
    %v771 = vld [vmem:[%s1 + $0xb94] sm:$0xf]
    %v772 = vld [vmem:[%s1 + $0xb98] sm:$0xf]
    %v773 = vld [vmem:[%s1 + $0xb9c] sm:$0xf]
    %v774 = vld [vmem:[%s1 + $0xba0] sm:$0xf]
    %v775 = vld [vmem:[%s1 + $0xba4] sm:$0xf]
    %v776 = vld [vmem:[%s1 + $0xba8] sm:$0xf]
    %v777 = vld [vmem:[%s1 + $0xbac] sm:$0xf]
    %v778 = vld [vmem:[%s1 + $0xbb0] sm:$0xf]
    %v779 = vld [vmem:[%s1 + $0xbb4] sm:$0xf]
    %v780 = vld [vmem:[%s1 + $0xbb8] sm:$0xf]
    %v781 = vld [vmem:[%s1 + $0xbbc] sm:$0xf]
    %v782 = vld [vmem:[%s1 + $0xbc0] sm:$0xf]
    %v783 = vld [vmem:[%s1 + $0xbc4] sm:$0xf]
    %v784 = vld [vmem:[%s1 + $0xbc8] sm:$0xf]
    %v785 = vld [vmem:[%s1 + $0xbcc] sm:$0xf]
    %v786 = vld [vmem:[%s1 + $0xbd0] sm:$0xf]
    %v787 = vld [vmem:[%s1 + $0xbd4] sm:$0xf]
    %v788 = vld [vmem:[%s1 + $0xbd8] sm:$0xf]
    %v789 = vld [vmem:[%s1 + $0xbdc] sm:$0xf]
    %v790 = vld [vmem:[%s1 + $0xbe0] sm:$0xf]
    %v791 = vld [vmem:[%s1 + $0xbe4] sm:$0xf]
    %v792 = vld [vmem:[%s1 + $0xbe8] sm:$0xf]
    %v793 = vld [vmem:[%s1 + $0xbec] sm:$0xf]
    %v794 = vld [vmem:[%s1 + $0xbf0] sm:$0xf]
    %v795 = vld [vmem:[%s1 + $0xbf4] sm:$0xf]
    %v796 = vld [vmem:[%s1 + $0xbf8] sm:$0xf]
    %v797 = vld [vmem:[%s1 + $0xbfc] sm:$0xf]
    %v798 = vld [vmem:[%s1 + $0xc00] sm:$0xf]
    %v799 = vld [vmem:[%s1 + $0xc04] sm:$0xf]
    %v800 = vld [vmem:[%s1 + $0xc08] sm:$0xf]
    %v801 = vld [vmem:[%s1 + $0xc0c] sm:$0xf]
    %v802 = vld [vmem:[%s1 + $0xc10] sm:$0xf]
    %v803 = vld [vmem:[%s1 + $0xc14] sm:$0xf]
    %v804 = vld [vmem:[%s1 + $0xc18] sm:$0xf]
    %v805 = vld [vmem:[%s1 + $0xc1c] sm:$0xf]
    %v806 = vld [vmem:[%s1 + $0xc20] sm:$0xf]
    %v807 = vld [vmem:[%s1 + $0xc24] sm:$0xf]
    %v808 = vld [vmem:[%s1 + $0xc28] sm:$0xf]
    %v809 = vld [vmem:[%s1 + $0xc2c] sm:$0xf]
    %v810 = vld [vmem:[%s1 + $0xc30] sm:$0xf]
    %v811 = vld [vmem:[%s1 + $0xc34] sm:$0xf]
    %v812 = vld [vmem:[%s1 + $0xc38] sm:$0xf]
    %v813 = vld [vmem:[%s1 + $0xc3c] sm:$0xf]
    %v814 = vld [vmem:[%s1 + $0xc40] sm:$0xf]
    %v815 = vld [vmem:[%s1 + $0xc44] sm:$0xf]
    %v816 = vld [vmem:[%s1 + $0xc48] sm:$0xf]
    %v817 = vld [vmem:[%s1 + $0xc4c] sm:$0xf]
    %v818 = vld [vmem:[%s1 + $0xc50] sm:$0xf]
    %v819 = vld [vmem:[%s1 + $0xc54] sm:$0xf]
    %v820 = vld [vmem:[%s1 + $0xc58] sm:$0xf]
    %v821 = vld [vmem:[%s1 + $0xc5c] sm:$0xf]
    %v822 = vld [vmem:[%s1 + $0xc60] sm:$0xf]
    %v823 = vld [vmem:[%s1 + $0xc64] sm:$0xf]
    %v824 = vld [vmem:[%s1 + $0xc68] sm:$0xf]
    %v825 = vld [vmem:[%s1 + $0xc6c] sm:$0xf]
    %v826 = vld [vmem:[%s1 + $0xc70] sm:$0xf]
    %v827 = vld [vmem:[%s1 + $0xc74] sm:$0xf]
    %v828 = vld [vmem:[%s1 + $0xc78] sm:$0xf]
    %v829 = vld [vmem:[%s1 + $0xc7c] sm:$0xf]
    %v830 = vld [vmem:[%s1 + $0xc80] sm:$0xf]
    %v831 = vld [vmem:[%s1 + $0xc84] sm:$0xf]
    %v832 = vld [vmem:[%s1 + $0xc88] sm:$0xf]
    %v833 = vld [vmem:[%s1 + $0xc8c] sm:$0xf]
    %v834 = vld [vmem:[%s1 + $0xc90] sm:$0xf]
    %v835 = vld [vmem:[%s1 + $0xc94] sm:$0xf]
    %v836 = vld [vmem:[%s1 + $0xc98] sm:$0xf]
    %v837 = vld [vmem:[%s1 + $0xc9c] sm:$0xf]
    %v838 = vld [vmem:[%s1 + $0xca0] sm:$0xf]
    %v839 = vld [vmem:[%s1 + $0xca4] sm:$0xf]
    %v840 = vld [vmem:[%s1 + $0xca8] sm:$0xf]
    %v841 = vld [vmem:[%s1 + $0xcac] sm:$0xf]
    %v842 = vld [vmem:[%s1 + $0xcb0] sm:$0xf]
    %v843 = vld [vmem:[%s1 + $0xcb4] sm:$0xf]
    %v844 = vld [vmem:[%s1 + $0xcb8] sm:$0xf]
    %v845 = vld [vmem:[%s1 + $0xcbc] sm:$0xf]
    %v846 = vld [vmem:[%s1 + $0xcc0] sm:$0xf]
    %v847 = vld [vmem:[%s1 + $0xcc4] sm:$0xf]
    %v848 = vld [vmem:[%s1 + $0xcc8] sm:$0xf]
    %v849 = vld [vmem:[%s1 + $0xccc] sm:$0xf]
    %v850 = vld [vmem:[%s1 + $0xcd0] sm:$0xf]
    %v851 = vld [vmem:[%s1 + $0xcd4] sm:$0xf]
    %v852 = vld [vmem:[%s1 + $0xcd8] sm:$0xf]
    %v853 = vld [vmem:[%s1 + $0xcdc] sm:$0xf]
    %v854 = vld [vmem:[%s1 + $0xce0] sm:$0xf]
    %v855 = vld [vmem:[%s1 + $0xce4] sm:$0xf]
    %v856 = vld [vmem:[%s1 + $0xce8] sm:$0xf]
    %v857 = vld [vmem:[%s1 + $0xcec] sm:$0xf]
    %v858 = vld [vmem:[%s1 + $0xcf0] sm:$0xf]
    %v859 = vld [vmem:[%s1 + $0xcf4] sm:$0xf]
    %v860 = vld [vmem:[%s1 + $0xcf8] sm:$0xf]
    %v861 = vld [vmem:[%s1 + $0xcfc] sm:$0xf]
    %v862 = vld [vmem:[%s1 + $0xd00] sm:$0xf]
    %v863 = vld [vmem:[%s1 + $0xd04] sm:$0xf]
    %v864 = vld [vmem:[%s1 + $0xd08] sm:$0xf]
    %v865 = vld [vmem:[%s1 + $0xd0c] sm:$0xf]
    %v866 = vld [vmem:[%s1 + $0xd10] sm:$0xf]
    %v867 = vld [vmem:[%s1 + $0xd14] sm:$0xf]
    %v868 = vld [vmem:[%s1 + $0xd18] sm:$0xf]
    %v869 = vld [vmem:[%s1 + $0xd1c] sm:$0xf]
    %v870 = vld [vmem:[%s1 + $0xd20] sm:$0xf]
    %v871 = vld [vmem:[%s1 + $0xd24] sm:$0xf]
    %v872 = vld [vmem:[%s1 + $0xd28] sm:$0xf]
    %v873 = vld [vmem:[%s1 + $0xd2c] sm:$0xf]
    %v874 = vld [vmem:[%s1 + $0xd30] sm:$0xf]
    %v875 = vld [vmem:[%s1 + $0xd34] sm:$0xf]
    %v876 = vld [vmem:[%s1 + $0xd38] sm:$0xf]
    %v877 = vld [vmem:[%s1 + $0xd3c] sm:$0xf]
    %v878 = vld [vmem:[%s1 + $0xd40] sm:$0xf]
    %v879 = vld [vmem:[%s1 + $0xd44] sm:$0xf]
    %v880 = vld [vmem:[%s1 + $0xd48] sm:$0xf]
    %v881 = vld [vmem:[%s1 + $0xd4c] sm:$0xf]
    %v882 = vld [vmem:[%s1 + $0xd50] sm:$0xf]
    %v883 = vld [vmem:[%s1 + $0xd54] sm:$0xf]
    %v884 = vld [vmem:[%s1 + $0xd58] sm:$0xf]
    %v885 = vld [vmem:[%s1 + $0xd5c] sm:$0xf]
    %v886 = vld [vmem:[%s1 + $0xd60] sm:$0xf]
    %v887 = vld [vmem:[%s1 + $0xd64] sm:$0xf]
    %v888 = vld [vmem:[%s1 + $0xd68] sm:$0xf]
    %v889 = vld [vmem:[%s1 + $0xd6c] sm:$0xf]
    %v890 = vld [vmem:[%s1 + $0xd70] sm:$0xf]
    %v891 = vld [vmem:[%s1 + $0xd74] sm:$0xf]
    %v892 = vld [vmem:[%s1 + $0xd78] sm:$0xf]
    %v893 = vld [vmem:[%s1 + $0xd7c] sm:$0xf]
    %v894 = vld [vmem:[%s1 + $0xd80] sm:$0xf]
    %v895 = vld [vmem:[%s1 + $0xd84] sm:$0xf]
    %v896 = vld [vmem:[%s1 + $0xd88] sm:$0xf]
    %v897 = vld [vmem:[%s1 + $0xd8c] sm:$0xf]
    %v898 = vld [vmem:[%s1 + $0xd90] sm:$0xf]
    %v899 = vld [vmem:[%s1 + $0xd94] sm:$0xf]
    %v900 = vld [vmem:[%s1 + $0xd98] sm:$0xf]
    %v901 = vld [vmem:[%s1 + $0xd9c] sm:$0xf]
    %v902 = vld [vmem:[%s1 + $0xda0] sm:$0xf]
    %v903 = vld [vmem:[%s1 + $0xda4] sm:$0xf]
    %v904 = vld [vmem:[%s1 + $0xda8] sm:$0xf]
    %v905 = vld [vmem:[%s1 + $0xdac] sm:$0xf]
    %v906 = vld [vmem:[%s1 + $0xdb0] sm:$0xf]
    %v907 = vld [vmem:[%s1 + $0xdb4] sm:$0xf]
    %v908 = vld [vmem:[%s1 + $0xdb8] sm:$0xf]
    %v909 = vld [vmem:[%s1 + $0xdbc] sm:$0xf]
    %v910 = vld [vmem:[%s1 + $0xdc0] sm:$0xf]
    %v911 = vld [vmem:[%s1 + $0xdc4] sm:$0xf]
    %v912 = vld [vmem:[%s1 + $0xdc8] sm:$0xf]
    %v913 = vld [vmem:[%s1 + $0xdcc] sm:$0xf]
    %v914 = vld [vmem:[%s1 + $0xdd0] sm:$0xf]
    %v915 = vld [vmem:[%s1 + $0xdd4] sm:$0xf]
    %v916 = vld [vmem:[%s1 + $0xdd8] sm:$0xf]
    %v917 = vld [vmem:[%s1 + $0xddc] sm:$0xf]
    %v918 = vld [vmem:[%s1 + $0xde0] sm:$0xf]
    %v919 = vld [vmem:[%s1 + $0xde4] sm:$0xf]
    %v920 = vld [vmem:[%s1 + $0xde8] sm:$0xf]
    %v921 = vld [vmem:[%s1 + $0xdec] sm:$0xf]
    %v922 = vld [vmem:[%s1 + $0xdf0] sm:$0xf]
    %v923 = vld [vmem:[%s1 + $0xdf4] sm:$0xf]
    %v924 = vld [vmem:[%s1 + $0xdf8] sm:$0xf]
    %v925 = vld [vmem:[%s1 + $0xdfc] sm:$0xf]
    %v926 = vld [vmem:[%s1 + $0xe00] sm:$0xf]
    %v927 = vld [vmem:[%s1 + $0xe04] sm:$0xf]
    %v928 = vld [vmem:[%s1 + $0xe08] sm:$0xf]
    %v929 = vld [vmem:[%s1 + $0xe0c] sm:$0xf]
    %v930 = vld [vmem:[%s1 + $0xe10] sm:$0xf]
    %v931 = vld [vmem:[%s1 + $0xe14] sm:$0xf]
    %v932 = vld [vmem:[%s1 + $0xe18] sm:$0xf]
    %v933 = vld [vmem:[%s1 + $0xe1c] sm:$0xf]
    %v934 = vld [vmem:[%s1 + $0xe20] sm:$0xf]
    %v935 = vld [vmem:[%s1 + $0xe24] sm:$0xf]
    %v936 = vld [vmem:[%s1 + $0xe28] sm:$0xf]
    %v937 = vld [vmem:[%s1 + $0xe2c] sm:$0xf]
    %v938 = vld [vmem:[%s1 + $0xe30] sm:$0xf]
    %v939 = vld [vmem:[%s1 + $0xe34] sm:$0xf]
    %v940 = vld [vmem:[%s1 + $0xe38] sm:$0xf]
    %v941 = vld [vmem:[%s1 + $0xe3c] sm:$0xf]
    %v942 = vld [vmem:[%s1 + $0xe40] sm:$0xf]
    %v943 = vld [vmem:[%s1 + $0xe44] sm:$0xf]
    %v944 = vld [vmem:[%s1 + $0xe48] sm:$0xf]
    %v945 = vld [vmem:[%s1 + $0xe4c] sm:$0xf]
    %v946 = vld [vmem:[%s1 + $0xe50] sm:$0xf]
    %v947 = vld [vmem:[%s1 + $0xe54] sm:$0xf]
    %v948 = vld [vmem:[%s1 + $0xe58] sm:$0xf]
    %v949 = vld [vmem:[%s1 + $0xe5c] sm:$0xf]
    %v950 = vld [vmem:[%s1 + $0xe60] sm:$0xf]
    %v951 = vld [vmem:[%s1 + $0xe64] sm:$0xf]
    %v952 = vld [vmem:[%s1 + $0xe68] sm:$0xf]
    %v953 = vld [vmem:[%s1 + $0xe6c] sm:$0xf]
    %v954 = vld [vmem:[%s1 + $0xe70] sm:$0xf]
    %v955 = vld [vmem:[%s1 + $0xe74] sm:$0xf]
    %v956 = vld [vmem:[%s1 + $0xe78] sm:$0xf]
    %v957 = vld [vmem:[%s1 + $0xe7c] sm:$0xf]
    %v958 = vld [vmem:[%s1 + $0xe80] sm:$0xf]
    %v959 = vld [vmem:[%s1 + $0xe84] sm:$0xf]
    %v960 = vld [vmem:[%s1 + $0xe88] sm:$0xf]
    %v961 = vld [vmem:[%s1 + $0xe8c] sm:$0xf]
    %v962 = vld [vmem:[%s1 + $0xe90] sm:$0xf]
    %v963 = vld [vmem:[%s1 + $0xe94] sm:$0xf]
    %v964 = vld [vmem:[%s1 + $0xe98] sm:$0xf]
    %v965 = vld [vmem:[%s1 + $0xe9c] sm:$0xf]
    %v966 = vld [vmem:[%s1 + $0xea0] sm:$0xf]
    %v967 = vld [vmem:[%s1 + $0xea4] sm:$0xf]
    %v968 = vld [vmem:[%s1 + $0xea8] sm:$0xf]
    %v969 = vld [vmem:[%s1 + $0xeac] sm:$0xf]
    %v970 = vld [vmem:[%s1 + $0xeb0] sm:$0xf]
    %v971 = vld [vmem:[%s1 + $0xeb4] sm:$0xf]
    %v972 = vld [vmem:[%s1 + $0xeb8] sm:$0xf]
    %v973 = vld [vmem:[%s1 + $0xebc] sm:$0xf]
    %v974 = vld [vmem:[%s1 + $0xec0] sm:$0xf]
    %v975 = vld [vmem:[%s1 + $0xec4] sm:$0xf]
    %v976 = vld [vmem:[%s1 + $0xec8] sm:$0xf]
    %v977 = vld [vmem:[%s1 + $0xecc] sm:$0xf]
    %v978 = vld [vmem:[%s1 + $0xed0] sm:$0xf]
    %v979 = vld [vmem:[%s1 + $0xed4] sm:$0xf]
    %v980 = vld [vmem:[%s1 + $0xed8] sm:$0xf]
    %v981 = vld [vmem:[%s1 + $0xedc] sm:$0xf]
    %v982 = vld [vmem:[%s1 + $0xee0] sm:$0xf]
    %v983 = vld [vmem:[%s1 + $0xee4] sm:$0xf]
    %v984 = vld [vmem:[%s1 + $0xee8] sm:$0xf]
    %v985 = vld [vmem:[%s1 + $0xeec] sm:$0xf]
    %v986 = vld [vmem:[%s1 + $0xef0] sm:$0xf]
    %v987 = vld [vmem:[%s1 + $0xef4] sm:$0xf]
    %v988 = vld [vmem:[%s1 + $0xef8] sm:$0xf]
    %v989 = vld [vmem:[%s1 + $0xefc] sm:$0xf]
    %v990 = vld [vmem:[%s1 + $0xf00] sm:$0xf]
    %v991 = vld [vmem:[%s1 + $0xf04] sm:$0xf]
    %v992 = vld [vmem:[%s1 + $0xf08] sm:$0xf]
    %v993 = vld [vmem:[%s1 + $0xf0c] sm:$0xf]
    %v994 = vld [vmem:[%s1 + $0xf10] sm:$0xf]
    %v995 = vld [vmem:[%s1 + $0xf14] sm:$0xf]
    %v996 = vld [vmem:[%s1 + $0xf18] sm:$0xf]
    %v997 = vld [vmem:[%s1 + $0xf1c] sm:$0xf]
    %v998 = vld [vmem:[%s1 + $0xf20] sm:$0xf]
    %v999 = vld [vmem:[%s1 + $0xf24] sm:$0xf]
    %v1000 = vld [vmem:[%s1 + $0xf28] sm:$0xf]
    %v1001 = vld [vmem:[%s1 + $0xf2c] sm:$0xf]
    %v1002 = vld [vmem:[%s1 + $0xf30] sm:$0xf]
    %v1003 = vld [vmem:[%s1 + $0xf34] sm:$0xf]
    %v1004 = vld [vmem:[%s1 + $0xf38] sm:$0xf]
    %v1005 = vld [vmem:[%s1 + $0xf3c] sm:$0xf]
    %v1006 = vld [vmem:[%s1 + $0xf40] sm:$0xf]
    %v1007 = vld [vmem:[%s1 + $0xf44] sm:$0xf]
    %v1008 = vld [vmem:[%s1 + $0xf48] sm:$0xf]
    %v1009 = vld [vmem:[%s1 + $0xf4c] sm:$0xf]
    %v1010 = vld [vmem:[%s1 + $0xf50] sm:$0xf]
    %v1011 = vld [vmem:[%s1 + $0xf54] sm:$0xf]
    %v1012 = vld [vmem:[%s1 + $0xf58] sm:$0xf]
    %v1013 = vld [vmem:[%s1 + $0xf5c] sm:$0xf]
    %v1014 = vld [vmem:[%s1 + $0xf60] sm:$0xf]
    %v1015 = vld [vmem:[%s1 + $0xf64] sm:$0xf]
    %v1016 = vld [vmem:[%s1 + $0xf68] sm:$0xf]
    %v1017 = vld [vmem:[%s1 + $0xf6c] sm:$0xf]
    %v1018 = vld [vmem:[%s1 + $0xf70] sm:$0xf]
    %v1019 = vld [vmem:[%s1 + $0xf74] sm:$0xf]
    %v1020 = vld [vmem:[%s1 + $0xf78] sm:$0xf]
    %v1021 = vld [vmem:[%s1 + $0xf7c] sm:$0xf]
    %v1022 = vld [vmem:[%s1 + $0xf80] sm:$0xf]
    %v1023 = vld [vmem:[%s1 + $0xf84] sm:$0xf]
    %v1024 = vld [vmem:[%s1 + $0xf88] sm:$0xf]
    %v1025 = vld [vmem:[%s1 + $0xf8c] sm:$0xf]
    %v1026 = vld [vmem:[%s1 + $0xf90] sm:$0xf]
    %v1027 = vld [vmem:[%s1 + $0xf94] sm:$0xf]
    %v1028 = vld [vmem:[%s1 + $0xf98] sm:$0xf]
    %v1029 = vld [vmem:[%s1 + $0xf9c] sm:$0xf]
    %v1030 = vld [vmem:[%s1 + $0xfa0] sm:$0xf]
    %v1031 = vld [vmem:[%s1 + $0xfa4] sm:$0xf]
    %v1032 = vld [vmem:[%s1 + $0xfa8] sm:$0xf]
    %v1033 = vld [vmem:[%s1 + $0xfac] sm:$0xf]
    %v1034 = vld [vmem:[%s1 + $0xfb0] sm:$0xf]
    %v1035 = vld [vmem:[%s1 + $0xfb4] sm:$0xf]
    %v1036 = vld [vmem:[%s1 + $0xfb8] sm:$0xf]
    %v1037 = vld [vmem:[%s1 + $0xfbc] sm:$0xf]
    %v1038 = vld [vmem:[%s1 + $0xfc0] sm:$0xf]
    %v1039 = vld [vmem:[%s1 + $0xfc4] sm:$0xf]
    %v1040 = vld [vmem:[%s1 + $0xfc8] sm:$0xf]
    %v1041 = vld [vmem:[%s1 + $0xfcc] sm:$0xf]
    %v1042 = vld [vmem:[%s1 + $0xfd0] sm:$0xf]
    %v1043 = vld [vmem:[%s1 + $0xfd4] sm:$0xf]
    %v1044 = vld [vmem:[%s1 + $0xfd8] sm:$0xf]
    %v1045 = vld [vmem:[%s1 + $0xfdc] sm:$0xf]
    %v1046 = vld [vmem:[%s1 + $0xfe0] sm:$0xf]
    %v1047 = vld [vmem:[%s1 + $0xfe4] sm:$0xf]
    %v1048 = vld [vmem:[%s1 + $0xfe8] sm:$0xf]
    %v1049 = vld [vmem:[%s1 + $0xfec] sm:$0xf]
    %v1050 = vld [vmem:[%s1 + $0xff0] sm:$0xf]
    %v1051 = vld [vmem:[%s1 + $0xff4] sm:$0xf]
    %v1052 = vld [vmem:[%s1 + $0xff8] sm:$0xf]
    %v1053 = vld [vmem:[%s1 + $0xffc] sm:$0xf]
    %v1054 = vld [vmem:[%s1 + $0x1000] sm:$0xf]
    %v1055 = vld [vmem:[%s1 + $0x1004] sm:$0xf]
    %v1056 = vld [vmem:[%s1 + $0x1008] sm:$0xf]
    %v1057 = vld [vmem:[%s1 + $0x100c] sm:$0xf]
    %v1058 = vld [vmem:[%s1 + $0x1010] sm:$0xf]
    %v1059 = vld [vmem:[%s1 + $0x1014] sm:$0xf]
    %v1060 = vld [vmem:[%s1 + $0x1018] sm:$0xf]
    %v1061 = vld [vmem:[%s1 + $0x101c] sm:$0xf]
    %v1062 = vld [vmem:[%s1 + $0x1020] sm:$0xf]
    %v1063 = vld [vmem:[%s1 + $0x1024] sm:$0xf]
    %v1064 = vld [vmem:[%s1 + $0x1028] sm:$0xf]
    %v1065 = vld [vmem:[%s1 + $0x102c] sm:$0xf]
    %v1066 = vld [vmem:[%s1 + $0x1030] sm:$0xf]
    %v1067 = vld [vmem:[%s1 + $0x1034] sm:$0xf]
    %v1068 = vld [vmem:[%s1 + $0x1038] sm:$0xf]
    %v1069 = vld [vmem:[%s1 + $0x103c] sm:$0xf]
    %v1070 = vld [vmem:[%s1 + $0x1040] sm:$0xf]
    %v1071 = vld [vmem:[%s1 + $0x1044] sm:$0xf]
    %v1072 = vld [vmem:[%s1 + $0x1048] sm:$0xf]
    %v1073 = vld [vmem:[%s1 + $0x104c] sm:$0xf]
    %v1074 = vld [vmem:[%s1 + $0x1050] sm:$0xf]
    %v1075 = vld [vmem:[%s1 + $0x1054] sm:$0xf]
    %v1076 = vld [vmem:[%s1 + $0x1058] sm:$0xf]
    %v1077 = vld [vmem:[%s1 + $0x105c] sm:$0xf]
    %v1078 = vld [vmem:[%s1 + $0x1060] sm:$0xf]
    %v1079 = vld [vmem:[%s1 + $0x1064] sm:$0xf]
    %v1080 = vld [vmem:[%s1 + $0x1068] sm:$0xf]
    %v1081 = vld [vmem:[%s1 + $0x106c] sm:$0xf]
    %v1082 = vld [vmem:[%s1 + $0x1070] sm:$0xf]
    %v1083 = vld [vmem:[%s1 + $0x1074] sm:$0xf]
    %v1084 = vld [vmem:[%s1 + $0x1078] sm:$0xf]
    %v1085 = vld [vmem:[%s1 + $0x107c] sm:$0xf]
    %v1086 = vld [vmem:[%s1 + $0x1080] sm:$0xf]
    %v1087 = vld [vmem:[%s1 + $0x1084] sm:$0xf]
    %v1088 = vld [vmem:[%s1 + $0x1088] sm:$0xf]
    %v1089 = vld [vmem:[%s1 + $0x108c] sm:$0xf]
    %v1090 = vld [vmem:[%s1 + $0x1090] sm:$0xf]
    %v1091 = vld [vmem:[%s1 + $0x1094] sm:$0xf]
    %v1092 = vld [vmem:[%s1 + $0x1098] sm:$0xf]
    %v1093 = vld [vmem:[%s1 + $0x109c] sm:$0xf]
    %v1094 = vld [vmem:[%s1 + $0x10a0] sm:$0xf]
    %v1095 = vld [vmem:[%s1 + $0x10a4] sm:$0xf]
    %v1096 = vld [vmem:[%s1 + $0x10a8] sm:$0xf]
    %v1097 = vld [vmem:[%s1 + $0x10ac] sm:$0xf]
    %v1098 = vld [vmem:[%s1 + $0x10b0] sm:$0xf]
    %v1099 = vld [vmem:[%s1 + $0x10b4] sm:$0xf]
    %v1100 = vld [vmem:[%s1 + $0x10b8] sm:$0xf]
    %v1101 = vld [vmem:[%s1 + $0x10bc] sm:$0xf]
    %v1102 = vld [vmem:[%s1 + $0x10c0] sm:$0xf]
    %v1103 = vld [vmem:[%s1 + $0x10c4] sm:$0xf]
    %v1104 = vld [vmem:[%s1 + $0x10c8] sm:$0xf]
    %v1105 = vld [vmem:[%s1 + $0x10cc] sm:$0xf]
    %v1106 = vld [vmem:[%s1 + $0x10d0] sm:$0xf]
    %v1107 = vld [vmem:[%s1 + $0x10d4] sm:$0xf]
    %v1108 = vld [vmem:[%s1 + $0x10d8] sm:$0xf]
    %v1109 = vld [vmem:[%s1 + $0x10dc] sm:$0xf]
    %v1110 = vld [vmem:[%s1 + $0x10e0] sm:$0xf]
    %v1111 = vld [vmem:[%s1 + $0x10e4] sm:$0xf]
    %v1112 = vld [vmem:[%s1 + $0x10e8] sm:$0xf]
    %v1113 = vld [vmem:[%s1 + $0x10ec] sm:$0xf]
    %v1114 = vld [vmem:[%s1 + $0x10f0] sm:$0xf]
    %v1115 = vld [vmem:[%s1 + $0x10f4] sm:$0xf]
    %v1116 = vld [vmem:[%s1 + $0x10f8] sm:$0xf]
    %v1117 = vld [vmem:[%s1 + $0x10fc] sm:$0xf]
    %v1118 = vld [vmem:[%s1 + $0x1100] sm:$0xf]
    %v1119 = vld [vmem:[%s1 + $0x1104] sm:$0xf]
    %v1120 = vld [vmem:[%s1 + $0x1108] sm:$0xf]
    %v1121 = vld [vmem:[%s1 + $0x110c] sm:$0xf]
    %v1122 = vld [vmem:[%s1 + $0x1110] sm:$0xf]
    %v1123 = vld [vmem:[%s1 + $0x1114] sm:$0xf]
    %v1124 = vld [vmem:[%s1 + $0x1118] sm:$0xf]
    %v1125 = vld [vmem:[%s1 + $0x111c] sm:$0xf]
    %v1126 = vld [vmem:[%s1 + $0x1120] sm:$0xf]
    %v1127 = vld [vmem:[%s1 + $0x1124] sm:$0xf]
    %v1128 = vld [vmem:[%s1 + $0x1128] sm:$0xf]
    %v1129 = vld [vmem:[%s1 + $0x112c] sm:$0xf]
    %v1130 = vld [vmem:[%s1 + $0x1130] sm:$0xf]
    %v1131 = vld [vmem:[%s1 + $0x1134] sm:$0xf]
    %v1132 = vld [vmem:[%s1 + $0x1138] sm:$0xf]
    %v1133 = vld [vmem:[%s1 + $0x113c] sm:$0xf]
    %v1134 = vld [vmem:[%s1 + $0x1140] sm:$0xf]
    %v1135 = vld [vmem:[%s1 + $0x1144] sm:$0xf]
    %v1136 = vld [vmem:[%s1 + $0x1148] sm:$0xf]
    %v1137 = vld [vmem:[%s1 + $0x114c] sm:$0xf]
    %v1138 = vld [vmem:[%s1 + $0x1150] sm:$0xf]
    %v1139 = vld [vmem:[%s1 + $0x1154] sm:$0xf]
    %v1140 = vld [vmem:[%s1 + $0x1158] sm:$0xf]
    %v1141 = vld [vmem:[%s1 + $0x115c] sm:$0xf]
    %v1142 = vld [vmem:[%s1 + $0x1160] sm:$0xf]
    %v1143 = vld [vmem:[%s1 + $0x1164] sm:$0xf]
    %v1144 = vld [vmem:[%s1 + $0x1168] sm:$0xf]
    %v1145 = vld [vmem:[%s1 + $0x116c] sm:$0xf]
    %v1146 = vld [vmem:[%s1 + $0x1170] sm:$0xf]
    %v1147 = vld [vmem:[%s1 + $0x1174] sm:$0xf]
    %v1148 = vld [vmem:[%s1 + $0x1178] sm:$0xf]
    %v1149 = vld [vmem:[%s1 + $0x117c] sm:$0xf]
    %v1150 = vld [vmem:[%s1 + $0x1180] sm:$0xf]
    %v1151 = vld [vmem:[%s1 + $0x1184] sm:$0xf]
    %v1152 = vld [vmem:[%s1 + $0x1188] sm:$0xf]
    %v1153 = vld [vmem:[%s1 + $0x118c] sm:$0xf]
    %v1154 = vld [vmem:[%s1 + $0x1190] sm:$0xf]
    %v1155 = vld [vmem:[%s1 + $0x1194] sm:$0xf]
    %v1156 = vld [vmem:[%s1 + $0x1198] sm:$0xf]
    %v1157 = vld [vmem:[%s1 + $0x119c] sm:$0xf]
    %v1158 = vld [vmem:[%s1 + $0x11a0] sm:$0xf]
    %v1159 = vld [vmem:[%s1 + $0x11a4] sm:$0xf]
    %v1160 = vld [vmem:[%s1 + $0x11a8] sm:$0xf]
    %v1161 = vld [vmem:[%s1 + $0x11ac] sm:$0xf]
    %v1162 = vld [vmem:[%s1 + $0x11b0] sm:$0xf]
    %v1163 = vld [vmem:[%s1 + $0x11b4] sm:$0xf]
    %v1164 = vld [vmem:[%s1 + $0x11b8] sm:$0xf]
    %v1165 = vld [vmem:[%s1 + $0x11bc] sm:$0xf]
    %v1166 = vld [vmem:[%s1 + $0x11c0] sm:$0xf]
    %v1167 = vld [vmem:[%s1 + $0x11c4] sm:$0xf]
    %v1168 = vld [vmem:[%s1 + $0x11c8] sm:$0xf]
    %v1169 = vld [vmem:[%s1 + $0x11cc] sm:$0xf]
    %v1170 = vld [vmem:[%s1 + $0x11d0] sm:$0xf]
    %v1171 = vld [vmem:[%s1 + $0x11d4] sm:$0xf]
    %v1172 = vld [vmem:[%s1 + $0x11d8] sm:$0xf]
    %v1173 = vld [vmem:[%s1 + $0x11dc] sm:$0xf]
    %v1174 = vld [vmem:[%s1 + $0x11e0] sm:$0xf]
    %v1175 = vld [vmem:[%s1 + $0x11e4] sm:$0xf]
    %v1176 = vld [vmem:[%s1 + $0x11e8] sm:$0xf]
    %v1177 = vld [vmem:[%s1 + $0x11ec] sm:$0xf]
    %v1178 = vld [vmem:[%s1 + $0x11f0] sm:$0xf]
    %v1179 = vld [vmem:[%s1 + $0x11f4] sm:$0xf]
    %v1180 = vld [vmem:[%s1 + $0x11f8] sm:$0xf]
    %v1181 = vld [vmem:[%s1 + $0x11fc] sm:$0xf]
    %v1182 = vld [vmem:[%s2] sm:$0x1]
    %v1184 = vperm.slane %v1182, 0
    %1187 = vst [vmem:[#allocation1] ss:$9 sm:$0xff] %v21
    %v1188 = vld [vmem:[#allocation1] sm:$0xff]
    %v1189 = vld [vmem:[#allocation1 + $0x9] sm:$0xff]
    %v1190 = vld [vmem:[#allocation1 + $0x12] sm:$0xff]
    %v1191 = vld [vmem:[#allocation1 + $0x1b] sm:$0xff]
    %v1192 = vld [vmem:[#allocation1 + $0x24] sm:$0xff]
    %v1193 = vld [vmem:[#allocation1 + $0x2d] sm:$0xff]
    %v1194 = vld [vmem:[#allocation1 + $0x36] sm:$0xff]
    %v1195 = vld [vmem:[#allocation1 + $0x3f] sm:$0xff]
    %1197 = vst [vmem:[#allocation1] ss:$9 sm:$0xff] %v22
    %v1198 = vld [vmem:[#allocation1] sm:$0xff]
    %v1199 = vld [vmem:[#allocation1 + $0x9] sm:$0xff]
    %v1200 = vld [vmem:[#allocation1 + $0x12] sm:$0xff]
    %v1201 = vld [vmem:[#allocation1 + $0x1b] sm:$0xff]
    %v1202 = vld [vmem:[#allocation1 + $0x24] sm:$0xff]
    %v1203 = vld [vmem:[#allocation1 + $0x2d] sm:$0xff]
    %v1204 = vld [vmem:[#allocation1 + $0x36] sm:$0xff]
    %v1205 = vld [vmem:[#allocation1 + $0x3f] sm:$0xff]
    %1207 = vst [vmem:[#allocation1] ss:$9 sm:$0xff] %v23
    %v1208 = vld [vmem:[#allocation1] sm:$0xff]
    %v1209 = vld [vmem:[#allocation1 + $0x9] sm:$0xff]
    %v1210 = vld [vmem:[#allocation1 + $0x12] sm:$0xff]
    %v1211 = vld [vmem:[#allocation1 + $0x1b] sm:$0xff]
    %v1212 = vld [vmem:[#allocation1 + $0x24] sm:$0xff]
    %v1213 = vld [vmem:[#allocation1 + $0x2d] sm:$0xff]
    %v1214 = vld [vmem:[#allocation1 + $0x36] sm:$0xff]
    %v1215 = vld [vmem:[#allocation1 + $0x3f] sm:$0xff]
    %1217 = vst [vmem:[#allocation1] ss:$9 sm:$0xff] %v24
    %v1218 = vld [vmem:[#allocation1] sm:$0xff]
    %v1219 = vld [vmem:[#allocation1 + $0x9] sm:$0xff]
    %v1220 = vld [vmem:[#allocation1 + $0x12] sm:$0xff]
    %v1221 = vld [vmem:[#allocation1 + $0x1b] sm:$0xff]
    %v1222 = vld [vmem:[#allocation1 + $0x24] sm:$0xff]
    %v1223 = vld [vmem:[#allocation1 + $0x2d] sm:$0xff]
    %v1224 = vld [vmem:[#allocation1 + $0x36] sm:$0xff]
    %v1225 = vld [vmem:[#allocation1 + $0x3f] sm:$0xff]
    %1227 = vst [vmem:[#allocation1] ss:$9 sm:$0xff] %v25
    %v1228 = vld [vmem:[#allocation1] sm:$0xff]
    %v1229 = vld [vmem:[#allocation1 + $0x9] sm:$0xff]
    %v1230 = vld [vmem:[#allocation1 + $0x12] sm:$0xff]
    %v1231 = vld [vmem:[#allocation1 + $0x1b] sm:$0xff]
    %v1232 = vld [vmem:[#allocation1 + $0x24] sm:$0xff]
    %v1233 = vld [vmem:[#allocation1 + $0x2d] sm:$0xff]
    %v1234 = vld [vmem:[#allocation1 + $0x36] sm:$0xff]
    %v1235 = vld [vmem:[#allocation1 + $0x3f] sm:$0xff]
    %1237 = vst [vmem:[#allocation1] ss:$9 sm:$0xff] %v26
    %v1238 = vld [vmem:[#allocation1] sm:$0xff]
    %v1239 = vld [vmem:[#allocation1 + $0x9] sm:$0xff]
    %v1240 = vld [vmem:[#allocation1 + $0x12] sm:$0xff]
    %v1241 = vld [vmem:[#allocation1 + $0x1b] sm:$0xff]
    %v1242 = vld [vmem:[#allocation1 + $0x24] sm:$0xff]
    %v1243 = vld [vmem:[#allocation1 + $0x2d] sm:$0xff]
    %v1244 = vld [vmem:[#allocation1 + $0x36] sm:$0xff]
    %v1245 = vld [vmem:[#allocation1 + $0x3f] sm:$0xff]
    %1247 = vst [vmem:[#allocation1] ss:$9 sm:$0xff] %v27
    %v1248 = vld [vmem:[#allocation1] sm:$0xff]
    %v1249 = vld [vmem:[#allocation1 + $0x9] sm:$0xff]
    %v1250 = vld [vmem:[#allocation1 + $0x12] sm:$0xff]
    %v1251 = vld [vmem:[#allocation1 + $0x1b] sm:$0xff]
    %v1252 = vld [vmem:[#allocation1 + $0x24] sm:$0xff]
    %v1253 = vld [vmem:[#allocation1 + $0x2d] sm:$0xff]
    %v1254 = vld [vmem:[#allocation1 + $0x36] sm:$0xff]
    %v1255 = vld [vmem:[#allocation1 + $0x3f] sm:$0xff]
    %1257 = vst [vmem:[#allocation1] ss:$9 sm:$0xff] %v28
    %v1258 = vld [vmem:[#allocation1] sm:$0xff]
    %v1259 = vld [vmem:[#allocation1 + $0x9] sm:$0xff]
    %v1260 = vld [vmem:[#allocation1 + $0x12] sm:$0xff]
    %v1261 = vld [vmem:[#allocation1 + $0x1b] sm:$0xff]
    %v1262 = vld [vmem:[#allocation1 + $0x24] sm:$0xff]
    %v1263 = vld [vmem:[#allocation1 + $0x2d] sm:$0xff]
    %v1264 = vld [vmem:[#allocation1 + $0x36] sm:$0xff]
    %v1265 = vld [vmem:[#allocation1 + $0x3f] sm:$0xff]
    %1267 = vst [vmem:[#allocation1] ss:$9 sm:$0xff] %v29
    %v1268 = vld [vmem:[#allocation1] sm:$0xff]
    %v1269 = vld [vmem:[#allocation1 + $0x9] sm:$0xff]
    %v1270 = vld [vmem:[#allocation1 + $0x12] sm:$0xff]
    %v1271 = vld [vmem:[#allocation1 + $0x1b] sm:$0xff]
    %v1272 = vld [vmem:[#allocation1 + $0x24] sm:$0xff]
    %v1273 = vld [vmem:[#allocation1 + $0x2d] sm:$0xff]
    %v1274 = vld [vmem:[#allocation1 + $0x36] sm:$0xff]
    %v1275 = vld [vmem:[#allocation1 + $0x3f] sm:$0xff]
    %v2500 = vunpack.c.l.b16 %v30
    %v2501 = vunpack.c.l.b16 %v31
    %v2502 = vunpack.c.l.b16 %v32
    %v2503 = vunpack.c.l.b16 %v33
    %v2504 = vunpack.c.l.b16 %v34
    %v2505 = vunpack.c.l.b16 %v35
    %v2506 = vunpack.c.l.b16 %v36
    %v2507 = vunpack.c.l.b16 %v37
    %v2508 = vunpack.c.l.b16 %v38
    %v2509 = vunpack.c.l.b16 %v39
    %v2510 = vunpack.c.l.b16 %v40
    %v2511 = vunpack.c.l.b16 %v41
    %v2512 = vunpack.c.l.b16 %v42
    %v2513 = vunpack.c.l.b16 %v43
    %v2514 = vunpack.c.l.b16 %v44
    %v2515 = vunpack.c.l.b16 %v45
    %v2516 = vunpack.c.l.b16 %v46
    %v2517 = vunpack.c.l.b16 %v47
    %v2518 = vunpack.c.l.b16 %v48
    %v2519 = vunpack.c.l.b16 %v49
    %v2520 = vunpack.c.l.b16 %v50
    %v2521 = vunpack.c.l.b16 %v51
    %v2522 = vunpack.c.l.b16 %v52
    %v2523 = vunpack.c.l.b16 %v53
    %v2524 = vunpack.c.l.b16 %v54
    %v2525 = vunpack.c.l.b16 %v55
    %v2526 = vunpack.c.l.b16 %v56
    %v2527 = vunpack.c.l.b16 %v57
    %v2528 = vunpack.c.l.b16 %v58
    %v2529 = vunpack.c.l.b16 %v59
    %v2530 = vunpack.c.l.b16 %v60
    %v2531 = vunpack.c.l.b16 %v61
    %v2532 = vunpack.c.l.b16 %v62
    %v2533 = vunpack.c.l.b16 %v63
    %v2534 = vunpack.c.l.b16 %v64
    %v2535 = vunpack.c.l.b16 %v65
    %v2536 = vunpack.c.l.b16 %v66
    %v2537 = vunpack.c.l.b16 %v67
    %v2538 = vunpack.c.l.b16 %v68
    %v2539 = vunpack.c.l.b16 %v69
    %v2540 = vunpack.c.l.b16 %v70
    %v2541 = vunpack.c.l.b16 %v71
    %v2542 = vunpack.c.l.b16 %v72
    %v2543 = vunpack.c.l.b16 %v73
    %v2544 = vunpack.c.l.b16 %v74
    %v2545 = vunpack.c.l.b16 %v75
    %v2546 = vunpack.c.l.b16 %v76
    %v2547 = vunpack.c.l.b16 %v77
    %v2548 = vunpack.c.l.b16 %v78
    %v2549 = vunpack.c.l.b16 %v79
    %v2550 = vunpack.c.l.b16 %v80
    %v2551 = vunpack.c.l.b16 %v81
    %v2552 = vunpack.c.l.b16 %v82
    %v2553 = vunpack.c.l.b16 %v83
    %v2554 = vunpack.c.l.b16 %v84
    %v2555 = vunpack.c.l.b16 %v85
    %v2556 = vunpack.c.l.b16 %v86
    %v2557 = vunpack.c.l.b16 %v87
    %v2558 = vunpack.c.l.b16 %v88
    %v2559 = vunpack.c.l.b16 %v89
    %v2560 = vunpack.c.l.b16 %v90
    %v2561 = vunpack.c.l.b16 %v91
    %v2562 = vunpack.c.l.b16 %v92
    %v2563 = vunpack.c.l.b16 %v93
    %v2564 = vunpack.c.l.b16 %v94
    %v2565 = vunpack.c.l.b16 %v95
    %v2566 = vunpack.c.l.b16 %v96
    %v2567 = vunpack.c.l.b16 %v97
    %v2568 = vunpack.c.l.b16 %v98
    %v2569 = vunpack.c.l.b16 %v99
    %v2570 = vunpack.c.l.b16 %v100
    %v2571 = vunpack.c.l.b16 %v101
    %v2572 = vunpack.c.l.b16 %v102
    %v2573 = vunpack.c.l.b16 %v103
    %v2574 = vunpack.c.l.b16 %v104
    %v2575 = vunpack.c.l.b16 %v105
    %v2576 = vunpack.c.l.b16 %v106
    %v2577 = vunpack.c.l.b16 %v107
    %v2578 = vunpack.c.l.b16 %v108
    %v2579 = vunpack.c.l.b16 %v109
    %v2580 = vunpack.c.l.b16 %v110
    %v2581 = vunpack.c.l.b16 %v111
    %v2582 = vunpack.c.l.b16 %v112
    %v2583 = vunpack.c.l.b16 %v113
    %v2584 = vunpack.c.l.b16 %v114
    %v2585 = vunpack.c.l.b16 %v115
    %v2586 = vunpack.c.l.b16 %v116
    %v2587 = vunpack.c.l.b16 %v117
    %v2588 = vunpack.c.l.b16 %v118
    %v2589 = vunpack.c.l.b16 %v119
    %v2590 = vunpack.c.l.b16 %v120
    %v2591 = vunpack.c.l.b16 %v121
    %v2592 = vunpack.c.l.b16 %v122
    %v2593 = vunpack.c.l.b16 %v123
    %v2594 = vunpack.c.l.b16 %v124
    %v2595 = vunpack.c.l.b16 %v125
    %v2596 = vunpack.c.l.b16 %v126
    %v2597 = vunpack.c.l.b16 %v127
    %v2598 = vunpack.c.l.b16 %v128
    %v2599 = vunpack.c.l.b16 %v129
    %v2600 = vunpack.c.l.b16 %v130
    %v2601 = vunpack.c.l.b16 %v131
    %v2602 = vunpack.c.l.b16 %v132
    %v2603 = vunpack.c.l.b16 %v133
    %v2604 = vunpack.c.l.b16 %v134
    %v2605 = vunpack.c.l.b16 %v135
    %v2606 = vunpack.c.l.b16 %v136
    %v2607 = vunpack.c.l.b16 %v137
    %v2608 = vunpack.c.l.b16 %v138
    %v2609 = vunpack.c.l.b16 %v139
    %v2610 = vunpack.c.l.b16 %v140
    %v2611 = vunpack.c.l.b16 %v141
    %v2612 = vunpack.c.l.b16 %v142
    %v2613 = vunpack.c.l.b16 %v143
    %v2614 = vunpack.c.l.b16 %v144
    %v2615 = vunpack.c.l.b16 %v145
    %v2616 = vunpack.c.l.b16 %v146
    %v2617 = vunpack.c.l.b16 %v147
    %v2618 = vunpack.c.l.b16 %v148
    %v2619 = vunpack.c.l.b16 %v149
    %v2620 = vunpack.c.l.b16 %v150
    %v2621 = vunpack.c.l.b16 %v151
    %v2622 = vunpack.c.l.b16 %v152
    %v2623 = vunpack.c.l.b16 %v153
    %v2624 = vunpack.c.l.b16 %v154
    %v2625 = vunpack.c.l.b16 %v155
    %v2626 = vunpack.c.l.b16 %v156
    %v2627 = vunpack.c.l.b16 %v157
    %v2628 = vunpack.c.l.b16 %v158
    %v2629 = vunpack.c.l.b16 %v159
    %v2630 = vunpack.c.l.b16 %v160
    %v2631 = vunpack.c.l.b16 %v161
    %v2632 = vunpack.c.l.b16 %v162
    %v2633 = vunpack.c.l.b16 %v163
    %v2634 = vunpack.c.l.b16 %v164
    %v2635 = vunpack.c.l.b16 %v165
    %v2636 = vunpack.c.l.b16 %v166
    %v2637 = vunpack.c.l.b16 %v167
    %v2638 = vunpack.c.l.b16 %v168
    %v2639 = vunpack.c.l.b16 %v169
    %v2640 = vunpack.c.l.b16 %v170
    %v2641 = vunpack.c.l.b16 %v171
    %v2642 = vunpack.c.l.b16 %v172
    %v2643 = vunpack.c.l.b16 %v173
    %v2644 = vunpack.c.l.b16 %v174
    %v2645 = vunpack.c.l.b16 %v175
    %v2646 = vunpack.c.l.b16 %v176
    %v2647 = vunpack.c.l.b16 %v177
    %v2648 = vunpack.c.l.b16 %v178
    %v2649 = vunpack.c.l.b16 %v179
    %v2650 = vunpack.c.l.b16 %v180
    %v2651 = vunpack.c.l.b16 %v181
    %v2652 = vunpack.c.l.b16 %v182
    %v2653 = vunpack.c.l.b16 %v183
    %v2654 = vunpack.c.l.b16 %v184
    %v2655 = vunpack.c.l.b16 %v185
    %v2656 = vunpack.c.l.b16 %v186
    %v2657 = vunpack.c.l.b16 %v187
    %v2658 = vunpack.c.l.b16 %v188
    %v2659 = vunpack.c.l.b16 %v189
    %v2660 = vunpack.c.l.b16 %v190
    %v2661 = vunpack.c.l.b16 %v191
    %v2662 = vunpack.c.l.b16 %v192
    %v2663 = vunpack.c.l.b16 %v193
    %v2664 = vunpack.c.l.b16 %v194
    %v2665 = vunpack.c.l.b16 %v195
    %v2666 = vunpack.c.l.b16 %v196
    %v2667 = vunpack.c.l.b16 %v197
    %v2668 = vunpack.c.l.b16 %v198
    %v2669 = vunpack.c.l.b16 %v199
    %v2670 = vunpack.c.l.b16 %v200
    %v2671 = vunpack.c.l.b16 %v201
    %v2672 = vunpack.c.l.b16 %v202
    %v2673 = vunpack.c.l.b16 %v203
    %v2674 = vunpack.c.l.b16 %v204
    %v2675 = vunpack.c.l.b16 %v205
    %v2676 = vunpack.c.l.b16 %v206
    %v2677 = vunpack.c.l.b16 %v207
    %v2678 = vunpack.c.l.b16 %v208
    %v2679 = vunpack.c.l.b16 %v209
    %v2680 = vunpack.c.l.b16 %v210
    %v2681 = vunpack.c.l.b16 %v211
    %v2682 = vunpack.c.l.b16 %v212
    %v2683 = vunpack.c.l.b16 %v213
    %v2684 = vunpack.c.l.b16 %v214
    %v2685 = vunpack.c.l.b16 %v215
    %v2686 = vunpack.c.l.b16 %v216
    %v2687 = vunpack.c.l.b16 %v217
    %v2688 = vunpack.c.l.b16 %v218
    %v2689 = vunpack.c.l.b16 %v219
    %v2690 = vunpack.c.l.b16 %v220
    %v2691 = vunpack.c.l.b16 %v221
    %v2692 = vunpack.c.l.b16 %v222
    %v2693 = vunpack.c.l.b16 %v223
    %v2694 = vunpack.c.l.b16 %v224
    %v2695 = vunpack.c.l.b16 %v225
    %v2696 = vunpack.c.l.b16 %v226
    %v2697 = vunpack.c.l.b16 %v227
    %v2698 = vunpack.c.l.b16 %v228
    %v2699 = vunpack.c.l.b16 %v229
    %v2700 = vunpack.c.l.b16 %v230
    %v2701 = vunpack.c.l.b16 %v231
    %v2702 = vunpack.c.l.b16 %v232
    %v2703 = vunpack.c.l.b16 %v233
    %v2704 = vunpack.c.l.b16 %v234
    %v2705 = vunpack.c.l.b16 %v235
    %v2706 = vunpack.c.l.b16 %v236
    %v2707 = vunpack.c.l.b16 %v237
    %v2708 = vunpack.c.l.b16 %v238
    %v2709 = vunpack.c.l.b16 %v239
    %v2710 = vunpack.c.l.b16 %v240
    %v2711 = vunpack.c.l.b16 %v241
    %v2712 = vunpack.c.l.b16 %v242
    %v2713 = vunpack.c.l.b16 %v243
    %v2714 = vunpack.c.l.b16 %v244
    %v2715 = vunpack.c.l.b16 %v245
    %v2716 = vunpack.c.l.b16 %v246
    %v2717 = vunpack.c.l.b16 %v247
    %v2718 = vunpack.c.l.b16 %v248
    %v2719 = vunpack.c.l.b16 %v249
    %v2720 = vunpack.c.l.b16 %v250
    %v2721 = vunpack.c.l.b16 %v251
    %v2722 = vunpack.c.l.b16 %v252
    %v2723 = vunpack.c.l.b16 %v253
    %v2724 = vunpack.c.l.b16 %v254
    %v2725 = vunpack.c.l.b16 %v255
    %v2726 = vunpack.c.l.b16 %v256
    %v2727 = vunpack.c.l.b16 %v257
    %v2728 = vunpack.c.l.b16 %v258
    %v2729 = vunpack.c.l.b16 %v259
    %v2730 = vunpack.c.l.b16 %v260
    %v2731 = vunpack.c.l.b16 %v261
    %v2732 = vunpack.c.l.b16 %v262
    %v2733 = vunpack.c.l.b16 %v263
    %v2734 = vunpack.c.l.b16 %v264
    %v2735 = vunpack.c.l.b16 %v265
    %v2736 = vunpack.c.l.b16 %v266
    %v2737 = vunpack.c.l.b16 %v267
    %v2738 = vunpack.c.l.b16 %v268
    %v2739 = vunpack.c.l.b16 %v269
    %v2740 = vunpack.c.l.b16 %v270
    %v2741 = vunpack.c.l.b16 %v271
    %v2742 = vunpack.c.l.b16 %v272
    %v2743 = vunpack.c.l.b16 %v273
    %v2744 = vunpack.c.l.b16 %v274
    %v2745 = vunpack.c.l.b16 %v275
    %v2746 = vunpack.c.l.b16 %v276
    %v2747 = vunpack.c.l.b16 %v277
    %v2748 = vunpack.c.l.b16 %v278
    %v2749 = vunpack.c.l.b16 %v279
    %v2750 = vunpack.c.l.b16 %v280
    %v2751 = vunpack.c.l.b16 %v281
    %v2752 = vunpack.c.l.b16 %v282
    %v2753 = vunpack.c.l.b16 %v283
    %v2754 = vunpack.c.l.b16 %v284
    %v2755 = vunpack.c.l.b16 %v285
    %v2756 = vunpack.c.l.b16 %v286
    %v2757 = vunpack.c.l.b16 %v287
    %v2758 = vunpack.c.l.b16 %v288
    %v2759 = vunpack.c.l.b16 %v289
    %v2760 = vunpack.c.l.b16 %v290
    %v2761 = vunpack.c.l.b16 %v291
    %v2762 = vunpack.c.l.b16 %v292
    %v2763 = vunpack.c.l.b16 %v293
    %v2764 = vunpack.c.l.b16 %v294
    %v2765 = vunpack.c.l.b16 %v295
    %v2766 = vunpack.c.l.b16 %v296
    %v2767 = vunpack.c.l.b16 %v297
    %v2768 = vunpack.c.l.b16 %v298
    %v2769 = vunpack.c.l.b16 %v299
    %v2770 = vunpack.c.l.b16 %v300
    %v2771 = vunpack.c.l.b16 %v301
    %v2772 = vunpack.c.l.b16 %v302
    %v2773 = vunpack.c.l.b16 %v303
    %v2774 = vunpack.c.l.b16 %v304
    %v2775 = vunpack.c.l.b16 %v305
    %v2776 = vunpack.c.l.b16 %v306
    %v2777 = vunpack.c.l.b16 %v307
    %v2778 = vunpack.c.l.b16 %v308
    %v2779 = vunpack.c.l.b16 %v309
    %v2780 = vunpack.c.l.b16 %v310
    %v2781 = vunpack.c.l.b16 %v311
    %v2782 = vunpack.c.l.b16 %v312
    %v2783 = vunpack.c.l.b16 %v313
    %v2784 = vunpack.c.l.b16 %v314
    %v2785 = vunpack.c.l.b16 %v315
    %v2786 = vunpack.c.l.b16 %v316
    %v2787 = vunpack.c.l.b16 %v317
    %v2788 = vunpack.c.l.b16 %v318
    %v2789 = vunpack.c.l.b16 %v319
    %v2790 = vunpack.c.l.b16 %v320
    %v2791 = vunpack.c.l.b16 %v321
    %v2792 = vunpack.c.l.b16 %v322
    %v2793 = vunpack.c.l.b16 %v323
    %v2794 = vunpack.c.l.b16 %v324
    %v2795 = vunpack.c.l.b16 %v325
    %v2796 = vunpack.c.l.b16 %v326
    %v2797 = vunpack.c.l.b16 %v327
    %v2798 = vunpack.c.l.b16 %v328
    %v2799 = vunpack.c.l.b16 %v329
    %v2800 = vunpack.c.l.b16 %v330
    %v2801 = vunpack.c.l.b16 %v331
    %v2802 = vunpack.c.l.b16 %v332
    %v2803 = vunpack.c.l.b16 %v333
    %v2804 = vunpack.c.l.b16 %v334
    %v2805 = vunpack.c.l.b16 %v335
    %v2806 = vunpack.c.l.b16 %v336
    %v2807 = vunpack.c.l.b16 %v337
    %v2808 = vunpack.c.l.b16 %v338
    %v2809 = vunpack.c.l.b16 %v339
    %v2810 = vunpack.c.l.b16 %v340
    %v2811 = vunpack.c.l.b16 %v341
    %v2812 = vunpack.c.l.b16 %v342
    %v2813 = vunpack.c.l.b16 %v343
    %v2814 = vunpack.c.l.b16 %v344
    %v2815 = vunpack.c.l.b16 %v345
    %v2816 = vunpack.c.l.b16 %v346
    %v2817 = vunpack.c.l.b16 %v347
    %v2818 = vunpack.c.l.b16 %v348
    %v2819 = vunpack.c.l.b16 %v349
    %v2820 = vunpack.c.l.b16 %v350
    %v2821 = vunpack.c.l.b16 %v351
    %v2822 = vunpack.c.l.b16 %v352
    %v2823 = vunpack.c.l.b16 %v353
    %v2824 = vunpack.c.l.b16 %v354
    %v2825 = vunpack.c.l.b16 %v355
    %v2826 = vunpack.c.l.b16 %v356
    %v2827 = vunpack.c.l.b16 %v357
    %v2828 = vunpack.c.l.b16 %v358
    %v2829 = vunpack.c.l.b16 %v359
    %v2830 = vunpack.c.l.b16 %v360
    %v2831 = vunpack.c.l.b16 %v361
    %v2832 = vunpack.c.l.b16 %v362
    %v2833 = vunpack.c.l.b16 %v363
    %v2834 = vunpack.c.l.b16 %v364
    %v2835 = vunpack.c.l.b16 %v365
    %v2836 = vunpack.c.l.b16 %v366
    %v2837 = vunpack.c.l.b16 %v367
    %v2838 = vunpack.c.l.b16 %v368
    %v2839 = vunpack.c.l.b16 %v369
    %v2840 = vunpack.c.l.b16 %v370
    %v2841 = vunpack.c.l.b16 %v371
    %v2842 = vunpack.c.l.b16 %v372
    %v2843 = vunpack.c.l.b16 %v373
    %v2844 = vunpack.c.l.b16 %v374
    %v2845 = vunpack.c.l.b16 %v375
    %v2846 = vunpack.c.l.b16 %v376
    %v2847 = vunpack.c.l.b16 %v377
    %v2848 = vunpack.c.l.b16 %v378
    %v2849 = vunpack.c.l.b16 %v379
    %v2850 = vunpack.c.l.b16 %v380
    %v2851 = vunpack.c.l.b16 %v381
    %v2852 = vunpack.c.l.b16 %v382
    %v2853 = vunpack.c.l.b16 %v383
    %v2854 = vunpack.c.l.b16 %v384
    %v2855 = vunpack.c.l.b16 %v385
    %v2856 = vunpack.c.l.b16 %v386
    %v2857 = vunpack.c.l.b16 %v387
    %v2858 = vunpack.c.l.b16 %v388
    %v2859 = vunpack.c.l.b16 %v389
    %v2860 = vunpack.c.l.b16 %v390
    %v2861 = vunpack.c.l.b16 %v391
    %v2862 = vunpack.c.l.b16 %v392
    %v2863 = vunpack.c.l.b16 %v393
    %v2864 = vunpack.c.l.b16 %v394
    %v2865 = vunpack.c.l.b16 %v395
    %v2866 = vunpack.c.l.b16 %v396
    %v2867 = vunpack.c.l.b16 %v397
    %v2868 = vunpack.c.l.b16 %v398
    %v2869 = vunpack.c.l.b16 %v399
    %v2870 = vunpack.c.l.b16 %v400
    %v2871 = vunpack.c.l.b16 %v401
    %v2872 = vunpack.c.l.b16 %v402
    %v2873 = vunpack.c.l.b16 %v403
    %v2874 = vunpack.c.l.b16 %v404
    %v2875 = vunpack.c.l.b16 %v405
    %v2876 = vunpack.c.l.b16 %v406
    %v2877 = vunpack.c.l.b16 %v407
    %v2878 = vunpack.c.l.b16 %v408
    %v2879 = vunpack.c.l.b16 %v409
    %v2880 = vunpack.c.l.b16 %v410
    %v2881 = vunpack.c.l.b16 %v411
    %v2882 = vunpack.c.l.b16 %v412
    %v2883 = vunpack.c.l.b16 %v413
    %v2884 = vunpack.c.l.b16 %v414
    %v2885 = vunpack.c.l.b16 %v415
    %v2886 = vunpack.c.l.b16 %v416
    %v2887 = vunpack.c.l.b16 %v417
    %v2888 = vunpack.c.l.b16 %v418
    %v2889 = vunpack.c.l.b16 %v419
    %v2890 = vunpack.c.l.b16 %v420
    %v2891 = vunpack.c.l.b16 %v421
    %v2892 = vunpack.c.l.b16 %v422
    %v2893 = vunpack.c.l.b16 %v423
    %v2894 = vunpack.c.l.b16 %v424
    %v2895 = vunpack.c.l.b16 %v425
    %v2896 = vunpack.c.l.b16 %v426
    %v2897 = vunpack.c.l.b16 %v427
    %v2898 = vunpack.c.l.b16 %v428
    %v2899 = vunpack.c.l.b16 %v429
    %v2900 = vunpack.c.l.b16 %v430
    %v2901 = vunpack.c.l.b16 %v431
    %v2902 = vunpack.c.l.b16 %v432
    %v2903 = vunpack.c.l.b16 %v433
    %v2904 = vunpack.c.l.b16 %v434
    %v2905 = vunpack.c.l.b16 %v435
    %v2906 = vunpack.c.l.b16 %v436
    %v2907 = vunpack.c.l.b16 %v437
    %v2908 = vunpack.c.l.b16 %v438
    %v2909 = vunpack.c.l.b16 %v439
    %v2910 = vunpack.c.l.b16 %v440
    %v2911 = vunpack.c.l.b16 %v441
    %v2912 = vunpack.c.l.b16 %v442
    %v2913 = vunpack.c.l.b16 %v443
    %v2914 = vunpack.c.l.b16 %v444
    %v2915 = vunpack.c.l.b16 %v445
    %v2916 = vunpack.c.l.b16 %v446
    %v2917 = vunpack.c.l.b16 %v447
    %v2918 = vunpack.c.l.b16 %v448
    %v2919 = vunpack.c.l.b16 %v449
    %v2920 = vunpack.c.l.b16 %v450
    %v2921 = vunpack.c.l.b16 %v451
    %v2922 = vunpack.c.l.b16 %v452
    %v2923 = vunpack.c.l.b16 %v453
    %v2924 = vunpack.c.l.b16 %v454
    %v2925 = vunpack.c.l.b16 %v455
    %v2926 = vunpack.c.l.b16 %v456
    %v2927 = vunpack.c.l.b16 %v457
    %v2928 = vunpack.c.l.b16 %v458
    %v2929 = vunpack.c.l.b16 %v459
    %v2930 = vunpack.c.l.b16 %v460
    %v2931 = vunpack.c.l.b16 %v461
    %v2932 = vunpack.c.l.b16 %v462
    %v2933 = vunpack.c.l.b16 %v463
    %v2934 = vunpack.c.l.b16 %v464
    %v2935 = vunpack.c.l.b16 %v465
    %v2936 = vunpack.c.l.b16 %v466
    %v2937 = vunpack.c.l.b16 %v467
    %v2938 = vunpack.c.l.b16 %v468
    %v2939 = vunpack.c.l.b16 %v469
    %v2940 = vunpack.c.l.b16 %v470
    %v2941 = vunpack.c.l.b16 %v471
    %v2942 = vunpack.c.l.b16 %v472
    %v2943 = vunpack.c.l.b16 %v473
    %v2944 = vunpack.c.l.b16 %v474
    %v2945 = vunpack.c.l.b16 %v475
    %v2946 = vunpack.c.l.b16 %v476
    %v2947 = vunpack.c.l.b16 %v477
    %v2948 = vunpack.c.l.b16 %v478
    %v2949 = vunpack.c.l.b16 %v479
    %v2950 = vunpack.c.l.b16 %v480
    %v2951 = vunpack.c.l.b16 %v481
    %v2952 = vunpack.c.l.b16 %v482
    %v2953 = vunpack.c.l.b16 %v483
    %v2954 = vunpack.c.l.b16 %v484
    %v2955 = vunpack.c.l.b16 %v485
    %v2956 = vunpack.c.l.b16 %v486
    %v2957 = vunpack.c.l.b16 %v487
    %v2958 = vunpack.c.l.b16 %v488
    %v2959 = vunpack.c.l.b16 %v489
    %v2960 = vunpack.c.l.b16 %v490
    %v2961 = vunpack.c.l.b16 %v491
    %v2962 = vunpack.c.l.b16 %v492
    %v2963 = vunpack.c.l.b16 %v493
    %v2964 = vunpack.c.l.b16 %v494
    %v2965 = vunpack.c.l.b16 %v495
    %v2966 = vunpack.c.l.b16 %v496
    %v2967 = vunpack.c.l.b16 %v497
    %v2968 = vunpack.c.l.b16 %v498
    %v2969 = vunpack.c.l.b16 %v499
    %v2970 = vunpack.c.l.b16 %v500
    %v2971 = vunpack.c.l.b16 %v501
    %v2972 = vunpack.c.l.b16 %v502
    %v2973 = vunpack.c.l.b16 %v503
    %v2974 = vunpack.c.l.b16 %v504
    %v2975 = vunpack.c.l.b16 %v505
    %v2976 = vunpack.c.l.b16 %v506
    %v2977 = vunpack.c.l.b16 %v507
    %v2978 = vunpack.c.l.b16 %v508
    %v2979 = vunpack.c.l.b16 %v509
    %v2980 = vunpack.c.l.b16 %v510
    %v2981 = vunpack.c.l.b16 %v511
    %v2982 = vunpack.c.l.b16 %v512
    %v2983 = vunpack.c.l.b16 %v513
    %v2984 = vunpack.c.l.b16 %v514
    %v2985 = vunpack.c.l.b16 %v515
    %v2986 = vunpack.c.l.b16 %v516
    %v2987 = vunpack.c.l.b16 %v517
    %v2988 = vunpack.c.l.b16 %v518
    %v2989 = vunpack.c.l.b16 %v519
    %v2990 = vunpack.c.l.b16 %v520
    %v2991 = vunpack.c.l.b16 %v521
    %v2992 = vunpack.c.l.b16 %v522
    %v2993 = vunpack.c.l.b16 %v523
    %v2994 = vunpack.c.l.b16 %v524
    %v2995 = vunpack.c.l.b16 %v525
    %v2996 = vunpack.c.l.b16 %v526
    %v2997 = vunpack.c.l.b16 %v527
    %v2998 = vunpack.c.l.b16 %v528
    %v2999 = vunpack.c.l.b16 %v529
    %v3000 = vunpack.c.l.b16 %v530
    %v3001 = vunpack.c.l.b16 %v531
    %v3002 = vunpack.c.l.b16 %v532
    %v3003 = vunpack.c.l.b16 %v533
    %v3004 = vunpack.c.l.b16 %v534
    %v3005 = vunpack.c.l.b16 %v535
    %v3006 = vunpack.c.l.b16 %v536
    %v3007 = vunpack.c.l.b16 %v537
    %v3008 = vunpack.c.l.b16 %v538
    %v3009 = vunpack.c.l.b16 %v539
    %v3010 = vunpack.c.l.b16 %v540
    %v3011 = vunpack.c.l.b16 %v541
    %v3012 = vunpack.c.l.b16 %v542
    %v3013 = vunpack.c.l.b16 %v543
    %v3014 = vunpack.c.l.b16 %v544
    %v3015 = vunpack.c.l.b16 %v545
    %v3016 = vunpack.c.l.b16 %v546
    %v3017 = vunpack.c.l.b16 %v547
    %v3018 = vunpack.c.l.b16 %v548
    %v3019 = vunpack.c.l.b16 %v549
    %v3020 = vunpack.c.l.b16 %v550
    %v3021 = vunpack.c.l.b16 %v551
    %v3022 = vunpack.c.l.b16 %v552
    %v3023 = vunpack.c.l.b16 %v553
    %v3024 = vunpack.c.l.b16 %v554
    %v3025 = vunpack.c.l.b16 %v555
    %v3026 = vunpack.c.l.b16 %v556
    %v3027 = vunpack.c.l.b16 %v557
    %v3028 = vunpack.c.l.b16 %v558
    %v3029 = vunpack.c.l.b16 %v559
    %v3030 = vunpack.c.l.b16 %v560
    %v3031 = vunpack.c.l.b16 %v561
    %v3032 = vunpack.c.l.b16 %v562
    %v3033 = vunpack.c.l.b16 %v563
    %v3034 = vunpack.c.l.b16 %v564
    %v3035 = vunpack.c.l.b16 %v565
    %v3036 = vunpack.c.l.b16 %v566
    %v3037 = vunpack.c.l.b16 %v567
    %v3038 = vunpack.c.l.b16 %v568
    %v3039 = vunpack.c.l.b16 %v569
    %v3040 = vunpack.c.l.b16 %v570
    %v3041 = vunpack.c.l.b16 %v571
    %v3042 = vunpack.c.l.b16 %v572
    %v3043 = vunpack.c.l.b16 %v573
    %v3044 = vunpack.c.l.b16 %v574
    %v3045 = vunpack.c.l.b16 %v575
    %v3046 = vunpack.c.l.b16 %v576
    %v3047 = vunpack.c.l.b16 %v577
    %v3048 = vunpack.c.l.b16 %v578
    %v3049 = vunpack.c.l.b16 %v579
    %v3050 = vunpack.c.l.b16 %v580
    %v3051 = vunpack.c.l.b16 %v581
    %v3052 = vunpack.c.l.b16 %v582
    %v3053 = vunpack.c.l.b16 %v583
    %v3054 = vunpack.c.l.b16 %v584
    %v3055 = vunpack.c.l.b16 %v585
    %v3056 = vunpack.c.l.b16 %v586
    %v3057 = vunpack.c.l.b16 %v587
    %v3058 = vunpack.c.l.b16 %v588
    %v3059 = vunpack.c.l.b16 %v589
    %v3060 = vunpack.c.l.b16 %v590
    %v3061 = vunpack.c.l.b16 %v591
    %v3062 = vunpack.c.l.b16 %v592
    %v3063 = vunpack.c.l.b16 %v593
    %v3064 = vunpack.c.l.b16 %v594
    %v3065 = vunpack.c.l.b16 %v595
    %v3066 = vunpack.c.l.b16 %v596
    %v3067 = vunpack.c.l.b16 %v597
    %v3068 = vunpack.c.l.b16 %v598
    %v3069 = vunpack.c.l.b16 %v599
    %v3070 = vunpack.c.l.b16 %v600
    %v3071 = vunpack.c.l.b16 %v601
    %v3072 = vunpack.c.l.b16 %v602
    %v3073 = vunpack.c.l.b16 %v603
    %v3074 = vunpack.c.l.b16 %v604
    %v3075 = vunpack.c.l.b16 %v605
    %v3076 = vunpack.c.l.b16 %v606
    %v3077 = vunpack.c.l.b16 %v607
    %v3078 = vunpack.c.l.b16 %v608
    %v3079 = vunpack.c.l.b16 %v609
    %v3080 = vunpack.c.l.b16 %v610
    %v3081 = vunpack.c.l.b16 %v611
    %v3082 = vunpack.c.l.b16 %v612
    %v3083 = vunpack.c.l.b16 %v613
    %v3084 = vunpack.c.l.b16 %v614
    %v3085 = vunpack.c.l.b16 %v615
    %v3086 = vunpack.c.l.b16 %v616
    %v3087 = vunpack.c.l.b16 %v617
    %v3088 = vunpack.c.l.b16 %v618
    %v3089 = vunpack.c.l.b16 %v619
    %v3090 = vunpack.c.l.b16 %v620
    %v3091 = vunpack.c.l.b16 %v621
    %v3092 = vunpack.c.l.b16 %v622
    %v3093 = vunpack.c.l.b16 %v623
    %v3094 = vunpack.c.l.b16 %v624
    %v3095 = vunpack.c.l.b16 %v625
    %v3096 = vunpack.c.l.b16 %v626
    %v3097 = vunpack.c.l.b16 %v627
    %v3098 = vunpack.c.l.b16 %v628
    %v3099 = vunpack.c.l.b16 %v629
    %v3100 = vunpack.c.l.b16 %v630
    %v3101 = vunpack.c.l.b16 %v631
    %v3102 = vunpack.c.l.b16 %v632
    %v3103 = vunpack.c.l.b16 %v633
    %v3104 = vunpack.c.l.b16 %v634
    %v3105 = vunpack.c.l.b16 %v635
    %v3106 = vunpack.c.l.b16 %v636
    %v3107 = vunpack.c.l.b16 %v637
    %v3108 = vunpack.c.l.b16 %v638
    %v3109 = vunpack.c.l.b16 %v639
    %v3110 = vunpack.c.l.b16 %v640
    %v3111 = vunpack.c.l.b16 %v641
    %v3112 = vunpack.c.l.b16 %v642
    %v3113 = vunpack.c.l.b16 %v643
    %v3114 = vunpack.c.l.b16 %v644
    %v3115 = vunpack.c.l.b16 %v645
    %v3116 = vunpack.c.l.b16 %v646
    %v3117 = vunpack.c.l.b16 %v647
    %v3118 = vunpack.c.l.b16 %v648
    %v3119 = vunpack.c.l.b16 %v649
    %v3120 = vunpack.c.l.b16 %v650
    %v3121 = vunpack.c.l.b16 %v651
    %v3122 = vunpack.c.l.b16 %v652
    %v3123 = vunpack.c.l.b16 %v653
    %v3124 = vunpack.c.l.b16 %v654
    %v3125 = vunpack.c.l.b16 %v655
    %v3126 = vunpack.c.l.b16 %v656
    %v3127 = vunpack.c.l.b16 %v657
    %v3128 = vunpack.c.l.b16 %v658
    %v3129 = vunpack.c.l.b16 %v659
    %v3130 = vunpack.c.l.b16 %v660
    %v3131 = vunpack.c.l.b16 %v661
    %v3132 = vunpack.c.l.b16 %v662
    %v3133 = vunpack.c.l.b16 %v663
    %v3134 = vunpack.c.l.b16 %v664
    %v3135 = vunpack.c.l.b16 %v665
    %v3136 = vunpack.c.l.b16 %v666
    %v3137 = vunpack.c.l.b16 %v667
    %v3138 = vunpack.c.l.b16 %v668
    %v3139 = vunpack.c.l.b16 %v669
    %v3140 = vunpack.c.l.b16 %v670
    %v3141 = vunpack.c.l.b16 %v671
    %v3142 = vunpack.c.l.b16 %v672
    %v3143 = vunpack.c.l.b16 %v673
    %v3144 = vunpack.c.l.b16 %v674
    %v3145 = vunpack.c.l.b16 %v675
    %v3146 = vunpack.c.l.b16 %v676
    %v3147 = vunpack.c.l.b16 %v677
    %v3148 = vunpack.c.l.b16 %v678
    %v3149 = vunpack.c.l.b16 %v679
    %v3150 = vunpack.c.l.b16 %v680
    %v3151 = vunpack.c.l.b16 %v681
    %v3152 = vunpack.c.l.b16 %v682
    %v3153 = vunpack.c.l.b16 %v683
    %v3154 = vunpack.c.l.b16 %v684
    %v3155 = vunpack.c.l.b16 %v685
    %v3156 = vunpack.c.l.b16 %v686
    %v3157 = vunpack.c.l.b16 %v687
    %v3158 = vunpack.c.l.b16 %v688
    %v3159 = vunpack.c.l.b16 %v689
    %v3160 = vunpack.c.l.b16 %v690
    %v3161 = vunpack.c.l.b16 %v691
    %v3162 = vunpack.c.l.b16 %v692
    %v3163 = vunpack.c.l.b16 %v693
    %v3164 = vunpack.c.l.b16 %v694
    %v3165 = vunpack.c.l.b16 %v695
    %v3166 = vunpack.c.l.b16 %v696
    %v3167 = vunpack.c.l.b16 %v697
    %v3168 = vunpack.c.l.b16 %v698
    %v3169 = vunpack.c.l.b16 %v699
    %v3170 = vunpack.c.l.b16 %v700
    %v3171 = vunpack.c.l.b16 %v701
    %v3172 = vunpack.c.l.b16 %v702
    %v3173 = vunpack.c.l.b16 %v703
    %v3174 = vunpack.c.l.b16 %v704
    %v3175 = vunpack.c.l.b16 %v705
    %v3176 = vunpack.c.l.b16 %v706
    %v3177 = vunpack.c.l.b16 %v707
    %v3178 = vunpack.c.l.b16 %v708
    %v3179 = vunpack.c.l.b16 %v709
    %v3180 = vunpack.c.l.b16 %v710
    %v3181 = vunpack.c.l.b16 %v711
    %v3182 = vunpack.c.l.b16 %v712
    %v3183 = vunpack.c.l.b16 %v713
    %v3184 = vunpack.c.l.b16 %v714
    %v3185 = vunpack.c.l.b16 %v715
    %v3186 = vunpack.c.l.b16 %v716
    %v3187 = vunpack.c.l.b16 %v717
    %v3188 = vunpack.c.l.b16 %v718
    %v3189 = vunpack.c.l.b16 %v719
    %v3190 = vunpack.c.l.b16 %v720
    %v3191 = vunpack.c.l.b16 %v721
    %v3192 = vunpack.c.l.b16 %v722
    %v3193 = vunpack.c.l.b16 %v723
    %v3194 = vunpack.c.l.b16 %v724
    %v3195 = vunpack.c.l.b16 %v725
    %v3196 = vunpack.c.l.b16 %v726
    %v3197 = vunpack.c.l.b16 %v727
    %v3198 = vunpack.c.l.b16 %v728
    %v3199 = vunpack.c.l.b16 %v729
    %v3200 = vunpack.c.l.b16 %v730
    %v3201 = vunpack.c.l.b16 %v731
    %v3202 = vunpack.c.l.b16 %v732
    %v3203 = vunpack.c.l.b16 %v733
    %v3204 = vunpack.c.l.b16 %v734
    %v3205 = vunpack.c.l.b16 %v735
    %v3206 = vunpack.c.l.b16 %v736
    %v3207 = vunpack.c.l.b16 %v737
    %v3208 = vunpack.c.l.b16 %v738
    %v3209 = vunpack.c.l.b16 %v739
    %v3210 = vunpack.c.l.b16 %v740
    %v3211 = vunpack.c.l.b16 %v741
    %v3212 = vunpack.c.l.b16 %v742
    %v3213 = vunpack.c.l.b16 %v743
    %v3214 = vunpack.c.l.b16 %v744
    %v3215 = vunpack.c.l.b16 %v745
    %v3216 = vunpack.c.l.b16 %v746
    %v3217 = vunpack.c.l.b16 %v747
    %v3218 = vunpack.c.l.b16 %v748
    %v3219 = vunpack.c.l.b16 %v749
    %v3220 = vunpack.c.l.b16 %v750
    %v3221 = vunpack.c.l.b16 %v751
    %v3222 = vunpack.c.l.b16 %v752
    %v3223 = vunpack.c.l.b16 %v753
    %v3224 = vunpack.c.l.b16 %v754
    %v3225 = vunpack.c.l.b16 %v755
    %v3226 = vunpack.c.l.b16 %v756
    %v3227 = vunpack.c.l.b16 %v757
    %v3228 = vunpack.c.l.b16 %v758
    %v3229 = vunpack.c.l.b16 %v759
    %v3230 = vunpack.c.l.b16 %v760
    %v3231 = vunpack.c.l.b16 %v761
    %v3232 = vunpack.c.l.b16 %v762
    %v3233 = vunpack.c.l.b16 %v763
    %v3234 = vunpack.c.l.b16 %v764
    %v3235 = vunpack.c.l.b16 %v765
    %v3236 = vunpack.c.l.b16 %v766
    %v3237 = vunpack.c.l.b16 %v767
    %v3238 = vunpack.c.l.b16 %v768
    %v3239 = vunpack.c.l.b16 %v769
    %v3240 = vunpack.c.l.b16 %v770
    %v3241 = vunpack.c.l.b16 %v771
    %v3242 = vunpack.c.l.b16 %v772
    %v3243 = vunpack.c.l.b16 %v773
    %v3244 = vunpack.c.l.b16 %v774
    %v3245 = vunpack.c.l.b16 %v775
    %v3246 = vunpack.c.l.b16 %v776
    %v3247 = vunpack.c.l.b16 %v777
    %v3248 = vunpack.c.l.b16 %v778
    %v3249 = vunpack.c.l.b16 %v779
    %v3250 = vunpack.c.l.b16 %v780
    %v3251 = vunpack.c.l.b16 %v781
    %v3252 = vunpack.c.l.b16 %v782
    %v3253 = vunpack.c.l.b16 %v783
    %v3254 = vunpack.c.l.b16 %v784
    %v3255 = vunpack.c.l.b16 %v785
    %v3256 = vunpack.c.l.b16 %v786
    %v3257 = vunpack.c.l.b16 %v787
    %v3258 = vunpack.c.l.b16 %v788
    %v3259 = vunpack.c.l.b16 %v789
    %v3260 = vunpack.c.l.b16 %v790
    %v3261 = vunpack.c.l.b16 %v791
    %v3262 = vunpack.c.l.b16 %v792
    %v3263 = vunpack.c.l.b16 %v793
    %v3264 = vunpack.c.l.b16 %v794
    %v3265 = vunpack.c.l.b16 %v795
    %v3266 = vunpack.c.l.b16 %v796
    %v3267 = vunpack.c.l.b16 %v797
    %v3268 = vunpack.c.l.b16 %v798
    %v3269 = vunpack.c.l.b16 %v799
    %v3270 = vunpack.c.l.b16 %v800
    %v3271 = vunpack.c.l.b16 %v801
    %v3272 = vunpack.c.l.b16 %v802
    %v3273 = vunpack.c.l.b16 %v803
    %v3274 = vunpack.c.l.b16 %v804
    %v3275 = vunpack.c.l.b16 %v805
    %v3276 = vunpack.c.l.b16 %v806
    %v3277 = vunpack.c.l.b16 %v807
    %v3278 = vunpack.c.l.b16 %v808
    %v3279 = vunpack.c.l.b16 %v809
    %v3280 = vunpack.c.l.b16 %v810
    %v3281 = vunpack.c.l.b16 %v811
    %v3282 = vunpack.c.l.b16 %v812
    %v3283 = vunpack.c.l.b16 %v813
    %v3284 = vunpack.c.l.b16 %v814
    %v3285 = vunpack.c.l.b16 %v815
    %v3286 = vunpack.c.l.b16 %v816
    %v3287 = vunpack.c.l.b16 %v817
    %v3288 = vunpack.c.l.b16 %v818
    %v3289 = vunpack.c.l.b16 %v819
    %v3290 = vunpack.c.l.b16 %v820
    %v3291 = vunpack.c.l.b16 %v821
    %v3292 = vunpack.c.l.b16 %v822
    %v3293 = vunpack.c.l.b16 %v823
    %v3294 = vunpack.c.l.b16 %v824
    %v3295 = vunpack.c.l.b16 %v825
    %v3296 = vunpack.c.l.b16 %v826
    %v3297 = vunpack.c.l.b16 %v827
    %v3298 = vunpack.c.l.b16 %v828
    %v3299 = vunpack.c.l.b16 %v829
    %v3300 = vunpack.c.l.b16 %v830
    %v3301 = vunpack.c.l.b16 %v831
    %v3302 = vunpack.c.l.b16 %v832
    %v3303 = vunpack.c.l.b16 %v833
    %v3304 = vunpack.c.l.b16 %v834
    %v3305 = vunpack.c.l.b16 %v835
    %v3306 = vunpack.c.l.b16 %v836
    %v3307 = vunpack.c.l.b16 %v837
    %v3308 = vunpack.c.l.b16 %v838
    %v3309 = vunpack.c.l.b16 %v839
    %v3310 = vunpack.c.l.b16 %v840
    %v3311 = vunpack.c.l.b16 %v841
    %v3312 = vunpack.c.l.b16 %v842
    %v3313 = vunpack.c.l.b16 %v843
    %v3314 = vunpack.c.l.b16 %v844
    %v3315 = vunpack.c.l.b16 %v845
    %v3316 = vunpack.c.l.b16 %v846
    %v3317 = vunpack.c.l.b16 %v847
    %v3318 = vunpack.c.l.b16 %v848
    %v3319 = vunpack.c.l.b16 %v849
    %v3320 = vunpack.c.l.b16 %v850
    %v3321 = vunpack.c.l.b16 %v851
    %v3322 = vunpack.c.l.b16 %v852
    %v3323 = vunpack.c.l.b16 %v853
    %v3324 = vunpack.c.l.b16 %v854
    %v3325 = vunpack.c.l.b16 %v855
    %v3326 = vunpack.c.l.b16 %v856
    %v3327 = vunpack.c.l.b16 %v857
    %v3328 = vunpack.c.l.b16 %v858
    %v3329 = vunpack.c.l.b16 %v859
    %v3330 = vunpack.c.l.b16 %v860
    %v3331 = vunpack.c.l.b16 %v861
    %v3332 = vunpack.c.l.b16 %v862
    %v3333 = vunpack.c.l.b16 %v863
    %v3334 = vunpack.c.l.b16 %v864
    %v3335 = vunpack.c.l.b16 %v865
    %v3336 = vunpack.c.l.b16 %v866
    %v3337 = vunpack.c.l.b16 %v867
    %v3338 = vunpack.c.l.b16 %v868
    %v3339 = vunpack.c.l.b16 %v869
    %v3340 = vunpack.c.l.b16 %v870
    %v3341 = vunpack.c.l.b16 %v871
    %v3342 = vunpack.c.l.b16 %v872
    %v3343 = vunpack.c.l.b16 %v873
    %v3344 = vunpack.c.l.b16 %v874
    %v3345 = vunpack.c.l.b16 %v875
    %v3346 = vunpack.c.l.b16 %v876
    %v3347 = vunpack.c.l.b16 %v877
    %v3348 = vunpack.c.l.b16 %v878
    %v3349 = vunpack.c.l.b16 %v879
    %v3350 = vunpack.c.l.b16 %v880
    %v3351 = vunpack.c.l.b16 %v881
    %v3352 = vunpack.c.l.b16 %v882
    %v3353 = vunpack.c.l.b16 %v883
    %v3354 = vunpack.c.l.b16 %v884
    %v3355 = vunpack.c.l.b16 %v885
    %v3356 = vunpack.c.l.b16 %v886
    %v3357 = vunpack.c.l.b16 %v887
    %v3358 = vunpack.c.l.b16 %v888
    %v3359 = vunpack.c.l.b16 %v889
    %v3360 = vunpack.c.l.b16 %v890
    %v3361 = vunpack.c.l.b16 %v891
    %v3362 = vunpack.c.l.b16 %v892
    %v3363 = vunpack.c.l.b16 %v893
    %v3364 = vunpack.c.l.b16 %v894
    %v3365 = vunpack.c.l.b16 %v895
    %v3366 = vunpack.c.l.b16 %v896
    %v3367 = vunpack.c.l.b16 %v897
    %v3368 = vunpack.c.l.b16 %v898
    %v3369 = vunpack.c.l.b16 %v899
    %v3370 = vunpack.c.l.b16 %v900
    %v3371 = vunpack.c.l.b16 %v901
    %v3372 = vunpack.c.l.b16 %v902
    %v3373 = vunpack.c.l.b16 %v903
    %v3374 = vunpack.c.l.b16 %v904
    %v3375 = vunpack.c.l.b16 %v905
    %v3376 = vunpack.c.l.b16 %v906
    %v3377 = vunpack.c.l.b16 %v907
    %v3378 = vunpack.c.l.b16 %v908
    %v3379 = vunpack.c.l.b16 %v909
    %v3380 = vunpack.c.l.b16 %v910
    %v3381 = vunpack.c.l.b16 %v911
    %v3382 = vunpack.c.l.b16 %v912
    %v3383 = vunpack.c.l.b16 %v913
    %v3384 = vunpack.c.l.b16 %v914
    %v3385 = vunpack.c.l.b16 %v915
    %v3386 = vunpack.c.l.b16 %v916
    %v3387 = vunpack.c.l.b16 %v917
    %v3388 = vunpack.c.l.b16 %v918
    %v3389 = vunpack.c.l.b16 %v919
    %v3390 = vunpack.c.l.b16 %v920
    %v3391 = vunpack.c.l.b16 %v921
    %v3392 = vunpack.c.l.b16 %v922
    %v3393 = vunpack.c.l.b16 %v923
    %v3394 = vunpack.c.l.b16 %v924
    %v3395 = vunpack.c.l.b16 %v925
    %v3396 = vunpack.c.l.b16 %v926
    %v3397 = vunpack.c.l.b16 %v927
    %v3398 = vunpack.c.l.b16 %v928
    %v3399 = vunpack.c.l.b16 %v929
    %v3400 = vunpack.c.l.b16 %v930
    %v3401 = vunpack.c.l.b16 %v931
    %v3402 = vunpack.c.l.b16 %v932
    %v3403 = vunpack.c.l.b16 %v933
    %v3404 = vunpack.c.l.b16 %v934
    %v3405 = vunpack.c.l.b16 %v935
    %v3406 = vunpack.c.l.b16 %v936
    %v3407 = vunpack.c.l.b16 %v937
    %v3408 = vunpack.c.l.b16 %v938
    %v3409 = vunpack.c.l.b16 %v939
    %v3410 = vunpack.c.l.b16 %v940
    %v3411 = vunpack.c.l.b16 %v941
    %v3412 = vunpack.c.l.b16 %v942
    %v3413 = vunpack.c.l.b16 %v943
    %v3414 = vunpack.c.l.b16 %v944
    %v3415 = vunpack.c.l.b16 %v945
    %v3416 = vunpack.c.l.b16 %v946
    %v3417 = vunpack.c.l.b16 %v947
    %v3418 = vunpack.c.l.b16 %v948
    %v3419 = vunpack.c.l.b16 %v949
    %v3420 = vunpack.c.l.b16 %v950
    %v3421 = vunpack.c.l.b16 %v951
    %v3422 = vunpack.c.l.b16 %v952
    %v3423 = vunpack.c.l.b16 %v953
    %v3424 = vunpack.c.l.b16 %v954
    %v3425 = vunpack.c.l.b16 %v955
    %v3426 = vunpack.c.l.b16 %v956
    %v3427 = vunpack.c.l.b16 %v957
    %v3428 = vunpack.c.l.b16 %v958
    %v3429 = vunpack.c.l.b16 %v959
    %v3430 = vunpack.c.l.b16 %v960
    %v3431 = vunpack.c.l.b16 %v961
    %v3432 = vunpack.c.l.b16 %v962
    %v3433 = vunpack.c.l.b16 %v963
    %v3434 = vunpack.c.l.b16 %v964
    %v3435 = vunpack.c.l.b16 %v965
    %v3436 = vunpack.c.l.b16 %v966
    %v3437 = vunpack.c.l.b16 %v967
    %v3438 = vunpack.c.l.b16 %v968
    %v3439 = vunpack.c.l.b16 %v969
    %v3440 = vunpack.c.l.b16 %v970
    %v3441 = vunpack.c.l.b16 %v971
    %v3442 = vunpack.c.l.b16 %v972
    %v3443 = vunpack.c.l.b16 %v973
    %v3444 = vunpack.c.l.b16 %v974
    %v3445 = vunpack.c.l.b16 %v975
    %v3446 = vunpack.c.l.b16 %v976
    %v3447 = vunpack.c.l.b16 %v977
    %v3448 = vunpack.c.l.b16 %v978
    %v3449 = vunpack.c.l.b16 %v979
    %v3450 = vunpack.c.l.b16 %v980
    %v3451 = vunpack.c.l.b16 %v981
    %v3452 = vunpack.c.l.b16 %v982
    %v3453 = vunpack.c.l.b16 %v983
    %v3454 = vunpack.c.l.b16 %v984
    %v3455 = vunpack.c.l.b16 %v985
    %v3456 = vunpack.c.l.b16 %v986
    %v3457 = vunpack.c.l.b16 %v987
    %v3458 = vunpack.c.l.b16 %v988
    %v3459 = vunpack.c.l.b16 %v989
    %v3460 = vunpack.c.l.b16 %v990
    %v3461 = vunpack.c.l.b16 %v991
    %v3462 = vunpack.c.l.b16 %v992
    %v3463 = vunpack.c.l.b16 %v993
    %v3464 = vunpack.c.l.b16 %v994
    %v3465 = vunpack.c.l.b16 %v995
    %v3466 = vunpack.c.l.b16 %v996
    %v3467 = vunpack.c.l.b16 %v997
    %v3468 = vunpack.c.l.b16 %v998
    %v3469 = vunpack.c.l.b16 %v999
    %v3470 = vunpack.c.l.b16 %v1000
    %v3471 = vunpack.c.l.b16 %v1001
    %v3472 = vunpack.c.l.b16 %v1002
    %v3473 = vunpack.c.l.b16 %v1003
    %v3474 = vunpack.c.l.b16 %v1004
    %v3475 = vunpack.c.l.b16 %v1005
    %v3476 = vunpack.c.l.b16 %v1006
    %v3477 = vunpack.c.l.b16 %v1007
    %v3478 = vunpack.c.l.b16 %v1008
    %v3479 = vunpack.c.l.b16 %v1009
    %v3480 = vunpack.c.l.b16 %v1010
    %v3481 = vunpack.c.l.b16 %v1011
    %v3482 = vunpack.c.l.b16 %v1012
    %v3483 = vunpack.c.l.b16 %v1013
    %v3484 = vunpack.c.l.b16 %v1014
    %v3485 = vunpack.c.l.b16 %v1015
    %v3486 = vunpack.c.l.b16 %v1016
    %v3487 = vunpack.c.l.b16 %v1017
    %v3488 = vunpack.c.l.b16 %v1018
    %v3489 = vunpack.c.l.b16 %v1019
    %v3490 = vunpack.c.l.b16 %v1020
    %v3491 = vunpack.c.l.b16 %v1021
    %v3492 = vunpack.c.l.b16 %v1022
    %v3493 = vunpack.c.l.b16 %v1023
    %v3494 = vunpack.c.l.b16 %v1024
    %v3495 = vunpack.c.l.b16 %v1025
    %v3496 = vunpack.c.l.b16 %v1026
    %v3497 = vunpack.c.l.b16 %v1027
    %v3498 = vunpack.c.l.b16 %v1028
    %v3499 = vunpack.c.l.b16 %v1029
    %v3500 = vunpack.c.l.b16 %v1030
    %v3501 = vunpack.c.l.b16 %v1031
    %v3502 = vunpack.c.l.b16 %v1032
    %v3503 = vunpack.c.l.b16 %v1033
    %v3504 = vunpack.c.l.b16 %v1034
    %v3505 = vunpack.c.l.b16 %v1035
    %v3506 = vunpack.c.l.b16 %v1036
    %v3507 = vunpack.c.l.b16 %v1037
    %v3508 = vunpack.c.l.b16 %v1038
    %v3509 = vunpack.c.l.b16 %v1039
    %v3510 = vunpack.c.l.b16 %v1040
    %v3511 = vunpack.c.l.b16 %v1041
    %v3512 = vunpack.c.l.b16 %v1042
    %v3513 = vunpack.c.l.b16 %v1043
    %v3514 = vunpack.c.l.b16 %v1044
    %v3515 = vunpack.c.l.b16 %v1045
    %v3516 = vunpack.c.l.b16 %v1046
    %v3517 = vunpack.c.l.b16 %v1047
    %v3518 = vunpack.c.l.b16 %v1048
    %v3519 = vunpack.c.l.b16 %v1049
    %v3520 = vunpack.c.l.b16 %v1050
    %v3521 = vunpack.c.l.b16 %v1051
    %v3522 = vunpack.c.l.b16 %v1052
    %v3523 = vunpack.c.l.b16 %v1053
    %v3524 = vunpack.c.l.b16 %v1054
    %v3525 = vunpack.c.l.b16 %v1055
    %v3526 = vunpack.c.l.b16 %v1056
    %v3527 = vunpack.c.l.b16 %v1057
    %v3528 = vunpack.c.l.b16 %v1058
    %v3529 = vunpack.c.l.b16 %v1059
    %v3530 = vunpack.c.l.b16 %v1060
    %v3531 = vunpack.c.l.b16 %v1061
    %v3532 = vunpack.c.l.b16 %v1062
    %v3533 = vunpack.c.l.b16 %v1063
    %v3534 = vunpack.c.l.b16 %v1064
    %v3535 = vunpack.c.l.b16 %v1065
    %v3536 = vunpack.c.l.b16 %v1066
    %v3537 = vunpack.c.l.b16 %v1067
    %v3538 = vunpack.c.l.b16 %v1068
    %v3539 = vunpack.c.l.b16 %v1069
    %v3540 = vunpack.c.l.b16 %v1070
    %v3541 = vunpack.c.l.b16 %v1071
    %v3542 = vunpack.c.l.b16 %v1072
    %v3543 = vunpack.c.l.b16 %v1073
    %v3544 = vunpack.c.l.b16 %v1074
    %v3545 = vunpack.c.l.b16 %v1075
    %v3546 = vunpack.c.l.b16 %v1076
    %v3547 = vunpack.c.l.b16 %v1077
    %v3548 = vunpack.c.l.b16 %v1078
    %v3549 = vunpack.c.l.b16 %v1079
    %v3550 = vunpack.c.l.b16 %v1080
    %v3551 = vunpack.c.l.b16 %v1081
    %v3552 = vunpack.c.l.b16 %v1082
    %v3553 = vunpack.c.l.b16 %v1083
    %v3554 = vunpack.c.l.b16 %v1084
    %v3555 = vunpack.c.l.b16 %v1085
    %v3556 = vunpack.c.l.b16 %v1086
    %v3557 = vunpack.c.l.b16 %v1087
    %v3558 = vunpack.c.l.b16 %v1088
    %v3559 = vunpack.c.l.b16 %v1089
    %v3560 = vunpack.c.l.b16 %v1090
    %v3561 = vunpack.c.l.b16 %v1091
    %v3562 = vunpack.c.l.b16 %v1092
    %v3563 = vunpack.c.l.b16 %v1093
    %v3564 = vunpack.c.l.b16 %v1094
    %v3565 = vunpack.c.l.b16 %v1095
    %v3566 = vunpack.c.l.b16 %v1096
    %v3567 = vunpack.c.l.b16 %v1097
    %v3568 = vunpack.c.l.b16 %v1098
    %v3569 = vunpack.c.l.b16 %v1099
    %v3570 = vunpack.c.l.b16 %v1100
    %v3571 = vunpack.c.l.b16 %v1101
    %v3572 = vunpack.c.l.b16 %v1102
    %v3573 = vunpack.c.l.b16 %v1103
    %v3574 = vunpack.c.l.b16 %v1104
    %v3575 = vunpack.c.l.b16 %v1105
    %v3576 = vunpack.c.l.b16 %v1106
    %v3577 = vunpack.c.l.b16 %v1107
    %v3578 = vunpack.c.l.b16 %v1108
    %v3579 = vunpack.c.l.b16 %v1109
    %v3580 = vunpack.c.l.b16 %v1110
    %v3581 = vunpack.c.l.b16 %v1111
    %v3582 = vunpack.c.l.b16 %v1112
    %v3583 = vunpack.c.l.b16 %v1113
    %v3584 = vunpack.c.l.b16 %v1114
    %v3585 = vunpack.c.l.b16 %v1115
    %v3586 = vunpack.c.l.b16 %v1116
    %v3587 = vunpack.c.l.b16 %v1117
    %v3588 = vunpack.c.l.b16 %v1118
    %v3589 = vunpack.c.l.b16 %v1119
    %v3590 = vunpack.c.l.b16 %v1120
    %v3591 = vunpack.c.l.b16 %v1121
    %v3592 = vunpack.c.l.b16 %v1122
    %v3593 = vunpack.c.l.b16 %v1123
    %v3594 = vunpack.c.l.b16 %v1124
    %v3595 = vunpack.c.l.b16 %v1125
    %v3596 = vunpack.c.l.b16 %v1126
    %v3597 = vunpack.c.l.b16 %v1127
    %v3598 = vunpack.c.l.b16 %v1128
    %v3599 = vunpack.c.l.b16 %v1129
    %v3600 = vunpack.c.l.b16 %v1130
    %v3601 = vunpack.c.l.b16 %v1131
    %v3602 = vunpack.c.l.b16 %v1132
    %v3603 = vunpack.c.l.b16 %v1133
    %v3604 = vunpack.c.l.b16 %v1134
    %v3605 = vunpack.c.l.b16 %v1135
    %v3606 = vunpack.c.l.b16 %v1136
    %v3607 = vunpack.c.l.b16 %v1137
    %v3608 = vunpack.c.l.b16 %v1138
    %v3609 = vunpack.c.l.b16 %v1139
    %v3610 = vunpack.c.l.b16 %v1140
    %v3611 = vunpack.c.l.b16 %v1141
    %v3612 = vunpack.c.l.b16 %v1142
    %v3613 = vunpack.c.l.b16 %v1143
    %v3614 = vunpack.c.l.b16 %v1144
    %v3615 = vunpack.c.l.b16 %v1145
    %v3616 = vunpack.c.l.b16 %v1146
    %v3617 = vunpack.c.l.b16 %v1147
    %v3618 = vunpack.c.l.b16 %v1148
    %v3619 = vunpack.c.l.b16 %v1149
    %v3620 = vunpack.c.l.b16 %v1150
    %v3621 = vunpack.c.l.b16 %v1151
    %v3622 = vunpack.c.l.b16 %v1152
    %v3623 = vunpack.c.l.b16 %v1153
    %v3624 = vunpack.c.l.b16 %v1154
    %v3625 = vunpack.c.l.b16 %v1155
    %v3626 = vunpack.c.l.b16 %v1156
    %v3627 = vunpack.c.l.b16 %v1157
    %v3628 = vunpack.c.l.b16 %v1158
    %v3629 = vunpack.c.l.b16 %v1159
    %v3630 = vunpack.c.l.b16 %v1160
    %v3631 = vunpack.c.l.b16 %v1161
    %v3632 = vunpack.c.l.b16 %v1162
    %v3633 = vunpack.c.l.b16 %v1163
    %v3634 = vunpack.c.l.b16 %v1164
    %v3635 = vunpack.c.l.b16 %v1165
    %v3636 = vunpack.c.l.b16 %v1166
    %v3637 = vunpack.c.l.b16 %v1167
    %v3638 = vunpack.c.l.b16 %v1168
    %v3639 = vunpack.c.l.b16 %v1169
    %v3640 = vunpack.c.l.b16 %v1170
    %v3641 = vunpack.c.l.b16 %v1171
    %v3642 = vunpack.c.l.b16 %v1172
    %v3643 = vunpack.c.l.b16 %v1173
    %v3644 = vunpack.c.l.b16 %v1174
    %v3645 = vunpack.c.l.b16 %v1175
    %v3646 = vunpack.c.l.b16 %v1176
    %v3647 = vunpack.c.l.b16 %v1177
    %v3648 = vunpack.c.l.b16 %v1178
    %v3649 = vunpack.c.l.b16 %v1179
    %v3650 = vunpack.c.l.b16 %v1180
    %v3651 = vunpack.c.l.b16 %v1181
    %v3652 = vpack.c.b16 %v2501, %v2500
    %v3653 = vpack.c.b16 %v2503, %v2502
    %v3654 = vpack.c.b16 %v2505, %v2504
    %v3655 = vpack.c.b16 %v2507, %v2506
    %v3656 = vpack.c.b16 %v2509, %v2508
    %v3657 = vpack.c.b16 %v2511, %v2510
    %v3658 = vpack.c.b16 %v2513, %v2512
    %v3659 = vpack.c.b16 %v2515, %v2514
    %v3660 = vpack.c.b16 %v2517, %v2516
    %v3661 = vpack.c.b16 %v2519, %v2518
    %v3662 = vpack.c.b16 %v2521, %v2520
    %v3663 = vpack.c.b16 %v2523, %v2522
    %v3664 = vpack.c.b16 %v2525, %v2524
    %v3665 = vpack.c.b16 %v2527, %v2526
    %v3666 = vpack.c.b16 %v2529, %v2528
    %v3667 = vpack.c.b16 %v2531, %v2530
    %v3668 = vpack.c.b16 %v2533, %v2532
    %v3669 = vpack.c.b16 %v2535, %v2534
    %v3670 = vpack.c.b16 %v2537, %v2536
    %v3671 = vpack.c.b16 %v2539, %v2538
    %v3672 = vpack.c.b16 %v2541, %v2540
    %v3673 = vpack.c.b16 %v2543, %v2542
    %v3674 = vpack.c.b16 %v2545, %v2544
    %v3675 = vpack.c.b16 %v2547, %v2546
    %v3676 = vpack.c.b16 %v2549, %v2548
    %v3677 = vpack.c.b16 %v2551, %v2550
    %v3678 = vpack.c.b16 %v2553, %v2552
    %v3679 = vpack.c.b16 %v2555, %v2554
    %v3680 = vpack.c.b16 %v2557, %v2556
    %v3681 = vpack.c.b16 %v2559, %v2558
    %v3682 = vpack.c.b16 %v2561, %v2560
    %v3683 = vpack.c.b16 %v2563, %v2562
    %v3684 = vpack.c.b16 %v2565, %v2564
    %v3685 = vpack.c.b16 %v2567, %v2566
    %v3686 = vpack.c.b16 %v2569, %v2568
    %v3687 = vpack.c.b16 %v2571, %v2570
    %v3688 = vpack.c.b16 %v2573, %v2572
    %v3689 = vpack.c.b16 %v2575, %v2574
    %v3690 = vpack.c.b16 %v2577, %v2576
    %v3691 = vpack.c.b16 %v2579, %v2578
    %v3692 = vpack.c.b16 %v2581, %v2580
    %v3693 = vpack.c.b16 %v2583, %v2582
    %v3694 = vpack.c.b16 %v2585, %v2584
    %v3695 = vpack.c.b16 %v2587, %v2586
    %v3696 = vpack.c.b16 %v2589, %v2588
    %v3697 = vpack.c.b16 %v2591, %v2590
    %v3698 = vpack.c.b16 %v2593, %v2592
    %v3699 = vpack.c.b16 %v2595, %v2594
    %v3700 = vpack.c.b16 %v2597, %v2596
    %v3701 = vpack.c.b16 %v2599, %v2598
    %v3702 = vpack.c.b16 %v2601, %v2600
    %v3703 = vpack.c.b16 %v2603, %v2602
    %v3704 = vpack.c.b16 %v2605, %v2604
    %v3705 = vpack.c.b16 %v2607, %v2606
    %v3706 = vpack.c.b16 %v2609, %v2608
    %v3707 = vpack.c.b16 %v2611, %v2610
    %v3708 = vpack.c.b16 %v2613, %v2612
    %v3709 = vpack.c.b16 %v2615, %v2614
    %v3710 = vpack.c.b16 %v2617, %v2616
    %v3711 = vpack.c.b16 %v2619, %v2618
    %v3712 = vpack.c.b16 %v2621, %v2620
    %v3713 = vpack.c.b16 %v2623, %v2622
    %v3714 = vpack.c.b16 %v2625, %v2624
    %v3715 = vpack.c.b16 %v2627, %v2626
    %v3716 = vpack.c.b16 %v2629, %v2628
    %v3717 = vpack.c.b16 %v2631, %v2630
    %v3718 = vpack.c.b16 %v2633, %v2632
    %v3719 = vpack.c.b16 %v2635, %v2634
    %v3720 = vpack.c.b16 %v2637, %v2636
    %v3721 = vpack.c.b16 %v2639, %v2638
    %v3722 = vpack.c.b16 %v2641, %v2640
    %v3723 = vpack.c.b16 %v2643, %v2642
    %v3724 = vpack.c.b16 %v2645, %v2644
    %v3725 = vpack.c.b16 %v2647, %v2646
    %v3726 = vpack.c.b16 %v2649, %v2648
    %v3727 = vpack.c.b16 %v2651, %v2650
    %v3728 = vpack.c.b16 %v2653, %v2652
    %v3729 = vpack.c.b16 %v2655, %v2654
    %v3730 = vpack.c.b16 %v2657, %v2656
    %v3731 = vpack.c.b16 %v2659, %v2658
    %v3732 = vpack.c.b16 %v2661, %v2660
    %v3733 = vpack.c.b16 %v2663, %v2662
    %v3734 = vpack.c.b16 %v2665, %v2664
    %v3735 = vpack.c.b16 %v2667, %v2666
    %v3736 = vpack.c.b16 %v2669, %v2668
    %v3737 = vpack.c.b16 %v2671, %v2670
    %v3738 = vpack.c.b16 %v2673, %v2672
    %v3739 = vpack.c.b16 %v2675, %v2674
    %v3740 = vpack.c.b16 %v2677, %v2676
    %v3741 = vpack.c.b16 %v2679, %v2678
    %v3742 = vpack.c.b16 %v2681, %v2680
    %v3743 = vpack.c.b16 %v2683, %v2682
    %v3744 = vpack.c.b16 %v2685, %v2684
    %v3745 = vpack.c.b16 %v2687, %v2686
    %v3746 = vpack.c.b16 %v2689, %v2688
    %v3747 = vpack.c.b16 %v2691, %v2690
    %v3748 = vpack.c.b16 %v2693, %v2692
    %v3749 = vpack.c.b16 %v2695, %v2694
    %v3750 = vpack.c.b16 %v2697, %v2696
    %v3751 = vpack.c.b16 %v2699, %v2698
    %v3752 = vpack.c.b16 %v2701, %v2700
    %v3753 = vpack.c.b16 %v2703, %v2702
    %v3754 = vpack.c.b16 %v2705, %v2704
    %v3755 = vpack.c.b16 %v2707, %v2706
    %v3756 = vpack.c.b16 %v2709, %v2708
    %v3757 = vpack.c.b16 %v2711, %v2710
    %v3758 = vpack.c.b16 %v2713, %v2712
    %v3759 = vpack.c.b16 %v2715, %v2714
    %v3760 = vpack.c.b16 %v2717, %v2716
    %v3761 = vpack.c.b16 %v2719, %v2718
    %v3762 = vpack.c.b16 %v2721, %v2720
    %v3763 = vpack.c.b16 %v2723, %v2722
    %v3764 = vpack.c.b16 %v2725, %v2724
    %v3765 = vpack.c.b16 %v2727, %v2726
    %v3766 = vpack.c.b16 %v2729, %v2728
    %v3767 = vpack.c.b16 %v2731, %v2730
    %v3768 = vpack.c.b16 %v2733, %v2732
    %v3769 = vpack.c.b16 %v2735, %v2734
    %v3770 = vpack.c.b16 %v2737, %v2736
    %v3771 = vpack.c.b16 %v2739, %v2738
    %v3772 = vpack.c.b16 %v2741, %v2740
    %v3773 = vpack.c.b16 %v2743, %v2742
    %v3774 = vpack.c.b16 %v2745, %v2744
    %v3775 = vpack.c.b16 %v2747, %v2746
    %v3776 = vpack.c.b16 %v2749, %v2748
    %v3777 = vpack.c.b16 %v2751, %v2750
    %v3778 = vpack.c.b16 %v2753, %v2752
    %v3779 = vpack.c.b16 %v2755, %v2754
    %v3780 = vpack.c.b16 %v2757, %v2756
    %v3781 = vpack.c.b16 %v2759, %v2758
    %v3782 = vpack.c.b16 %v2761, %v2760
    %v3783 = vpack.c.b16 %v2763, %v2762
    %v3784 = vpack.c.b16 %v2765, %v2764
    %v3785 = vpack.c.b16 %v2767, %v2766
    %v3786 = vpack.c.b16 %v2769, %v2768
    %v3787 = vpack.c.b16 %v2771, %v2770
    %v3788 = vpack.c.b16 %v2773, %v2772
    %v3789 = vpack.c.b16 %v2775, %v2774
    %v3790 = vpack.c.b16 %v2777, %v2776
    %v3791 = vpack.c.b16 %v2779, %v2778
    %v3792 = vpack.c.b16 %v2781, %v2780
    %v3793 = vpack.c.b16 %v2783, %v2782
    %v3794 = vpack.c.b16 %v2785, %v2784
    %v3795 = vpack.c.b16 %v2787, %v2786
    %v3796 = vpack.c.b16 %v2789, %v2788
    %v3797 = vpack.c.b16 %v2791, %v2790
    %v3798 = vpack.c.b16 %v2793, %v2792
    %v3799 = vpack.c.b16 %v2795, %v2794
    %v3800 = vpack.c.b16 %v2797, %v2796
    %v3801 = vpack.c.b16 %v2799, %v2798
    %v3802 = vpack.c.b16 %v2801, %v2800
    %v3803 = vpack.c.b16 %v2803, %v2802
    %v3804 = vpack.c.b16 %v2805, %v2804
    %v3805 = vpack.c.b16 %v2807, %v2806
    %v3806 = vpack.c.b16 %v2809, %v2808
    %v3807 = vpack.c.b16 %v2811, %v2810
    %v3808 = vpack.c.b16 %v2813, %v2812
    %v3809 = vpack.c.b16 %v2815, %v2814
    %v3810 = vpack.c.b16 %v2817, %v2816
    %v3811 = vpack.c.b16 %v2819, %v2818
    %v3812 = vpack.c.b16 %v2821, %v2820
    %v3813 = vpack.c.b16 %v2823, %v2822
    %v3814 = vpack.c.b16 %v2825, %v2824
    %v3815 = vpack.c.b16 %v2827, %v2826
    %v3816 = vpack.c.b16 %v2829, %v2828
    %v3817 = vpack.c.b16 %v2831, %v2830
    %v3818 = vpack.c.b16 %v2833, %v2832
    %v3819 = vpack.c.b16 %v2835, %v2834
    %v3820 = vpack.c.b16 %v2837, %v2836
    %v3821 = vpack.c.b16 %v2839, %v2838
    %v3822 = vpack.c.b16 %v2841, %v2840
    %v3823 = vpack.c.b16 %v2843, %v2842
    %v3824 = vpack.c.b16 %v2845, %v2844
    %v3825 = vpack.c.b16 %v2847, %v2846
    %v3826 = vpack.c.b16 %v2849, %v2848
    %v3827 = vpack.c.b16 %v2851, %v2850
    %v3828 = vpack.c.b16 %v2853, %v2852
    %v3829 = vpack.c.b16 %v2855, %v2854
    %v3830 = vpack.c.b16 %v2857, %v2856
    %v3831 = vpack.c.b16 %v2859, %v2858
    %v3832 = vpack.c.b16 %v2861, %v2860
    %v3833 = vpack.c.b16 %v2863, %v2862
    %v3834 = vpack.c.b16 %v2865, %v2864
    %v3835 = vpack.c.b16 %v2867, %v2866
    %v3836 = vpack.c.b16 %v2869, %v2868
    %v3837 = vpack.c.b16 %v2871, %v2870
    %v3838 = vpack.c.b16 %v2873, %v2872
    %v3839 = vpack.c.b16 %v2875, %v2874
    %v3840 = vpack.c.b16 %v2877, %v2876
    %v3841 = vpack.c.b16 %v2879, %v2878
    %v3842 = vpack.c.b16 %v2881, %v2880
    %v3843 = vpack.c.b16 %v2883, %v2882
    %v3844 = vpack.c.b16 %v2885, %v2884
    %v3845 = vpack.c.b16 %v2887, %v2886
    %v3846 = vpack.c.b16 %v2889, %v2888
    %v3847 = vpack.c.b16 %v2891, %v2890
    %v3848 = vpack.c.b16 %v2893, %v2892
    %v3849 = vpack.c.b16 %v2895, %v2894
    %v3850 = vpack.c.b16 %v2897, %v2896
    %v3851 = vpack.c.b16 %v2899, %v2898
    %v3852 = vpack.c.b16 %v2901, %v2900
    %v3853 = vpack.c.b16 %v2903, %v2902
    %v3854 = vpack.c.b16 %v2905, %v2904
    %v3855 = vpack.c.b16 %v2907, %v2906
    %v3856 = vpack.c.b16 %v2909, %v2908
    %v3857 = vpack.c.b16 %v2911, %v2910
    %v3858 = vpack.c.b16 %v2913, %v2912
    %v3859 = vpack.c.b16 %v2915, %v2914
    %v3860 = vpack.c.b16 %v2917, %v2916
    %v3861 = vpack.c.b16 %v2919, %v2918
    %v3862 = vpack.c.b16 %v2921, %v2920
    %v3863 = vpack.c.b16 %v2923, %v2922
    %v3864 = vpack.c.b16 %v2925, %v2924
    %v3865 = vpack.c.b16 %v2927, %v2926
    %v3866 = vpack.c.b16 %v2929, %v2928
    %v3867 = vpack.c.b16 %v2931, %v2930
    %v3868 = vpack.c.b16 %v2933, %v2932
    %v3869 = vpack.c.b16 %v2935, %v2934
    %v3870 = vpack.c.b16 %v2937, %v2936
    %v3871 = vpack.c.b16 %v2939, %v2938
    %v3872 = vpack.c.b16 %v2941, %v2940
    %v3873 = vpack.c.b16 %v2943, %v2942
    %v3874 = vpack.c.b16 %v2945, %v2944
    %v3875 = vpack.c.b16 %v2947, %v2946
    %v3876 = vpack.c.b16 %v2949, %v2948
    %v3877 = vpack.c.b16 %v2951, %v2950
    %v3878 = vpack.c.b16 %v2953, %v2952
    %v3879 = vpack.c.b16 %v2955, %v2954
    %v3880 = vpack.c.b16 %v2957, %v2956
    %v3881 = vpack.c.b16 %v2959, %v2958
    %v3882 = vpack.c.b16 %v2961, %v2960
    %v3883 = vpack.c.b16 %v2963, %v2962
    %v3884 = vpack.c.b16 %v2965, %v2964
    %v3885 = vpack.c.b16 %v2967, %v2966
    %v3886 = vpack.c.b16 %v2969, %v2968
    %v3887 = vpack.c.b16 %v2971, %v2970
    %v3888 = vpack.c.b16 %v2973, %v2972
    %v3889 = vpack.c.b16 %v2975, %v2974
    %v3890 = vpack.c.b16 %v2977, %v2976
    %v3891 = vpack.c.b16 %v2979, %v2978
    %v3892 = vpack.c.b16 %v2981, %v2980
    %v3893 = vpack.c.b16 %v2983, %v2982
    %v3894 = vpack.c.b16 %v2985, %v2984
    %v3895 = vpack.c.b16 %v2987, %v2986
    %v3896 = vpack.c.b16 %v2989, %v2988
    %v3897 = vpack.c.b16 %v2991, %v2990
    %v3898 = vpack.c.b16 %v2993, %v2992
    %v3899 = vpack.c.b16 %v2995, %v2994
    %v3900 = vpack.c.b16 %v2997, %v2996
    %v3901 = vpack.c.b16 %v2999, %v2998
    %v3902 = vpack.c.b16 %v3001, %v3000
    %v3903 = vpack.c.b16 %v3003, %v3002
    %v3904 = vpack.c.b16 %v3005, %v3004
    %v3905 = vpack.c.b16 %v3007, %v3006
    %v3906 = vpack.c.b16 %v3009, %v3008
    %v3907 = vpack.c.b16 %v3011, %v3010
    %v3908 = vpack.c.b16 %v3013, %v3012
    %v3909 = vpack.c.b16 %v3015, %v3014
    %v3910 = vpack.c.b16 %v3017, %v3016
    %v3911 = vpack.c.b16 %v3019, %v3018
    %v3912 = vpack.c.b16 %v3021, %v3020
    %v3913 = vpack.c.b16 %v3023, %v3022
    %v3914 = vpack.c.b16 %v3025, %v3024
    %v3915 = vpack.c.b16 %v3027, %v3026
    %v3916 = vpack.c.b16 %v3029, %v3028
    %v3917 = vpack.c.b16 %v3031, %v3030
    %v3918 = vpack.c.b16 %v3033, %v3032
    %v3919 = vpack.c.b16 %v3035, %v3034
    %v3920 = vpack.c.b16 %v3037, %v3036
    %v3921 = vpack.c.b16 %v3039, %v3038
    %v3922 = vpack.c.b16 %v3041, %v3040
    %v3923 = vpack.c.b16 %v3043, %v3042
    %v3924 = vpack.c.b16 %v3045, %v3044
    %v3925 = vpack.c.b16 %v3047, %v3046
    %v3926 = vpack.c.b16 %v3049, %v3048
    %v3927 = vpack.c.b16 %v3051, %v3050
    %v3928 = vpack.c.b16 %v3053, %v3052
    %v3929 = vpack.c.b16 %v3055, %v3054
    %v3930 = vpack.c.b16 %v3057, %v3056
    %v3931 = vpack.c.b16 %v3059, %v3058
    %v3932 = vpack.c.b16 %v3061, %v3060
    %v3933 = vpack.c.b16 %v3063, %v3062
    %v3934 = vpack.c.b16 %v3065, %v3064
    %v3935 = vpack.c.b16 %v3067, %v3066
    %v3936 = vpack.c.b16 %v3069, %v3068
    %v3937 = vpack.c.b16 %v3071, %v3070
    %v3938 = vpack.c.b16 %v3073, %v3072
    %v3939 = vpack.c.b16 %v3075, %v3074
    %v3940 = vpack.c.b16 %v3077, %v3076
    %v3941 = vpack.c.b16 %v3079, %v3078
    %v3942 = vpack.c.b16 %v3081, %v3080
    %v3943 = vpack.c.b16 %v3083, %v3082
    %v3944 = vpack.c.b16 %v3085, %v3084
    %v3945 = vpack.c.b16 %v3087, %v3086
    %v3946 = vpack.c.b16 %v3089, %v3088
    %v3947 = vpack.c.b16 %v3091, %v3090
    %v3948 = vpack.c.b16 %v3093, %v3092
    %v3949 = vpack.c.b16 %v3095, %v3094
    %v3950 = vpack.c.b16 %v3097, %v3096
    %v3951 = vpack.c.b16 %v3099, %v3098
    %v3952 = vpack.c.b16 %v3101, %v3100
    %v3953 = vpack.c.b16 %v3103, %v3102
    %v3954 = vpack.c.b16 %v3105, %v3104
    %v3955 = vpack.c.b16 %v3107, %v3106
    %v3956 = vpack.c.b16 %v3109, %v3108
    %v3957 = vpack.c.b16 %v3111, %v3110
    %v3958 = vpack.c.b16 %v3113, %v3112
    %v3959 = vpack.c.b16 %v3115, %v3114
    %v3960 = vpack.c.b16 %v3117, %v3116
    %v3961 = vpack.c.b16 %v3119, %v3118
    %v3962 = vpack.c.b16 %v3121, %v3120
    %v3963 = vpack.c.b16 %v3123, %v3122
    %v3964 = vpack.c.b16 %v3125, %v3124
    %v3965 = vpack.c.b16 %v3127, %v3126
    %v3966 = vpack.c.b16 %v3129, %v3128
    %v3967 = vpack.c.b16 %v3131, %v3130
    %v3968 = vpack.c.b16 %v3133, %v3132
    %v3969 = vpack.c.b16 %v3135, %v3134
    %v3970 = vpack.c.b16 %v3137, %v3136
    %v3971 = vpack.c.b16 %v3139, %v3138
    %v3972 = vpack.c.b16 %v3141, %v3140
    %v3973 = vpack.c.b16 %v3143, %v3142
    %v3974 = vpack.c.b16 %v3145, %v3144
    %v3975 = vpack.c.b16 %v3147, %v3146
    %v3976 = vpack.c.b16 %v3149, %v3148
    %v3977 = vpack.c.b16 %v3151, %v3150
    %v3978 = vpack.c.b16 %v3153, %v3152
    %v3979 = vpack.c.b16 %v3155, %v3154
    %v3980 = vpack.c.b16 %v3157, %v3156
    %v3981 = vpack.c.b16 %v3159, %v3158
    %v3982 = vpack.c.b16 %v3161, %v3160
    %v3983 = vpack.c.b16 %v3163, %v3162
    %v3984 = vpack.c.b16 %v3165, %v3164
    %v3985 = vpack.c.b16 %v3167, %v3166
    %v3986 = vpack.c.b16 %v3169, %v3168
    %v3987 = vpack.c.b16 %v3171, %v3170
    %v3988 = vpack.c.b16 %v3173, %v3172
    %v3989 = vpack.c.b16 %v3175, %v3174
    %v3990 = vpack.c.b16 %v3177, %v3176
    %v3991 = vpack.c.b16 %v3179, %v3178
    %v3992 = vpack.c.b16 %v3181, %v3180
    %v3993 = vpack.c.b16 %v3183, %v3182
    %v3994 = vpack.c.b16 %v3185, %v3184
    %v3995 = vpack.c.b16 %v3187, %v3186
    %v3996 = vpack.c.b16 %v3189, %v3188
    %v3997 = vpack.c.b16 %v3191, %v3190
    %v3998 = vpack.c.b16 %v3193, %v3192
    %v3999 = vpack.c.b16 %v3195, %v3194
    %v4000 = vpack.c.b16 %v3197, %v3196
    %v4001 = vpack.c.b16 %v3199, %v3198
    %v4002 = vpack.c.b16 %v3201, %v3200
    %v4003 = vpack.c.b16 %v3203, %v3202
    %v4004 = vpack.c.b16 %v3205, %v3204
    %v4005 = vpack.c.b16 %v3207, %v3206
    %v4006 = vpack.c.b16 %v3209, %v3208
    %v4007 = vpack.c.b16 %v3211, %v3210
    %v4008 = vpack.c.b16 %v3213, %v3212
    %v4009 = vpack.c.b16 %v3215, %v3214
    %v4010 = vpack.c.b16 %v3217, %v3216
    %v4011 = vpack.c.b16 %v3219, %v3218
    %v4012 = vpack.c.b16 %v3221, %v3220
    %v4013 = vpack.c.b16 %v3223, %v3222
    %v4014 = vpack.c.b16 %v3225, %v3224
    %v4015 = vpack.c.b16 %v3227, %v3226
    %v4016 = vpack.c.b16 %v3229, %v3228
    %v4017 = vpack.c.b16 %v3231, %v3230
    %v4018 = vpack.c.b16 %v3233, %v3232
    %v4019 = vpack.c.b16 %v3235, %v3234
    %v4020 = vpack.c.b16 %v3237, %v3236
    %v4021 = vpack.c.b16 %v3239, %v3238
    %v4022 = vpack.c.b16 %v3241, %v3240
    %v4023 = vpack.c.b16 %v3243, %v3242
    %v4024 = vpack.c.b16 %v3245, %v3244
    %v4025 = vpack.c.b16 %v3247, %v3246
    %v4026 = vpack.c.b16 %v3249, %v3248
    %v4027 = vpack.c.b16 %v3251, %v3250
    %v4028 = vpack.c.b16 %v3253, %v3252
    %v4029 = vpack.c.b16 %v3255, %v3254
    %v4030 = vpack.c.b16 %v3257, %v3256
    %v4031 = vpack.c.b16 %v3259, %v3258
    %v4032 = vpack.c.b16 %v3261, %v3260
    %v4033 = vpack.c.b16 %v3263, %v3262
    %v4034 = vpack.c.b16 %v3265, %v3264
    %v4035 = vpack.c.b16 %v3267, %v3266
    %v4036 = vpack.c.b16 %v3269, %v3268
    %v4037 = vpack.c.b16 %v3271, %v3270
    %v4038 = vpack.c.b16 %v3273, %v3272
    %v4039 = vpack.c.b16 %v3275, %v3274
    %v4040 = vpack.c.b16 %v3277, %v3276
    %v4041 = vpack.c.b16 %v3279, %v3278
    %v4042 = vpack.c.b16 %v3281, %v3280
    %v4043 = vpack.c.b16 %v3283, %v3282
    %v4044 = vpack.c.b16 %v3285, %v3284
    %v4045 = vpack.c.b16 %v3287, %v3286
    %v4046 = vpack.c.b16 %v3289, %v3288
    %v4047 = vpack.c.b16 %v3291, %v3290
    %v4048 = vpack.c.b16 %v3293, %v3292
    %v4049 = vpack.c.b16 %v3295, %v3294
    %v4050 = vpack.c.b16 %v3297, %v3296
    %v4051 = vpack.c.b16 %v3299, %v3298
    %v4052 = vpack.c.b16 %v3301, %v3300
    %v4053 = vpack.c.b16 %v3303, %v3302
    %v4054 = vpack.c.b16 %v3305, %v3304
    %v4055 = vpack.c.b16 %v3307, %v3306
    %v4056 = vpack.c.b16 %v3309, %v3308
    %v4057 = vpack.c.b16 %v3311, %v3310
    %v4058 = vpack.c.b16 %v3313, %v3312
    %v4059 = vpack.c.b16 %v3315, %v3314
    %v4060 = vpack.c.b16 %v3317, %v3316
    %v4061 = vpack.c.b16 %v3319, %v3318
    %v4062 = vpack.c.b16 %v3321, %v3320
    %v4063 = vpack.c.b16 %v3323, %v3322
    %v4064 = vpack.c.b16 %v3325, %v3324
    %v4065 = vpack.c.b16 %v3327, %v3326
    %v4066 = vpack.c.b16 %v3329, %v3328
    %v4067 = vpack.c.b16 %v3331, %v3330
    %v4068 = vpack.c.b16 %v3333, %v3332
    %v4069 = vpack.c.b16 %v3335, %v3334
    %v4070 = vpack.c.b16 %v3337, %v3336
    %v4071 = vpack.c.b16 %v3339, %v3338
    %v4072 = vpack.c.b16 %v3341, %v3340
    %v4073 = vpack.c.b16 %v3343, %v3342
    %v4074 = vpack.c.b16 %v3345, %v3344
    %v4075 = vpack.c.b16 %v3347, %v3346
    %v4076 = vpack.c.b16 %v3349, %v3348
    %v4077 = vpack.c.b16 %v3351, %v3350
    %v4078 = vpack.c.b16 %v3353, %v3352
    %v4079 = vpack.c.b16 %v3355, %v3354
    %v4080 = vpack.c.b16 %v3357, %v3356
    %v4081 = vpack.c.b16 %v3359, %v3358
    %v4082 = vpack.c.b16 %v3361, %v3360
    %v4083 = vpack.c.b16 %v3363, %v3362
    %v4084 = vpack.c.b16 %v3365, %v3364
    %v4085 = vpack.c.b16 %v3367, %v3366
    %v4086 = vpack.c.b16 %v3369, %v3368
    %v4087 = vpack.c.b16 %v3371, %v3370
    %v4088 = vpack.c.b16 %v3373, %v3372
    %v4089 = vpack.c.b16 %v3375, %v3374
    %v4090 = vpack.c.b16 %v3377, %v3376
    %v4091 = vpack.c.b16 %v3379, %v3378
    %v4092 = vpack.c.b16 %v3381, %v3380
    %v4093 = vpack.c.b16 %v3383, %v3382
    %v4094 = vpack.c.b16 %v3385, %v3384
    %v4095 = vpack.c.b16 %v3387, %v3386
    %v4096 = vpack.c.b16 %v3389, %v3388
    %v4097 = vpack.c.b16 %v3391, %v3390
    %v4098 = vpack.c.b16 %v3393, %v3392
    %v4099 = vpack.c.b16 %v3395, %v3394
    %v4100 = vpack.c.b16 %v3397, %v3396
    %v4101 = vpack.c.b16 %v3399, %v3398
    %v4102 = vpack.c.b16 %v3401, %v3400
    %v4103 = vpack.c.b16 %v3403, %v3402
    %v4104 = vpack.c.b16 %v3405, %v3404
    %v4105 = vpack.c.b16 %v3407, %v3406
    %v4106 = vpack.c.b16 %v3409, %v3408
    %v4107 = vpack.c.b16 %v3411, %v3410
    %v4108 = vpack.c.b16 %v3413, %v3412
    %v4109 = vpack.c.b16 %v3415, %v3414
    %v4110 = vpack.c.b16 %v3417, %v3416
    %v4111 = vpack.c.b16 %v3419, %v3418
    %v4112 = vpack.c.b16 %v3421, %v3420
    %v4113 = vpack.c.b16 %v3423, %v3422
    %v4114 = vpack.c.b16 %v3425, %v3424
    %v4115 = vpack.c.b16 %v3427, %v3426
    %v4116 = vpack.c.b16 %v3429, %v3428
    %v4117 = vpack.c.b16 %v3431, %v3430
    %v4118 = vpack.c.b16 %v3433, %v3432
    %v4119 = vpack.c.b16 %v3435, %v3434
    %v4120 = vpack.c.b16 %v3437, %v3436
    %v4121 = vpack.c.b16 %v3439, %v3438
    %v4122 = vpack.c.b16 %v3441, %v3440
    %v4123 = vpack.c.b16 %v3443, %v3442
    %v4124 = vpack.c.b16 %v3445, %v3444
    %v4125 = vpack.c.b16 %v3447, %v3446
    %v4126 = vpack.c.b16 %v3449, %v3448
    %v4127 = vpack.c.b16 %v3451, %v3450
    %v4128 = vpack.c.b16 %v3453, %v3452
    %v4129 = vpack.c.b16 %v3455, %v3454
    %v4130 = vpack.c.b16 %v3457, %v3456
    %v4131 = vpack.c.b16 %v3459, %v3458
    %v4132 = vpack.c.b16 %v3461, %v3460
    %v4133 = vpack.c.b16 %v3463, %v3462
    %v4134 = vpack.c.b16 %v3465, %v3464
    %v4135 = vpack.c.b16 %v3467, %v3466
    %v4136 = vpack.c.b16 %v3469, %v3468
    %v4137 = vpack.c.b16 %v3471, %v3470
    %v4138 = vpack.c.b16 %v3473, %v3472
    %v4139 = vpack.c.b16 %v3475, %v3474
    %v4140 = vpack.c.b16 %v3477, %v3476
    %v4141 = vpack.c.b16 %v3479, %v3478
    %v4142 = vpack.c.b16 %v3481, %v3480
    %v4143 = vpack.c.b16 %v3483, %v3482
    %v4144 = vpack.c.b16 %v3485, %v3484
    %v4145 = vpack.c.b16 %v3487, %v3486
    %v4146 = vpack.c.b16 %v3489, %v3488
    %v4147 = vpack.c.b16 %v3491, %v3490
    %v4148 = vpack.c.b16 %v3493, %v3492
    %v4149 = vpack.c.b16 %v3495, %v3494
    %v4150 = vpack.c.b16 %v3497, %v3496
    %v4151 = vpack.c.b16 %v3499, %v3498
    %v4152 = vpack.c.b16 %v3501, %v3500
    %v4153 = vpack.c.b16 %v3503, %v3502
    %v4154 = vpack.c.b16 %v3505, %v3504
    %v4155 = vpack.c.b16 %v3507, %v3506
    %v4156 = vpack.c.b16 %v3509, %v3508
    %v4157 = vpack.c.b16 %v3511, %v3510
    %v4158 = vpack.c.b16 %v3513, %v3512
    %v4159 = vpack.c.b16 %v3515, %v3514
    %v4160 = vpack.c.b16 %v3517, %v3516
    %v4161 = vpack.c.b16 %v3519, %v3518
    %v4162 = vpack.c.b16 %v3521, %v3520
    %v4163 = vpack.c.b16 %v3523, %v3522
    %v4164 = vpack.c.b16 %v3525, %v3524
    %v4165 = vpack.c.b16 %v3527, %v3526
    %v4166 = vpack.c.b16 %v3529, %v3528
    %v4167 = vpack.c.b16 %v3531, %v3530
    %v4168 = vpack.c.b16 %v3533, %v3532
    %v4169 = vpack.c.b16 %v3535, %v3534
    %v4170 = vpack.c.b16 %v3537, %v3536
    %v4171 = vpack.c.b16 %v3539, %v3538
    %v4172 = vpack.c.b16 %v3541, %v3540
    %v4173 = vpack.c.b16 %v3543, %v3542
    %v4174 = vpack.c.b16 %v3545, %v3544
    %v4175 = vpack.c.b16 %v3547, %v3546
    %v4176 = vpack.c.b16 %v3549, %v3548
    %v4177 = vpack.c.b16 %v3551, %v3550
    %v4178 = vpack.c.b16 %v3553, %v3552
    %v4179 = vpack.c.b16 %v3555, %v3554
    %v4180 = vpack.c.b16 %v3557, %v3556
    %v4181 = vpack.c.b16 %v3559, %v3558
    %v4182 = vpack.c.b16 %v3561, %v3560
    %v4183 = vpack.c.b16 %v3563, %v3562
    %v4184 = vpack.c.b16 %v3565, %v3564
    %v4185 = vpack.c.b16 %v3567, %v3566
    %v4186 = vpack.c.b16 %v3569, %v3568
    %v4187 = vpack.c.b16 %v3571, %v3570
    %v4188 = vpack.c.b16 %v3573, %v3572
    %v4189 = vpack.c.b16 %v3575, %v3574
    %v4190 = vpack.c.b16 %v3577, %v3576
    %v4191 = vpack.c.b16 %v3579, %v3578
    %v4192 = vpack.c.b16 %v3581, %v3580
    %v4193 = vpack.c.b16 %v3583, %v3582
    %v4194 = vpack.c.b16 %v3585, %v3584
    %v4195 = vpack.c.b16 %v3587, %v3586
    %v4196 = vpack.c.b16 %v3589, %v3588
    %v4197 = vpack.c.b16 %v3591, %v3590
    %v4198 = vpack.c.b16 %v3593, %v3592
    %v4199 = vpack.c.b16 %v3595, %v3594
    %v4200 = vpack.c.b16 %v3597, %v3596
    %v4201 = vpack.c.b16 %v3599, %v3598
    %v4202 = vpack.c.b16 %v3601, %v3600
    %v4203 = vpack.c.b16 %v3603, %v3602
    %v4204 = vpack.c.b16 %v3605, %v3604
    %v4205 = vpack.c.b16 %v3607, %v3606
    %v4206 = vpack.c.b16 %v3609, %v3608
    %v4207 = vpack.c.b16 %v3611, %v3610
    %v4208 = vpack.c.b16 %v3613, %v3612
    %v4209 = vpack.c.b16 %v3615, %v3614
    %v4210 = vpack.c.b16 %v3617, %v3616
    %v4211 = vpack.c.b16 %v3619, %v3618
    %v4212 = vpack.c.b16 %v3621, %v3620
    %v4213 = vpack.c.b16 %v3623, %v3622
    %v4214 = vpack.c.b16 %v3625, %v3624
    %v4215 = vpack.c.b16 %v3627, %v3626
    %v4216 = vpack.c.b16 %v3629, %v3628
    %v4217 = vpack.c.b16 %v3631, %v3630
    %v4218 = vpack.c.b16 %v3633, %v3632
    %v4219 = vpack.c.b16 %v3635, %v3634
    %v4220 = vpack.c.b16 %v3637, %v3636
    %v4221 = vpack.c.b16 %v3639, %v3638
    %v4222 = vpack.c.b16 %v3641, %v3640
    %v4223 = vpack.c.b16 %v3643, %v3642
    %v4224 = vpack.c.b16 %v3645, %v3644
    %v4225 = vpack.c.b16 %v3647, %v3646
    %v4226 = vpack.c.b16 %v3649, %v3648
    %v4227 = vpack.c.b16 %v3651, %v3650
    %4804 = vmatpush.bf16.msra.mxu0 %v3659
    %4805 = vmatpush.bf16.msra.mxu0 %v3658
    %4806 = vmatpush.bf16.msra.mxu0 %v3657
    %4807 = vmatpush.bf16.msra.mxu0 %v3656
    %4808 = vmatpush.bf16.msra.mxu0 %v3655
    %4809 = vmatpush.bf16.msra.mxu0 %v3654
    %4810 = vmatpush.bf16.msra.mxu0 %v3653
    %4811 = vmatpush.bf16.msra.mxu0 %v3652
    %4812 = vmatmul.bf16.gmra.mxu0 %v1188
    %v4813 = vpop.f32.mrf.mxu0
    %v4814 = vadd.f32 %v1184, %v4813
    %v4815 = vpop.f32.mrf.mxu0
    %4816 = vdwg.mxu0
    %4817 = vmatpush.bf16.msra.mxu0 %v3667
    %4818 = vmatpush.bf16.msra.mxu0 %v3666
    %4819 = vmatpush.bf16.msra.mxu0 %v3665
    %4820 = vmatpush.bf16.msra.mxu0 %v3664
    %4821 = vmatpush.bf16.msra.mxu0 %v3663
    %4822 = vmatpush.bf16.msra.mxu0 %v3662
    %4823 = vmatpush.bf16.msra.mxu0 %v3661
    %4824 = vmatpush.bf16.msra.mxu0 %v3660
    %4825 = vmatmul.bf16.gmra.mxu0 %v1189
    %v4826 = vpop.f32.mrf.mxu0
    %v4827 = vadd.f32 %v4814, %v4826
    %v4828 = vpop.f32.mrf.mxu0
    %4829 = vdwg.mxu0
    %4830 = vmatpush.bf16.msra.mxu0 %v3675
    %4831 = vmatpush.bf16.msra.mxu0 %v3674
    %4832 = vmatpush.bf16.msra.mxu0 %v3673
    %4833 = vmatpush.bf16.msra.mxu0 %v3672
    %4834 = vmatpush.bf16.msra.mxu0 %v3671
    %4835 = vmatpush.bf16.msra.mxu0 %v3670
    %4836 = vmatpush.bf16.msra.mxu0 %v3669
    %4837 = vmatpush.bf16.msra.mxu0 %v3668
    %4838 = vmatmul.bf16.gmra.mxu0 %v1190
    %v4839 = vpop.f32.mrf.mxu0
    %v4840 = vadd.f32 %v4827, %v4839
    %v4841 = vpop.f32.mrf.mxu0
    %4842 = vdwg.mxu0
    %4843 = vmatpush.bf16.msra.mxu0 %v3683
    %4844 = vmatpush.bf16.msra.mxu0 %v3682
    %4845 = vmatpush.bf16.msra.mxu0 %v3681
    %4846 = vmatpush.bf16.msra.mxu0 %v3680
    %4847 = vmatpush.bf16.msra.mxu0 %v3679
    %4848 = vmatpush.bf16.msra.mxu0 %v3678
    %4849 = vmatpush.bf16.msra.mxu0 %v3677
    %4850 = vmatpush.bf16.msra.mxu0 %v3676
    %4851 = vmatmul.bf16.gmra.mxu0 %v1191
    %v4852 = vpop.f32.mrf.mxu0
    %v4853 = vadd.f32 %v4840, %v4852
    %v4854 = vpop.f32.mrf.mxu0
    %4855 = vdwg.mxu0
    %4856 = vmatpush.bf16.msra.mxu0 %v3691
    %4857 = vmatpush.bf16.msra.mxu0 %v3690
    %4858 = vmatpush.bf16.msra.mxu0 %v3689
    %4859 = vmatpush.bf16.msra.mxu0 %v3688
    %4860 = vmatpush.bf16.msra.mxu0 %v3687
    %4861 = vmatpush.bf16.msra.mxu0 %v3686
    %4862 = vmatpush.bf16.msra.mxu0 %v3685
    %4863 = vmatpush.bf16.msra.mxu0 %v3684
    %4864 = vmatmul.bf16.gmra.mxu0 %v1192
    %v4865 = vpop.f32.mrf.mxu0
    %v4866 = vadd.f32 %v4853, %v4865
    %v4867 = vpop.f32.mrf.mxu0
    %4868 = vdwg.mxu0
    %4869 = vmatpush.bf16.msra.mxu0 %v3699
    %4870 = vmatpush.bf16.msra.mxu0 %v3698
    %4871 = vmatpush.bf16.msra.mxu0 %v3697
    %4872 = vmatpush.bf16.msra.mxu0 %v3696
    %4873 = vmatpush.bf16.msra.mxu0 %v3695
    %4874 = vmatpush.bf16.msra.mxu0 %v3694
    %4875 = vmatpush.bf16.msra.mxu0 %v3693
    %4876 = vmatpush.bf16.msra.mxu0 %v3692
    %4877 = vmatmul.bf16.gmra.mxu0 %v1193
    %v4878 = vpop.f32.mrf.mxu0
    %v4879 = vadd.f32 %v4866, %v4878
    %v4880 = vpop.f32.mrf.mxu0
    %4881 = vdwg.mxu0
    %4882 = vmatpush.bf16.msra.mxu0 %v3707
    %4883 = vmatpush.bf16.msra.mxu0 %v3706
    %4884 = vmatpush.bf16.msra.mxu0 %v3705
    %4885 = vmatpush.bf16.msra.mxu0 %v3704
    %4886 = vmatpush.bf16.msra.mxu0 %v3703
    %4887 = vmatpush.bf16.msra.mxu0 %v3702
    %4888 = vmatpush.bf16.msra.mxu0 %v3701
    %4889 = vmatpush.bf16.msra.mxu0 %v3700
    %4890 = vmatmul.bf16.gmra.mxu0 %v1194
    %v4891 = vpop.f32.mrf.mxu0
    %v4892 = vadd.f32 %v4879, %v4891
    %v4893 = vpop.f32.mrf.mxu0
    %4894 = vdwg.mxu0
    %4895 = vmatpush.bf16.msra.mxu0 %v3715
    %4896 = vmatpush.bf16.msra.mxu0 %v3714
    %4897 = vmatpush.bf16.msra.mxu0 %v3713
    %4898 = vmatpush.bf16.msra.mxu0 %v3712
    %4899 = vmatpush.bf16.msra.mxu0 %v3711
    %4900 = vmatpush.bf16.msra.mxu0 %v3710
    %4901 = vmatpush.bf16.msra.mxu0 %v3709
    %4902 = vmatpush.bf16.msra.mxu0 %v3708
    %4903 = vmatmul.bf16.gmra.mxu0 %v1195
    %v4904 = vpop.f32.mrf.mxu0
    %v4905 = vadd.f32 %v4892, %v4904
    %v4906 = vpop.f32.mrf.mxu0
    %4907 = vdwg.mxu0
    %4908 = vmatpush.bf16.msra.mxu0 %v3723
    %4909 = vmatpush.bf16.msra.mxu0 %v3722
    %4910 = vmatpush.bf16.msra.mxu0 %v3721
    %4911 = vmatpush.bf16.msra.mxu0 %v3720
    %4912 = vmatpush.bf16.msra.mxu0 %v3719
    %4913 = vmatpush.bf16.msra.mxu0 %v3718
    %4914 = vmatpush.bf16.msra.mxu0 %v3717
    %4915 = vmatpush.bf16.msra.mxu0 %v3716
    %4916 = vmatmul.bf16.gmra.mxu0 %v1198
    %v4917 = vpop.f32.mrf.mxu0
    %v4918 = vadd.f32 %v4905, %v4917
    %v4919 = vpop.f32.mrf.mxu0
    %4920 = vdwg.mxu0
    %4921 = vmatpush.bf16.msra.mxu0 %v3731
    %4922 = vmatpush.bf16.msra.mxu0 %v3730
    %4923 = vmatpush.bf16.msra.mxu0 %v3729
    %4924 = vmatpush.bf16.msra.mxu0 %v3728
    %4925 = vmatpush.bf16.msra.mxu0 %v3727
    %4926 = vmatpush.bf16.msra.mxu0 %v3726
    %4927 = vmatpush.bf16.msra.mxu0 %v3725
    %4928 = vmatpush.bf16.msra.mxu0 %v3724
    %4929 = vmatmul.bf16.gmra.mxu0 %v1199
    %v4930 = vpop.f32.mrf.mxu0
    %v4931 = vadd.f32 %v4918, %v4930
    %v4932 = vpop.f32.mrf.mxu0
    %4933 = vdwg.mxu0
    %4934 = vmatpush.bf16.msra.mxu0 %v3739
    %4935 = vmatpush.bf16.msra.mxu0 %v3738
    %4936 = vmatpush.bf16.msra.mxu0 %v3737
    %4937 = vmatpush.bf16.msra.mxu0 %v3736
    %4938 = vmatpush.bf16.msra.mxu0 %v3735
    %4939 = vmatpush.bf16.msra.mxu0 %v3734
    %4940 = vmatpush.bf16.msra.mxu0 %v3733
    %4941 = vmatpush.bf16.msra.mxu0 %v3732
    %4942 = vmatmul.bf16.gmra.mxu0 %v1200
    %v4943 = vpop.f32.mrf.mxu0
    %v4944 = vadd.f32 %v4931, %v4943
    %v4945 = vpop.f32.mrf.mxu0
    %4946 = vdwg.mxu0
    %4947 = vmatpush.bf16.msra.mxu0 %v3747
    %4948 = vmatpush.bf16.msra.mxu0 %v3746
    %4949 = vmatpush.bf16.msra.mxu0 %v3745
    %4950 = vmatpush.bf16.msra.mxu0 %v3744
    %4951 = vmatpush.bf16.msra.mxu0 %v3743
    %4952 = vmatpush.bf16.msra.mxu0 %v3742
    %4953 = vmatpush.bf16.msra.mxu0 %v3741
    %4954 = vmatpush.bf16.msra.mxu0 %v3740
    %4955 = vmatmul.bf16.gmra.mxu0 %v1201
    %v4956 = vpop.f32.mrf.mxu0
    %v4957 = vadd.f32 %v4944, %v4956
    %v4958 = vpop.f32.mrf.mxu0
    %4959 = vdwg.mxu0
    %4960 = vmatpush.bf16.msra.mxu0 %v3755
    %4961 = vmatpush.bf16.msra.mxu0 %v3754
    %4962 = vmatpush.bf16.msra.mxu0 %v3753
    %4963 = vmatpush.bf16.msra.mxu0 %v3752
    %4964 = vmatpush.bf16.msra.mxu0 %v3751
    %4965 = vmatpush.bf16.msra.mxu0 %v3750
    %4966 = vmatpush.bf16.msra.mxu0 %v3749
    %4967 = vmatpush.bf16.msra.mxu0 %v3748
    %4968 = vmatmul.bf16.gmra.mxu0 %v1202
    %v4969 = vpop.f32.mrf.mxu0
    %v4970 = vadd.f32 %v4957, %v4969
    %v4971 = vpop.f32.mrf.mxu0
    %4972 = vdwg.mxu0
    %4973 = vmatpush.bf16.msra.mxu0 %v3763
    %4974 = vmatpush.bf16.msra.mxu0 %v3762
    %4975 = vmatpush.bf16.msra.mxu0 %v3761
    %4976 = vmatpush.bf16.msra.mxu0 %v3760
    %4977 = vmatpush.bf16.msra.mxu0 %v3759
    %4978 = vmatpush.bf16.msra.mxu0 %v3758
    %4979 = vmatpush.bf16.msra.mxu0 %v3757
    %4980 = vmatpush.bf16.msra.mxu0 %v3756
    %4981 = vmatmul.bf16.gmra.mxu0 %v1203
    %v4982 = vpop.f32.mrf.mxu0
    %v4983 = vadd.f32 %v4970, %v4982
    %v4984 = vpop.f32.mrf.mxu0
    %4985 = vdwg.mxu0
    %4986 = vmatpush.bf16.msra.mxu0 %v3771
    %4987 = vmatpush.bf16.msra.mxu0 %v3770
    %4988 = vmatpush.bf16.msra.mxu0 %v3769
    %4989 = vmatpush.bf16.msra.mxu0 %v3768
    %4990 = vmatpush.bf16.msra.mxu0 %v3767
    %4991 = vmatpush.bf16.msra.mxu0 %v3766
    %4992 = vmatpush.bf16.msra.mxu0 %v3765
    %4993 = vmatpush.bf16.msra.mxu0 %v3764
    %4994 = vmatmul.bf16.gmra.mxu0 %v1204
    %v4995 = vpop.f32.mrf.mxu0
    %v4996 = vadd.f32 %v4983, %v4995
    %v4997 = vpop.f32.mrf.mxu0
    %4998 = vdwg.mxu0
    %4999 = vmatpush.bf16.msra.mxu0 %v3779
    %5000 = vmatpush.bf16.msra.mxu0 %v3778
    %5001 = vmatpush.bf16.msra.mxu0 %v3777
    %5002 = vmatpush.bf16.msra.mxu0 %v3776
    %5003 = vmatpush.bf16.msra.mxu0 %v3775
    %5004 = vmatpush.bf16.msra.mxu0 %v3774
    %5005 = vmatpush.bf16.msra.mxu0 %v3773
    %5006 = vmatpush.bf16.msra.mxu0 %v3772
    %5007 = vmatmul.bf16.gmra.mxu0 %v1205
    %v5008 = vpop.f32.mrf.mxu0
    %v5009 = vadd.f32 %v4996, %v5008
    %v5010 = vpop.f32.mrf.mxu0
    %5011 = vdwg.mxu0
    %5012 = vmatpush.bf16.msra.mxu0 %v3787
    %5013 = vmatpush.bf16.msra.mxu0 %v3786
    %5014 = vmatpush.bf16.msra.mxu0 %v3785
    %5015 = vmatpush.bf16.msra.mxu0 %v3784
    %5016 = vmatpush.bf16.msra.mxu0 %v3783
    %5017 = vmatpush.bf16.msra.mxu0 %v3782
    %5018 = vmatpush.bf16.msra.mxu0 %v3781
    %5019 = vmatpush.bf16.msra.mxu0 %v3780
    %5020 = vmatmul.bf16.gmra.mxu0 %v1208
    %v5021 = vpop.f32.mrf.mxu0
    %v5022 = vadd.f32 %v5009, %v5021
    %v5023 = vpop.f32.mrf.mxu0
    %5024 = vdwg.mxu0
    %5025 = vmatpush.bf16.msra.mxu0 %v3795
    %5026 = vmatpush.bf16.msra.mxu0 %v3794
    %5027 = vmatpush.bf16.msra.mxu0 %v3793
    %5028 = vmatpush.bf16.msra.mxu0 %v3792
    %5029 = vmatpush.bf16.msra.mxu0 %v3791
    %5030 = vmatpush.bf16.msra.mxu0 %v3790
    %5031 = vmatpush.bf16.msra.mxu0 %v3789
    %5032 = vmatpush.bf16.msra.mxu0 %v3788
    %5033 = vmatmul.bf16.gmra.mxu0 %v1209
    %v5034 = vpop.f32.mrf.mxu0
    %v5035 = vadd.f32 %v5022, %v5034
    %v5036 = vpop.f32.mrf.mxu0
    %5037 = vdwg.mxu0
    %5038 = vmatpush.bf16.msra.mxu0 %v3803
    %5039 = vmatpush.bf16.msra.mxu0 %v3802
    %5040 = vmatpush.bf16.msra.mxu0 %v3801
    %5041 = vmatpush.bf16.msra.mxu0 %v3800
    %5042 = vmatpush.bf16.msra.mxu0 %v3799
    %5043 = vmatpush.bf16.msra.mxu0 %v3798
    %5044 = vmatpush.bf16.msra.mxu0 %v3797
    %5045 = vmatpush.bf16.msra.mxu0 %v3796
    %5046 = vmatmul.bf16.gmra.mxu0 %v1210
    %v5047 = vpop.f32.mrf.mxu0
    %v5048 = vadd.f32 %v5035, %v5047
    %v5049 = vpop.f32.mrf.mxu0
    %5050 = vdwg.mxu0
    %5051 = vmatpush.bf16.msra.mxu0 %v3811
    %5052 = vmatpush.bf16.msra.mxu0 %v3810
    %5053 = vmatpush.bf16.msra.mxu0 %v3809
    %5054 = vmatpush.bf16.msra.mxu0 %v3808
    %5055 = vmatpush.bf16.msra.mxu0 %v3807
    %5056 = vmatpush.bf16.msra.mxu0 %v3806
    %5057 = vmatpush.bf16.msra.mxu0 %v3805
    %5058 = vmatpush.bf16.msra.mxu0 %v3804
    %5059 = vmatmul.bf16.gmra.mxu0 %v1211
    %v5060 = vpop.f32.mrf.mxu0
    %v5061 = vadd.f32 %v5048, %v5060
    %v5062 = vpop.f32.mrf.mxu0
    %5063 = vdwg.mxu0
    %5064 = vmatpush.bf16.msra.mxu0 %v3819
    %5065 = vmatpush.bf16.msra.mxu0 %v3818
    %5066 = vmatpush.bf16.msra.mxu0 %v3817
    %5067 = vmatpush.bf16.msra.mxu0 %v3816
    %5068 = vmatpush.bf16.msra.mxu0 %v3815
    %5069 = vmatpush.bf16.msra.mxu0 %v3814
    %5070 = vmatpush.bf16.msra.mxu0 %v3813
    %5071 = vmatpush.bf16.msra.mxu0 %v3812
    %5072 = vmatmul.bf16.gmra.mxu0 %v1212
    %v5073 = vpop.f32.mrf.mxu0
    %v5074 = vadd.f32 %v5061, %v5073
    %v5075 = vpop.f32.mrf.mxu0
    %5076 = vdwg.mxu0
    %5077 = vmatpush.bf16.msra.mxu0 %v3827
    %5078 = vmatpush.bf16.msra.mxu0 %v3826
    %5079 = vmatpush.bf16.msra.mxu0 %v3825
    %5080 = vmatpush.bf16.msra.mxu0 %v3824
    %5081 = vmatpush.bf16.msra.mxu0 %v3823
    %5082 = vmatpush.bf16.msra.mxu0 %v3822
    %5083 = vmatpush.bf16.msra.mxu0 %v3821
    %5084 = vmatpush.bf16.msra.mxu0 %v3820
    %5085 = vmatmul.bf16.gmra.mxu0 %v1213
    %v5086 = vpop.f32.mrf.mxu0
    %v5087 = vadd.f32 %v5074, %v5086
    %v5088 = vpop.f32.mrf.mxu0
    %5089 = vdwg.mxu0
    %5090 = vmatpush.bf16.msra.mxu0 %v3835
    %5091 = vmatpush.bf16.msra.mxu0 %v3834
    %5092 = vmatpush.bf16.msra.mxu0 %v3833
    %5093 = vmatpush.bf16.msra.mxu0 %v3832
    %5094 = vmatpush.bf16.msra.mxu0 %v3831
    %5095 = vmatpush.bf16.msra.mxu0 %v3830
    %5096 = vmatpush.bf16.msra.mxu0 %v3829
    %5097 = vmatpush.bf16.msra.mxu0 %v3828
    %5098 = vmatmul.bf16.gmra.mxu0 %v1214
    %v5099 = vpop.f32.mrf.mxu0
    %v5100 = vadd.f32 %v5087, %v5099
    %v5101 = vpop.f32.mrf.mxu0
    %5102 = vdwg.mxu0
    %5103 = vmatpush.bf16.msra.mxu0 %v3843
    %5104 = vmatpush.bf16.msra.mxu0 %v3842
    %5105 = vmatpush.bf16.msra.mxu0 %v3841
    %5106 = vmatpush.bf16.msra.mxu0 %v3840
    %5107 = vmatpush.bf16.msra.mxu0 %v3839
    %5108 = vmatpush.bf16.msra.mxu0 %v3838
    %5109 = vmatpush.bf16.msra.mxu0 %v3837
    %5110 = vmatpush.bf16.msra.mxu0 %v3836
    %5111 = vmatmul.bf16.gmra.mxu0 %v1215
    %v5112 = vpop.f32.mrf.mxu0
    %v5113 = vadd.f32 %v5100, %v5112
    %v5114 = vpop.f32.mrf.mxu0
    %5115 = vdwg.mxu0
    %5116 = vmatpush.bf16.msra.mxu0 %v3851
    %5117 = vmatpush.bf16.msra.mxu0 %v3850
    %5118 = vmatpush.bf16.msra.mxu0 %v3849
    %5119 = vmatpush.bf16.msra.mxu0 %v3848
    %5120 = vmatpush.bf16.msra.mxu0 %v3847
    %5121 = vmatpush.bf16.msra.mxu0 %v3846
    %5122 = vmatpush.bf16.msra.mxu0 %v3845
    %5123 = vmatpush.bf16.msra.mxu0 %v3844
    %5124 = vmatmul.bf16.gmra.mxu0 %v1218
    %v5125 = vpop.f32.mrf.mxu0
    %v5126 = vadd.f32 %v5113, %v5125
    %v5127 = vpop.f32.mrf.mxu0
    %5128 = vdwg.mxu0
    %5129 = vmatpush.bf16.msra.mxu0 %v3859
    %5130 = vmatpush.bf16.msra.mxu0 %v3858
    %5131 = vmatpush.bf16.msra.mxu0 %v3857
    %5132 = vmatpush.bf16.msra.mxu0 %v3856
    %5133 = vmatpush.bf16.msra.mxu0 %v3855
    %5134 = vmatpush.bf16.msra.mxu0 %v3854
    %5135 = vmatpush.bf16.msra.mxu0 %v3853
    %5136 = vmatpush.bf16.msra.mxu0 %v3852
    %5137 = vmatmul.bf16.gmra.mxu0 %v1219
    %v5138 = vpop.f32.mrf.mxu0
    %v5139 = vadd.f32 %v5126, %v5138
    %v5140 = vpop.f32.mrf.mxu0
    %5141 = vdwg.mxu0
    %5142 = vmatpush.bf16.msra.mxu0 %v3867
    %5143 = vmatpush.bf16.msra.mxu0 %v3866
    %5144 = vmatpush.bf16.msra.mxu0 %v3865
    %5145 = vmatpush.bf16.msra.mxu0 %v3864
    %5146 = vmatpush.bf16.msra.mxu0 %v3863
    %5147 = vmatpush.bf16.msra.mxu0 %v3862
    %5148 = vmatpush.bf16.msra.mxu0 %v3861
    %5149 = vmatpush.bf16.msra.mxu0 %v3860
    %5150 = vmatmul.bf16.gmra.mxu0 %v1220
    %v5151 = vpop.f32.mrf.mxu0
    %v5152 = vadd.f32 %v5139, %v5151
    %v5153 = vpop.f32.mrf.mxu0
    %5154 = vdwg.mxu0
    %5155 = vmatpush.bf16.msra.mxu0 %v3875
    %5156 = vmatpush.bf16.msra.mxu0 %v3874
    %5157 = vmatpush.bf16.msra.mxu0 %v3873
    %5158 = vmatpush.bf16.msra.mxu0 %v3872
    %5159 = vmatpush.bf16.msra.mxu0 %v3871
    %5160 = vmatpush.bf16.msra.mxu0 %v3870
    %5161 = vmatpush.bf16.msra.mxu0 %v3869
    %5162 = vmatpush.bf16.msra.mxu0 %v3868
    %5163 = vmatmul.bf16.gmra.mxu0 %v1221
    %v5164 = vpop.f32.mrf.mxu0
    %v5165 = vadd.f32 %v5152, %v5164
    %v5166 = vpop.f32.mrf.mxu0
    %5167 = vdwg.mxu0
    %5168 = vmatpush.bf16.msra.mxu0 %v3883
    %5169 = vmatpush.bf16.msra.mxu0 %v3882
    %5170 = vmatpush.bf16.msra.mxu0 %v3881
    %5171 = vmatpush.bf16.msra.mxu0 %v3880
    %5172 = vmatpush.bf16.msra.mxu0 %v3879
    %5173 = vmatpush.bf16.msra.mxu0 %v3878
    %5174 = vmatpush.bf16.msra.mxu0 %v3877
    %5175 = vmatpush.bf16.msra.mxu0 %v3876
    %5176 = vmatmul.bf16.gmra.mxu0 %v1222
    %v5177 = vpop.f32.mrf.mxu0
    %v5178 = vadd.f32 %v5165, %v5177
    %v5179 = vpop.f32.mrf.mxu0
    %5180 = vdwg.mxu0
    %5181 = vmatpush.bf16.msra.mxu0 %v3891
    %5182 = vmatpush.bf16.msra.mxu0 %v3890
    %5183 = vmatpush.bf16.msra.mxu0 %v3889
    %5184 = vmatpush.bf16.msra.mxu0 %v3888
    %5185 = vmatpush.bf16.msra.mxu0 %v3887
    %5186 = vmatpush.bf16.msra.mxu0 %v3886
    %5187 = vmatpush.bf16.msra.mxu0 %v3885
    %5188 = vmatpush.bf16.msra.mxu0 %v3884
    %5189 = vmatmul.bf16.gmra.mxu0 %v1223
    %v5190 = vpop.f32.mrf.mxu0
    %v5191 = vadd.f32 %v5178, %v5190
    %v5192 = vpop.f32.mrf.mxu0
    %5193 = vdwg.mxu0
    %5194 = vmatpush.bf16.msra.mxu0 %v3899
    %5195 = vmatpush.bf16.msra.mxu0 %v3898
    %5196 = vmatpush.bf16.msra.mxu0 %v3897
    %5197 = vmatpush.bf16.msra.mxu0 %v3896
    %5198 = vmatpush.bf16.msra.mxu0 %v3895
    %5199 = vmatpush.bf16.msra.mxu0 %v3894
    %5200 = vmatpush.bf16.msra.mxu0 %v3893
    %5201 = vmatpush.bf16.msra.mxu0 %v3892
    %5202 = vmatmul.bf16.gmra.mxu0 %v1224
    %v5203 = vpop.f32.mrf.mxu0
    %v5204 = vadd.f32 %v5191, %v5203
    %v5205 = vpop.f32.mrf.mxu0
    %5206 = vdwg.mxu0
    %5207 = vmatpush.bf16.msra.mxu0 %v3907
    %5208 = vmatpush.bf16.msra.mxu0 %v3906
    %5209 = vmatpush.bf16.msra.mxu0 %v3905
    %5210 = vmatpush.bf16.msra.mxu0 %v3904
    %5211 = vmatpush.bf16.msra.mxu0 %v3903
    %5212 = vmatpush.bf16.msra.mxu0 %v3902
    %5213 = vmatpush.bf16.msra.mxu0 %v3901
    %5214 = vmatpush.bf16.msra.mxu0 %v3900
    %5215 = vmatmul.bf16.gmra.mxu0 %v1225
    %v5216 = vpop.f32.mrf.mxu0
    %v5217 = vadd.f32 %v5204, %v5216
    %v5218 = vpop.f32.mrf.mxu0
    %5219 = vdwg.mxu0
    %5220 = vmatpush.bf16.msra.mxu0 %v3915
    %5221 = vmatpush.bf16.msra.mxu0 %v3914
    %5222 = vmatpush.bf16.msra.mxu0 %v3913
    %5223 = vmatpush.bf16.msra.mxu0 %v3912
    %5224 = vmatpush.bf16.msra.mxu0 %v3911
    %5225 = vmatpush.bf16.msra.mxu0 %v3910
    %5226 = vmatpush.bf16.msra.mxu0 %v3909
    %5227 = vmatpush.bf16.msra.mxu0 %v3908
    %5228 = vmatmul.bf16.gmra.mxu0 %v1228
    %v5229 = vpop.f32.mrf.mxu0
    %v5230 = vadd.f32 %v5217, %v5229
    %v5231 = vpop.f32.mrf.mxu0
    %5232 = vdwg.mxu0
    %5233 = vmatpush.bf16.msra.mxu0 %v3923
    %5234 = vmatpush.bf16.msra.mxu0 %v3922
    %5235 = vmatpush.bf16.msra.mxu0 %v3921
    %5236 = vmatpush.bf16.msra.mxu0 %v3920
    %5237 = vmatpush.bf16.msra.mxu0 %v3919
    %5238 = vmatpush.bf16.msra.mxu0 %v3918
    %5239 = vmatpush.bf16.msra.mxu0 %v3917
    %5240 = vmatpush.bf16.msra.mxu0 %v3916
    %5241 = vmatmul.bf16.gmra.mxu0 %v1229
    %v5242 = vpop.f32.mrf.mxu0
    %v5243 = vadd.f32 %v5230, %v5242
    %v5244 = vpop.f32.mrf.mxu0
    %5245 = vdwg.mxu0
    %5246 = vmatpush.bf16.msra.mxu0 %v3931
    %5247 = vmatpush.bf16.msra.mxu0 %v3930
    %5248 = vmatpush.bf16.msra.mxu0 %v3929
    %5249 = vmatpush.bf16.msra.mxu0 %v3928
    %5250 = vmatpush.bf16.msra.mxu0 %v3927
    %5251 = vmatpush.bf16.msra.mxu0 %v3926
    %5252 = vmatpush.bf16.msra.mxu0 %v3925
    %5253 = vmatpush.bf16.msra.mxu0 %v3924
    %5254 = vmatmul.bf16.gmra.mxu0 %v1230
    %v5255 = vpop.f32.mrf.mxu0
    %v5256 = vadd.f32 %v5243, %v5255
    %v5257 = vpop.f32.mrf.mxu0
    %5258 = vdwg.mxu0
    %5259 = vmatpush.bf16.msra.mxu0 %v3939
    %5260 = vmatpush.bf16.msra.mxu0 %v3938
    %5261 = vmatpush.bf16.msra.mxu0 %v3937
    %5262 = vmatpush.bf16.msra.mxu0 %v3936
    %5263 = vmatpush.bf16.msra.mxu0 %v3935
    %5264 = vmatpush.bf16.msra.mxu0 %v3934
    %5265 = vmatpush.bf16.msra.mxu0 %v3933
    %5266 = vmatpush.bf16.msra.mxu0 %v3932
    %5267 = vmatmul.bf16.gmra.mxu0 %v1231
    %v5268 = vpop.f32.mrf.mxu0
    %v5269 = vadd.f32 %v5256, %v5268
    %v5270 = vpop.f32.mrf.mxu0
    %5271 = vdwg.mxu0
    %5272 = vmatpush.bf16.msra.mxu0 %v3947
    %5273 = vmatpush.bf16.msra.mxu0 %v3946
    %5274 = vmatpush.bf16.msra.mxu0 %v3945
    %5275 = vmatpush.bf16.msra.mxu0 %v3944
    %5276 = vmatpush.bf16.msra.mxu0 %v3943
    %5277 = vmatpush.bf16.msra.mxu0 %v3942
    %5278 = vmatpush.bf16.msra.mxu0 %v3941
    %5279 = vmatpush.bf16.msra.mxu0 %v3940
    %5280 = vmatmul.bf16.gmra.mxu0 %v1232
    %v5281 = vpop.f32.mrf.mxu0
    %v5282 = vadd.f32 %v5269, %v5281
    %v5283 = vpop.f32.mrf.mxu0
    %5284 = vdwg.mxu0
    %5285 = vmatpush.bf16.msra.mxu0 %v3955
    %5286 = vmatpush.bf16.msra.mxu0 %v3954
    %5287 = vmatpush.bf16.msra.mxu0 %v3953
    %5288 = vmatpush.bf16.msra.mxu0 %v3952
    %5289 = vmatpush.bf16.msra.mxu0 %v3951
    %5290 = vmatpush.bf16.msra.mxu0 %v3950
    %5291 = vmatpush.bf16.msra.mxu0 %v3949
    %5292 = vmatpush.bf16.msra.mxu0 %v3948
    %5293 = vmatmul.bf16.gmra.mxu0 %v1233
    %v5294 = vpop.f32.mrf.mxu0
    %v5295 = vadd.f32 %v5282, %v5294
    %v5296 = vpop.f32.mrf.mxu0
    %5297 = vdwg.mxu0
    %5298 = vmatpush.bf16.msra.mxu0 %v3963
    %5299 = vmatpush.bf16.msra.mxu0 %v3962
    %5300 = vmatpush.bf16.msra.mxu0 %v3961
    %5301 = vmatpush.bf16.msra.mxu0 %v3960
    %5302 = vmatpush.bf16.msra.mxu0 %v3959
    %5303 = vmatpush.bf16.msra.mxu0 %v3958
    %5304 = vmatpush.bf16.msra.mxu0 %v3957
    %5305 = vmatpush.bf16.msra.mxu0 %v3956
    %5306 = vmatmul.bf16.gmra.mxu0 %v1234
    %v5307 = vpop.f32.mrf.mxu0
    %v5308 = vadd.f32 %v5295, %v5307
    %v5309 = vpop.f32.mrf.mxu0
    %5310 = vdwg.mxu0
    %5311 = vmatpush.bf16.msra.mxu0 %v3971
    %5312 = vmatpush.bf16.msra.mxu0 %v3970
    %5313 = vmatpush.bf16.msra.mxu0 %v3969
    %5314 = vmatpush.bf16.msra.mxu0 %v3968
    %5315 = vmatpush.bf16.msra.mxu0 %v3967
    %5316 = vmatpush.bf16.msra.mxu0 %v3966
    %5317 = vmatpush.bf16.msra.mxu0 %v3965
    %5318 = vmatpush.bf16.msra.mxu0 %v3964
    %5319 = vmatmul.bf16.gmra.mxu0 %v1235
    %v5320 = vpop.f32.mrf.mxu0
    %v5321 = vadd.f32 %v5308, %v5320
    %v5322 = vpop.f32.mrf.mxu0
    %5323 = vdwg.mxu0
    %5324 = vmatpush.bf16.msra.mxu0 %v3979
    %5325 = vmatpush.bf16.msra.mxu0 %v3978
    %5326 = vmatpush.bf16.msra.mxu0 %v3977
    %5327 = vmatpush.bf16.msra.mxu0 %v3976
    %5328 = vmatpush.bf16.msra.mxu0 %v3975
    %5329 = vmatpush.bf16.msra.mxu0 %v3974
    %5330 = vmatpush.bf16.msra.mxu0 %v3973
    %5331 = vmatpush.bf16.msra.mxu0 %v3972
    %5332 = vmatmul.bf16.gmra.mxu0 %v1238
    %v5333 = vpop.f32.mrf.mxu0
    %v5334 = vadd.f32 %v5321, %v5333
    %v5335 = vpop.f32.mrf.mxu0
    %5336 = vdwg.mxu0
    %5337 = vmatpush.bf16.msra.mxu0 %v3987
    %5338 = vmatpush.bf16.msra.mxu0 %v3986
    %5339 = vmatpush.bf16.msra.mxu0 %v3985
    %5340 = vmatpush.bf16.msra.mxu0 %v3984
    %5341 = vmatpush.bf16.msra.mxu0 %v3983
    %5342 = vmatpush.bf16.msra.mxu0 %v3982
    %5343 = vmatpush.bf16.msra.mxu0 %v3981
    %5344 = vmatpush.bf16.msra.mxu0 %v3980
    %5345 = vmatmul.bf16.gmra.mxu0 %v1239
    %v5346 = vpop.f32.mrf.mxu0
    %v5347 = vadd.f32 %v5334, %v5346
    %v5348 = vpop.f32.mrf.mxu0
    %5349 = vdwg.mxu0
    %5350 = vmatpush.bf16.msra.mxu0 %v3995
    %5351 = vmatpush.bf16.msra.mxu0 %v3994
    %5352 = vmatpush.bf16.msra.mxu0 %v3993
    %5353 = vmatpush.bf16.msra.mxu0 %v3992
    %5354 = vmatpush.bf16.msra.mxu0 %v3991
    %5355 = vmatpush.bf16.msra.mxu0 %v3990
    %5356 = vmatpush.bf16.msra.mxu0 %v3989
    %5357 = vmatpush.bf16.msra.mxu0 %v3988
    %5358 = vmatmul.bf16.gmra.mxu0 %v1240
    %v5359 = vpop.f32.mrf.mxu0
    %v5360 = vadd.f32 %v5347, %v5359
    %v5361 = vpop.f32.mrf.mxu0
    %5362 = vdwg.mxu0
    %5363 = vmatpush.bf16.msra.mxu0 %v4003
    %5364 = vmatpush.bf16.msra.mxu0 %v4002
    %5365 = vmatpush.bf16.msra.mxu0 %v4001
    %5366 = vmatpush.bf16.msra.mxu0 %v4000
    %5367 = vmatpush.bf16.msra.mxu0 %v3999
    %5368 = vmatpush.bf16.msra.mxu0 %v3998
    %5369 = vmatpush.bf16.msra.mxu0 %v3997
    %5370 = vmatpush.bf16.msra.mxu0 %v3996
    %5371 = vmatmul.bf16.gmra.mxu0 %v1241
    %v5372 = vpop.f32.mrf.mxu0
    %v5373 = vadd.f32 %v5360, %v5372
    %v5374 = vpop.f32.mrf.mxu0
    %5375 = vdwg.mxu0
    %5376 = vmatpush.bf16.msra.mxu0 %v4011
    %5377 = vmatpush.bf16.msra.mxu0 %v4010
    %5378 = vmatpush.bf16.msra.mxu0 %v4009
    %5379 = vmatpush.bf16.msra.mxu0 %v4008
    %5380 = vmatpush.bf16.msra.mxu0 %v4007
    %5381 = vmatpush.bf16.msra.mxu0 %v4006
    %5382 = vmatpush.bf16.msra.mxu0 %v4005
    %5383 = vmatpush.bf16.msra.mxu0 %v4004
    %5384 = vmatmul.bf16.gmra.mxu0 %v1242
    %v5385 = vpop.f32.mrf.mxu0
    %v5386 = vadd.f32 %v5373, %v5385
    %v5387 = vpop.f32.mrf.mxu0
    %5388 = vdwg.mxu0
    %5389 = vmatpush.bf16.msra.mxu0 %v4019
    %5390 = vmatpush.bf16.msra.mxu0 %v4018
    %5391 = vmatpush.bf16.msra.mxu0 %v4017
    %5392 = vmatpush.bf16.msra.mxu0 %v4016
    %5393 = vmatpush.bf16.msra.mxu0 %v4015
    %5394 = vmatpush.bf16.msra.mxu0 %v4014
    %5395 = vmatpush.bf16.msra.mxu0 %v4013
    %5396 = vmatpush.bf16.msra.mxu0 %v4012
    %5397 = vmatmul.bf16.gmra.mxu0 %v1243
    %v5398 = vpop.f32.mrf.mxu0
    %v5399 = vadd.f32 %v5386, %v5398
    %v5400 = vpop.f32.mrf.mxu0
    %5401 = vdwg.mxu0
    %5402 = vmatpush.bf16.msra.mxu0 %v4027
    %5403 = vmatpush.bf16.msra.mxu0 %v4026
    %5404 = vmatpush.bf16.msra.mxu0 %v4025
    %5405 = vmatpush.bf16.msra.mxu0 %v4024
    %5406 = vmatpush.bf16.msra.mxu0 %v4023
    %5407 = vmatpush.bf16.msra.mxu0 %v4022
    %5408 = vmatpush.bf16.msra.mxu0 %v4021
    %5409 = vmatpush.bf16.msra.mxu0 %v4020
    %5410 = vmatmul.bf16.gmra.mxu0 %v1244
    %v5411 = vpop.f32.mrf.mxu0
    %v5412 = vadd.f32 %v5399, %v5411
    %v5413 = vpop.f32.mrf.mxu0
    %5414 = vdwg.mxu0
    %5415 = vmatpush.bf16.msra.mxu0 %v4035
    %5416 = vmatpush.bf16.msra.mxu0 %v4034
    %5417 = vmatpush.bf16.msra.mxu0 %v4033
    %5418 = vmatpush.bf16.msra.mxu0 %v4032
    %5419 = vmatpush.bf16.msra.mxu0 %v4031
    %5420 = vmatpush.bf16.msra.mxu0 %v4030
    %5421 = vmatpush.bf16.msra.mxu0 %v4029
    %5422 = vmatpush.bf16.msra.mxu0 %v4028
    %5423 = vmatmul.bf16.gmra.mxu0 %v1245
    %v5424 = vpop.f32.mrf.mxu0
    %v5425 = vadd.f32 %v5412, %v5424
    %v5426 = vpop.f32.mrf.mxu0
    %5427 = vdwg.mxu0
    %5428 = vmatpush.bf16.msra.mxu0 %v4043
    %5429 = vmatpush.bf16.msra.mxu0 %v4042
    %5430 = vmatpush.bf16.msra.mxu0 %v4041
    %5431 = vmatpush.bf16.msra.mxu0 %v4040
    %5432 = vmatpush.bf16.msra.mxu0 %v4039
    %5433 = vmatpush.bf16.msra.mxu0 %v4038
    %5434 = vmatpush.bf16.msra.mxu0 %v4037
    %5435 = vmatpush.bf16.msra.mxu0 %v4036
    %5436 = vmatmul.bf16.gmra.mxu0 %v1248
    %v5437 = vpop.f32.mrf.mxu0
    %v5438 = vadd.f32 %v5425, %v5437
    %v5439 = vpop.f32.mrf.mxu0
    %5440 = vdwg.mxu0
    %5441 = vmatpush.bf16.msra.mxu0 %v4051
    %5442 = vmatpush.bf16.msra.mxu0 %v4050
    %5443 = vmatpush.bf16.msra.mxu0 %v4049
    %5444 = vmatpush.bf16.msra.mxu0 %v4048
    %5445 = vmatpush.bf16.msra.mxu0 %v4047
    %5446 = vmatpush.bf16.msra.mxu0 %v4046
    %5447 = vmatpush.bf16.msra.mxu0 %v4045
    %5448 = vmatpush.bf16.msra.mxu0 %v4044
    %5449 = vmatmul.bf16.gmra.mxu0 %v1249
    %v5450 = vpop.f32.mrf.mxu0
    %v5451 = vadd.f32 %v5438, %v5450
    %v5452 = vpop.f32.mrf.mxu0
    %5453 = vdwg.mxu0
    %5454 = vmatpush.bf16.msra.mxu0 %v4059
    %5455 = vmatpush.bf16.msra.mxu0 %v4058
    %5456 = vmatpush.bf16.msra.mxu0 %v4057
    %5457 = vmatpush.bf16.msra.mxu0 %v4056
    %5458 = vmatpush.bf16.msra.mxu0 %v4055
    %5459 = vmatpush.bf16.msra.mxu0 %v4054
    %5460 = vmatpush.bf16.msra.mxu0 %v4053
    %5461 = vmatpush.bf16.msra.mxu0 %v4052
    %5462 = vmatmul.bf16.gmra.mxu0 %v1250
    %v5463 = vpop.f32.mrf.mxu0
    %v5464 = vadd.f32 %v5451, %v5463
    %v5465 = vpop.f32.mrf.mxu0
    %5466 = vdwg.mxu0
    %5467 = vmatpush.bf16.msra.mxu0 %v4067
    %5468 = vmatpush.bf16.msra.mxu0 %v4066
    %5469 = vmatpush.bf16.msra.mxu0 %v4065
    %5470 = vmatpush.bf16.msra.mxu0 %v4064
    %5471 = vmatpush.bf16.msra.mxu0 %v4063
    %5472 = vmatpush.bf16.msra.mxu0 %v4062
    %5473 = vmatpush.bf16.msra.mxu0 %v4061
    %5474 = vmatpush.bf16.msra.mxu0 %v4060
    %5475 = vmatmul.bf16.gmra.mxu0 %v1251
    %v5476 = vpop.f32.mrf.mxu0
    %v5477 = vadd.f32 %v5464, %v5476
    %v5478 = vpop.f32.mrf.mxu0
    %5479 = vdwg.mxu0
    %5480 = vmatpush.bf16.msra.mxu0 %v4075
    %5481 = vmatpush.bf16.msra.mxu0 %v4074
    %5482 = vmatpush.bf16.msra.mxu0 %v4073
    %5483 = vmatpush.bf16.msra.mxu0 %v4072
    %5484 = vmatpush.bf16.msra.mxu0 %v4071
    %5485 = vmatpush.bf16.msra.mxu0 %v4070
    %5486 = vmatpush.bf16.msra.mxu0 %v4069
    %5487 = vmatpush.bf16.msra.mxu0 %v4068
    %5488 = vmatmul.bf16.gmra.mxu0 %v1252
    %v5489 = vpop.f32.mrf.mxu0
    %v5490 = vadd.f32 %v5477, %v5489
    %v5491 = vpop.f32.mrf.mxu0
    %5492 = vdwg.mxu0
    %5493 = vmatpush.bf16.msra.mxu0 %v4083
    %5494 = vmatpush.bf16.msra.mxu0 %v4082
    %5495 = vmatpush.bf16.msra.mxu0 %v4081
    %5496 = vmatpush.bf16.msra.mxu0 %v4080
    %5497 = vmatpush.bf16.msra.mxu0 %v4079
    %5498 = vmatpush.bf16.msra.mxu0 %v4078
    %5499 = vmatpush.bf16.msra.mxu0 %v4077
    %5500 = vmatpush.bf16.msra.mxu0 %v4076
    %5501 = vmatmul.bf16.gmra.mxu0 %v1253
    %v5502 = vpop.f32.mrf.mxu0
    %v5503 = vadd.f32 %v5490, %v5502
    %v5504 = vpop.f32.mrf.mxu0
    %5505 = vdwg.mxu0
    %5506 = vmatpush.bf16.msra.mxu0 %v4091
    %5507 = vmatpush.bf16.msra.mxu0 %v4090
    %5508 = vmatpush.bf16.msra.mxu0 %v4089
    %5509 = vmatpush.bf16.msra.mxu0 %v4088
    %5510 = vmatpush.bf16.msra.mxu0 %v4087
    %5511 = vmatpush.bf16.msra.mxu0 %v4086
    %5512 = vmatpush.bf16.msra.mxu0 %v4085
    %5513 = vmatpush.bf16.msra.mxu0 %v4084
    %5514 = vmatmul.bf16.gmra.mxu0 %v1254
    %v5515 = vpop.f32.mrf.mxu0
    %v5516 = vadd.f32 %v5503, %v5515
    %v5517 = vpop.f32.mrf.mxu0
    %5518 = vdwg.mxu0
    %5519 = vmatpush.bf16.msra.mxu0 %v4099
    %5520 = vmatpush.bf16.msra.mxu0 %v4098
    %5521 = vmatpush.bf16.msra.mxu0 %v4097
    %5522 = vmatpush.bf16.msra.mxu0 %v4096
    %5523 = vmatpush.bf16.msra.mxu0 %v4095
    %5524 = vmatpush.bf16.msra.mxu0 %v4094
    %5525 = vmatpush.bf16.msra.mxu0 %v4093
    %5526 = vmatpush.bf16.msra.mxu0 %v4092
    %5527 = vmatmul.bf16.gmra.mxu0 %v1255
    %v5528 = vpop.f32.mrf.mxu0
    %v5529 = vadd.f32 %v5516, %v5528
    %v5530 = vpop.f32.mrf.mxu0
    %5531 = vdwg.mxu0
    %5532 = vmatpush.bf16.msra.mxu0 %v4107
    %5533 = vmatpush.bf16.msra.mxu0 %v4106
    %5534 = vmatpush.bf16.msra.mxu0 %v4105
    %5535 = vmatpush.bf16.msra.mxu0 %v4104
    %5536 = vmatpush.bf16.msra.mxu0 %v4103
    %5537 = vmatpush.bf16.msra.mxu0 %v4102
    %5538 = vmatpush.bf16.msra.mxu0 %v4101
    %5539 = vmatpush.bf16.msra.mxu0 %v4100
    %5540 = vmatmul.bf16.gmra.mxu0 %v1258
    %v5541 = vpop.f32.mrf.mxu0
    %v5542 = vadd.f32 %v5529, %v5541
    %v5543 = vpop.f32.mrf.mxu0
    %5544 = vdwg.mxu0
    %5545 = vmatpush.bf16.msra.mxu0 %v4115
    %5546 = vmatpush.bf16.msra.mxu0 %v4114
    %5547 = vmatpush.bf16.msra.mxu0 %v4113
    %5548 = vmatpush.bf16.msra.mxu0 %v4112
    %5549 = vmatpush.bf16.msra.mxu0 %v4111
    %5550 = vmatpush.bf16.msra.mxu0 %v4110
    %5551 = vmatpush.bf16.msra.mxu0 %v4109
    %5552 = vmatpush.bf16.msra.mxu0 %v4108
    %5553 = vmatmul.bf16.gmra.mxu0 %v1259
    %v5554 = vpop.f32.mrf.mxu0
    %v5555 = vadd.f32 %v5542, %v5554
    %v5556 = vpop.f32.mrf.mxu0
    %5557 = vdwg.mxu0
    %5558 = vmatpush.bf16.msra.mxu0 %v4123
    %5559 = vmatpush.bf16.msra.mxu0 %v4122
    %5560 = vmatpush.bf16.msra.mxu0 %v4121
    %5561 = vmatpush.bf16.msra.mxu0 %v4120
    %5562 = vmatpush.bf16.msra.mxu0 %v4119
    %5563 = vmatpush.bf16.msra.mxu0 %v4118
    %5564 = vmatpush.bf16.msra.mxu0 %v4117
    %5565 = vmatpush.bf16.msra.mxu0 %v4116
    %5566 = vmatmul.bf16.gmra.mxu0 %v1260
    %v5567 = vpop.f32.mrf.mxu0
    %v5568 = vadd.f32 %v5555, %v5567
    %v5569 = vpop.f32.mrf.mxu0
    %5570 = vdwg.mxu0
    %5571 = vmatpush.bf16.msra.mxu0 %v4131
    %5572 = vmatpush.bf16.msra.mxu0 %v4130
    %5573 = vmatpush.bf16.msra.mxu0 %v4129
    %5574 = vmatpush.bf16.msra.mxu0 %v4128
    %5575 = vmatpush.bf16.msra.mxu0 %v4127
    %5576 = vmatpush.bf16.msra.mxu0 %v4126
    %5577 = vmatpush.bf16.msra.mxu0 %v4125
    %5578 = vmatpush.bf16.msra.mxu0 %v4124
    %5579 = vmatmul.bf16.gmra.mxu0 %v1261
    %v5580 = vpop.f32.mrf.mxu0
    %v5581 = vadd.f32 %v5568, %v5580
    %v5582 = vpop.f32.mrf.mxu0
    %5583 = vdwg.mxu0
    %5584 = vmatpush.bf16.msra.mxu0 %v4139
    %5585 = vmatpush.bf16.msra.mxu0 %v4138
    %5586 = vmatpush.bf16.msra.mxu0 %v4137
    %5587 = vmatpush.bf16.msra.mxu0 %v4136
    %5588 = vmatpush.bf16.msra.mxu0 %v4135
    %5589 = vmatpush.bf16.msra.mxu0 %v4134
    %5590 = vmatpush.bf16.msra.mxu0 %v4133
    %5591 = vmatpush.bf16.msra.mxu0 %v4132
    %5592 = vmatmul.bf16.gmra.mxu0 %v1262
    %v5593 = vpop.f32.mrf.mxu0
    %v5594 = vadd.f32 %v5581, %v5593
    %v5595 = vpop.f32.mrf.mxu0
    %5596 = vdwg.mxu0
    %5597 = vmatpush.bf16.msra.mxu0 %v4147
    %5598 = vmatpush.bf16.msra.mxu0 %v4146
    %5599 = vmatpush.bf16.msra.mxu0 %v4145
    %5600 = vmatpush.bf16.msra.mxu0 %v4144
    %5601 = vmatpush.bf16.msra.mxu0 %v4143
    %5602 = vmatpush.bf16.msra.mxu0 %v4142
    %5603 = vmatpush.bf16.msra.mxu0 %v4141
    %5604 = vmatpush.bf16.msra.mxu0 %v4140
    %5605 = vmatmul.bf16.gmra.mxu0 %v1263
    %v5606 = vpop.f32.mrf.mxu0
    %v5607 = vadd.f32 %v5594, %v5606
    %v5608 = vpop.f32.mrf.mxu0
    %5609 = vdwg.mxu0
    %5610 = vmatpush.bf16.msra.mxu0 %v4155
    %5611 = vmatpush.bf16.msra.mxu0 %v4154
    %5612 = vmatpush.bf16.msra.mxu0 %v4153
    %5613 = vmatpush.bf16.msra.mxu0 %v4152
    %5614 = vmatpush.bf16.msra.mxu0 %v4151
    %5615 = vmatpush.bf16.msra.mxu0 %v4150
    %5616 = vmatpush.bf16.msra.mxu0 %v4149
    %5617 = vmatpush.bf16.msra.mxu0 %v4148
    %5618 = vmatmul.bf16.gmra.mxu0 %v1264
    %v5619 = vpop.f32.mrf.mxu0
    %v5620 = vadd.f32 %v5607, %v5619
    %v5621 = vpop.f32.mrf.mxu0
    %5622 = vdwg.mxu0
    %5623 = vmatpush.bf16.msra.mxu0 %v4163
    %5624 = vmatpush.bf16.msra.mxu0 %v4162
    %5625 = vmatpush.bf16.msra.mxu0 %v4161
    %5626 = vmatpush.bf16.msra.mxu0 %v4160
    %5627 = vmatpush.bf16.msra.mxu0 %v4159
    %5628 = vmatpush.bf16.msra.mxu0 %v4158
    %5629 = vmatpush.bf16.msra.mxu0 %v4157
    %5630 = vmatpush.bf16.msra.mxu0 %v4156
    %5631 = vmatmul.bf16.gmra.mxu0 %v1265
    %v5632 = vpop.f32.mrf.mxu0
    %v5633 = vadd.f32 %v5620, %v5632
    %v5634 = vpop.f32.mrf.mxu0
    %5635 = vdwg.mxu0
    %5636 = vmatpush.bf16.msra.mxu0 %v4171
    %5637 = vmatpush.bf16.msra.mxu0 %v4170
    %5638 = vmatpush.bf16.msra.mxu0 %v4169
    %5639 = vmatpush.bf16.msra.mxu0 %v4168
    %5640 = vmatpush.bf16.msra.mxu0 %v4167
    %5641 = vmatpush.bf16.msra.mxu0 %v4166
    %5642 = vmatpush.bf16.msra.mxu0 %v4165
    %5643 = vmatpush.bf16.msra.mxu0 %v4164
    %5644 = vmatmul.bf16.gmra.mxu0 %v1268
    %v5645 = vpop.f32.mrf.mxu0
    %v5646 = vadd.f32 %v5633, %v5645
    %v5647 = vpop.f32.mrf.mxu0
    %5648 = vdwg.mxu0
    %5649 = vmatpush.bf16.msra.mxu0 %v4179
    %5650 = vmatpush.bf16.msra.mxu0 %v4178
    %5651 = vmatpush.bf16.msra.mxu0 %v4177
    %5652 = vmatpush.bf16.msra.mxu0 %v4176
    %5653 = vmatpush.bf16.msra.mxu0 %v4175
    %5654 = vmatpush.bf16.msra.mxu0 %v4174
    %5655 = vmatpush.bf16.msra.mxu0 %v4173
    %5656 = vmatpush.bf16.msra.mxu0 %v4172
    %5657 = vmatmul.bf16.gmra.mxu0 %v1269
    %v5658 = vpop.f32.mrf.mxu0
    %v5659 = vadd.f32 %v5646, %v5658
    %v5660 = vpop.f32.mrf.mxu0
    %5661 = vdwg.mxu0
    %5662 = vmatpush.bf16.msra.mxu0 %v4187
    %5663 = vmatpush.bf16.msra.mxu0 %v4186
    %5664 = vmatpush.bf16.msra.mxu0 %v4185
    %5665 = vmatpush.bf16.msra.mxu0 %v4184
    %5666 = vmatpush.bf16.msra.mxu0 %v4183
    %5667 = vmatpush.bf16.msra.mxu0 %v4182
    %5668 = vmatpush.bf16.msra.mxu0 %v4181
    %5669 = vmatpush.bf16.msra.mxu0 %v4180
    %5670 = vmatmul.bf16.gmra.mxu0 %v1270
    %v5671 = vpop.f32.mrf.mxu0
    %v5672 = vadd.f32 %v5659, %v5671
    %v5673 = vpop.f32.mrf.mxu0
    %5674 = vdwg.mxu0
    %5675 = vmatpush.bf16.msra.mxu0 %v4195
    %5676 = vmatpush.bf16.msra.mxu0 %v4194
    %5677 = vmatpush.bf16.msra.mxu0 %v4193
    %5678 = vmatpush.bf16.msra.mxu0 %v4192
    %5679 = vmatpush.bf16.msra.mxu0 %v4191
    %5680 = vmatpush.bf16.msra.mxu0 %v4190
    %5681 = vmatpush.bf16.msra.mxu0 %v4189
    %5682 = vmatpush.bf16.msra.mxu0 %v4188
    %5683 = vmatmul.bf16.gmra.mxu0 %v1271
    %v5684 = vpop.f32.mrf.mxu0
    %v5685 = vadd.f32 %v5672, %v5684
    %v5686 = vpop.f32.mrf.mxu0
    %5687 = vdwg.mxu0
    %5688 = vmatpush.bf16.msra.mxu0 %v4203
    %5689 = vmatpush.bf16.msra.mxu0 %v4202
    %5690 = vmatpush.bf16.msra.mxu0 %v4201
    %5691 = vmatpush.bf16.msra.mxu0 %v4200
    %5692 = vmatpush.bf16.msra.mxu0 %v4199
    %5693 = vmatpush.bf16.msra.mxu0 %v4198
    %5694 = vmatpush.bf16.msra.mxu0 %v4197
    %5695 = vmatpush.bf16.msra.mxu0 %v4196
    %5696 = vmatmul.bf16.gmra.mxu0 %v1272
    %v5697 = vpop.f32.mrf.mxu0
    %v5698 = vadd.f32 %v5685, %v5697
    %v5699 = vpop.f32.mrf.mxu0
    %5700 = vdwg.mxu0
    %5701 = vmatpush.bf16.msra.mxu0 %v4211
    %5702 = vmatpush.bf16.msra.mxu0 %v4210
    %5703 = vmatpush.bf16.msra.mxu0 %v4209
    %5704 = vmatpush.bf16.msra.mxu0 %v4208
    %5705 = vmatpush.bf16.msra.mxu0 %v4207
    %5706 = vmatpush.bf16.msra.mxu0 %v4206
    %5707 = vmatpush.bf16.msra.mxu0 %v4205
    %5708 = vmatpush.bf16.msra.mxu0 %v4204
    %5709 = vmatmul.bf16.gmra.mxu0 %v1273
    %v5710 = vpop.f32.mrf.mxu0
    %v5711 = vadd.f32 %v5698, %v5710
    %v5712 = vpop.f32.mrf.mxu0
    %5713 = vdwg.mxu0
    %5714 = vmatpush.bf16.msra.mxu0 %v4219
    %5715 = vmatpush.bf16.msra.mxu0 %v4218
    %5716 = vmatpush.bf16.msra.mxu0 %v4217
    %5717 = vmatpush.bf16.msra.mxu0 %v4216
    %5718 = vmatpush.bf16.msra.mxu0 %v4215
    %5719 = vmatpush.bf16.msra.mxu0 %v4214
    %5720 = vmatpush.bf16.msra.mxu0 %v4213
    %5721 = vmatpush.bf16.msra.mxu0 %v4212
    %5722 = vmatmul.bf16.gmra.mxu0 %v1274
    %v5723 = vpop.f32.mrf.mxu0
    %v5724 = vadd.f32 %v5711, %v5723
    %v5725 = vpop.f32.mrf.mxu0
    %5726 = vdwg.mxu0
    %5727 = vmatpush.bf16.msra.mxu0 %v4227
    %5728 = vmatpush.bf16.msra.mxu0 %v4226
    %5729 = vmatpush.bf16.msra.mxu0 %v4225
    %5730 = vmatpush.bf16.msra.mxu0 %v4224
    %5731 = vmatpush.bf16.msra.mxu0 %v4223
    %5732 = vmatpush.bf16.msra.mxu0 %v4222
    %5733 = vmatpush.bf16.msra.mxu0 %v4221
    %5734 = vmatpush.bf16.msra.mxu0 %v4220
    %5735 = vmatmul.bf16.gmra.mxu0 %v1275
    %v5736 = vpop.f32.mrf.mxu0
    %v5737 = vadd.f32 %v5724, %v5736
    %v5738 = vpop.f32.mrf.mxu0
    %5739 = vdwg.mxu0
    %v5740 = vmax.f32 %v5737, 0.0
    %v5741 = vld [vmem:[%s3] sm:$0xff]
    %v5742 = vld [vmem:[%s3 + $0x8] sm:$0xff]
    %v5743 = vld [vmem:[%s3 + $0x10] sm:$0xff]
    %v5744 = vld [vmem:[%s3 + $0x18] sm:$0xff]
    %v5745 = vld [vmem:[%s3 + $0x20] sm:$0xff]
    %v5746 = vld [vmem:[%s3 + $0x28] sm:$0xff]
    %v5747 = vld [vmem:[%s3 + $0x30] sm:$0xff]
    %v5748 = vld [vmem:[%s3 + $0x38] sm:$0xff]
    %v5749 = vld [vmem:[%s3 + $0x40] sm:$0xff]
    %v5750 = vld [vmem:[%s3 + $0x48] sm:$0xff]
    %v5751 = vld [vmem:[%s3 + $0x50] sm:$0xff]
    %v5752 = vld [vmem:[%s3 + $0x58] sm:$0xff]
    %v5753 = vld [vmem:[%s3 + $0x60] sm:$0xff]
    %v5754 = vld [vmem:[%s3 + $0x68] sm:$0xff]
    %v5755 = vld [vmem:[%s3 + $0x70] sm:$0xff]
    %v5756 = vld [vmem:[%s3 + $0x78] sm:$0xff]
    %v5757 = vld [vmem:[%s4] sm:$0x1]
    %v5759 = vperm.slane %v5757, 0
    %5761 = vmatpush.msra.mxu0 %v5756
    %5762 = vmatpush.msra.mxu0 %v5755
    %5763 = vmatpush.msra.mxu0 %v5754
    %5764 = vmatpush.msra.mxu0 %v5753
    %5765 = vmatpush.msra.mxu0 %v5752
    %5766 = vmatpush.msra.mxu0 %v5751
    %5767 = vmatpush.msra.mxu0 %v5750
    %5768 = vmatpush.msra.mxu0 %v5749
    %5769 = vmatpush.msra.mxu0 %v5748
    %5770 = vmatpush.msra.mxu0 %v5747
    %5771 = vmatpush.msra.mxu0 %v5746
    %5772 = vmatpush.msra.mxu0 %v5745
    %5773 = vmatpush.msra.mxu0 %v5744
    %5774 = vmatpush.msra.mxu0 %v5743
    %5775 = vmatpush.msra.mxu0 %v5742
    %5776 = vmatpush.msra.mxu0 %v5741
    %5777 = vmatmul.f32.gmra.mxu0 %v5740
    %v5778 = vpop.f32.mrf.mxu0
    %v5779 = vadd.f32 %v5759, %v5778
    %5780 = vdwg.mxu0
    %vm5781 = vcmask 500736
    %v5782 = vsel %vm5781, %v5779, -inf
    %5783 = vmax.xlane.f32.xlu0 %v5782
    %v5784 = vpop.xlane.xlu0 %5783
    %v5785 = vsub.f32 %v5779, %v5784
    %v5786 = vmul.f32 %v5785, 1.442695
    %v5787 = vpow.pop %v5786
    %v5788 = vsel %vm5781, %v5787, 0.0
    %5789 = vadd.xlane.f32.xlu0 %v5788
    %v5790 = vpop.xlane.xlu0 %5789
    %v5791 = vlog2.pop %v5790
    %v5792 = vmul.f32 %v5791, 0.6931472
    %v5793 = vsub.f32 %v5785, %v5792
    %5794 = vst.msk [vmem:[#allocation2] sm:$0x3] %vm5781, %v5793
    // Predicated region
    $region22: #{server_model_femnist_forward.1} parent=1 // pred_check
      _
    $region23: #{server_model_femnist_forward.1} parent=1 // pred_check_branch
      %5796 = sbr.rel (0) target = $region25
    $region24: #{server_model_femnist_forward.1} parent=1 // pred_region
      %5798 = vsyncadd [#allocation3], 0
      %s5800 = sshll.u32 [#allocation2], 4
      %s5801 = int_to_ptr.vmem [resolvable:$true] %s5800
      %s5802 = sshll.u32 %s5, 4
      %s5803 = int_to_ptr.hbm [resolvable:$true] %s5802
      %5805 = dma.vmem_to_hbm [thread:$0]  %s5801, 32, %s5803, [#allocation3]
    $region25: #{server_model_femnist_forward.1} parent=1 // pred_fallthru
      _
    // Predicated region
    $region26: #{server_model_femnist_forward.1} parent=1 // pred_check
      _
    $region27: #{server_model_femnist_forward.1} parent=1 // pred_check_branch
      %5807 = sbr.rel (0) target = $region29
    $region28: #{server_model_femnist_forward.1} parent=1 // pred_region
      %5809 = dma.done [#allocation3], 32
    $region29: #{server_model_femnist_forward.1} parent=1 // pred_fallthru
      _
    %5810 = vsyncpa [#allocation3], 1

</llo_original>
